<compile_context>
chip_gen: v6e
topology: v6e:2x2x1
jax: 0.10.0
libtpu: 0.0.40
codegen_flags: <defaults>
</compile_context>

<pallas_src>
import jax
import jax.numpy as jnp
from jax.experimental import pallas as pl
from jax.experimental.pallas import tpu as pltpu


def _round_up(x, m):
    return (x + m - 1) // m * m


# ---------------------------------------------------------------------------
# Pallas kernel: whole-image 3x3 / stride-2 conv + folded BN + ReLU per step.
# ---------------------------------------------------------------------------
def _make_conv_kernel(wo):
    """Kernel specialized on the space-to-depth row width (wo + 1)."""
    wr = wo + 1

    def kernel(x_ref, w_ref, b_ref, mask_ref, o_ref):
        """
        x_ref:    (1, R, K)     bf16  flattened s2d rows, R >= Ho*(Wo+1) + Wo + 2
        w_ref:    (2, 2, K, N)  bf16  resident folded weights (tap ry, rx)
        b_ref:    (1, N)        f32   folded BN bias (resident)
        mask_ref: (M, 1)        f32   0 at the dummy (w == Wo) rows, else 1
        o_ref:    (1, M, N)     bf16  output, M = Ho*(Wo+1) flattened rows
        """
        m = o_ref.shape[1]
        n = o_ref.shape[2]

        acc = jnp.zeros((m, n), jnp.float32)
        for ry in range(2):                      # two vertical taps, unrolled
            for rx in range(2):                  # two horizontal taps, unrolled
                lhs = x_ref[0, pl.ds(ry * wr + rx, m), :]     # contiguous slice
                acc = acc + jnp.dot(lhs, w_ref[ry, rx],
                                    preferred_element_type=jnp.float32)

        y = jnp.maximum(acc + b_ref[...], 0.0) * mask_ref[...]
        o_ref[0] = y.astype(o_ref.dtype)

    return kernel


# ---------------------------------------------------------------------------
# Host-side glue (pure layout transforms; no im2col-style duplication).
# ---------------------------------------------------------------------------
def _space_to_depth_rows(x, ho, wo):
    """Pad (1 top/left) and space-to-depth by 2, flattened into rows.

    x: (B, H_in, W_in, C); the true content is the top-left block, anything
    beyond it (e.g. the previous stage's dummy zero column) is exactly zero and
    simply becomes part of the conv padding.
    Returns (B, (ho+2)*(wo+1), 4*C): row r*(wo+1)+q holds the 2x2 patch at
    (2r, 2q) of the padded image in (sy, sx, c) order; the extra trailing rows
    keep every in-kernel tap slice in bounds.
    """
    B, h_in, w_in, C = x.shape
    hp = 2 * (ho + 2)
    wp = 2 * (wo + 1)
    xp = jnp.pad(x, ((0, 0), (1, hp - 1 - h_in), (1, wp - 1 - w_in), (0, 0)))
    xs = xp.reshape(B, ho + 2, 2, wo + 1, 2, C)
    xs = jnp.transpose(xs, (0, 1, 3, 2, 4, 5))
    return xs.reshape(B, (ho + 2) * (wo + 1), 4 * C)


def _fold_conv_bn_weights(w_oihw, bn_scale, bn_bias, cin_pad, cpad):
    """Fold BN scale into the conv weight and lay it out for the s2d kernel.

    Returns:
      w2:   [2, 2, 4*cin_pad, cpad]  bf16  (vertical tap, horizontal tap, K, N)
      bias: [1, cpad]                f32
    The 3x3 taps map to (ry, sy)/(rx, sx) pairs; the (1,1) sub-positions and all
    padded input channels / output channels are exact zeros, so they are inert.
    """
    cout, cin = w_oihw.shape[0], w_oihw.shape[1]
    w = jnp.pad(w_oihw, ((0, 0), (0, cin_pad - cin), (0, 1), (0, 1)))  # cin + 3x3->4x4
    w = w * bn_scale[:, None, None, None]                              # fold BN scale
    w6 = w.reshape(cout, cin_pad, 2, 2, 2, 2)                          # (o,c,ry,sy,rx,sx)
    w2 = jnp.transpose(w6, (2, 4, 3, 5, 1, 0))                         # (ry,rx,sy,sx,c,o)
    w2 = w2.reshape(2, 2, 4 * cin_pad, cout)
    w2 = jnp.pad(w2, ((0, 0), (0, 0), (0, 0), (0, cpad - cout)))
    bias = jnp.pad(bn_bias, (0, cpad - cout)).reshape(1, cpad)
    return w2.astype(jnp.bfloat16), bias.astype(jnp.float32)


def conv3x3_s2_bn_relu(x_nhwc, h_true, w_true, w2, bias):
    """3x3 conv, stride 2, pad 1, folded BN + ReLU.

    x_nhwc: (B, H_in, W_in, cin_pad) bf16; true content is (h_true, w_true),
            extra columns / channels (if any) are exact zeros.
    Returns (out, ho, wo) with out of shape (B, ho, wo+1, cpad) bf16, where
    column wo and channels >= true Cout are exact zeros.
    """
    B = x_nhwc.shape[0]
    cin_pad = x_nhwc.shape[-1]
    ho = (h_true - 1) // 2 + 1
    wo = (w_true - 1) // 2 + 1
    kdim = 4 * cin_pad
    cpad = w2.shape[-1]

    xs = _space_to_depth_rows(x_nhwc.astype(jnp.bfloat16), ho, wo)
    n_rows = xs.shape[1]                       # (ho+2)*(wo+1)
    m_out = ho * (wo + 1)

    # Zero mask for the dummy (w == wo) output rows; constant-folded under jit.
    mask = (jnp.arange(m_out) % (wo + 1) != wo).astype(jnp.float32)
    mask = mask.reshape(m_out, 1)

    # Explicit VMEM budget from the actual resident buffers (+ headroom),
    # capped well inside v7x's 64 MiB physical VMEM.
    bytes_w = 2 * 2 * kdim * cpad * 2
    bytes_x = n_rows * kdim * 2
    bytes_o = m_out * cpad * 2
    bytes_misc = cpad * 4 + m_out * 4
    bytes_acc = m_out * cpad * 4
    need = 2 * (bytes_w + bytes_x + bytes_o + bytes_misc) + bytes_acc
    vmem_limit = int(min(max(need + (4 << 20), 16 << 20), 48 << 20))

    out = pl.pallas_call(
        _make_conv_kernel(wo),
        out_shape=jax.ShapeDtypeStruct((B, m_out, cpad), jnp.bfloat16),
        grid_spec=pltpu.PrefetchScalarGridSpec(
            num_scalar_prefetch=0,
            grid=(B,),
            in_specs=[
                pl.BlockSpec((1, n_rows, kdim), lambda b: (b, 0, 0)),
                pl.BlockSpec((2, 2, kdim, cpad), lambda b: (0, 0, 0, 0)),   # resident
                pl.BlockSpec((1, cpad), lambda b: (0, 0)),                  # resident
                pl.BlockSpec((m_out, 1), lambda b: (0, 0)),                 # resident
            ],
            out_specs=pl.BlockSpec((1, m_out, cpad), lambda b: (b, 0, 0)),
        ),
        compiler_params=pltpu.CompilerParams(
            dimension_semantics=("parallel",),
            vmem_limit_bytes=vmem_limit,
        ),
    )(xs, w2, bias, mask)

    # Stored layout for the next stage: (B, ho, wo+1, cpad), last column == 0.
    return out.reshape(B, ho, wo + 1, cpad), ho, wo


# ---------------------------------------------------------------------------
# Module wrapper (forward semantics of BackboneBase).
# ---------------------------------------------------------------------------
class BackboneBasePallas:
    """JAX/Pallas equivalent of BackboneBase wrapping a synthetic 4-stage backbone."""

    def __init__(self, key, in_channels, stage_channels,
                 return_interm_layers=True, use_whole_features=True):
        # return-layer naming matches IntermediateLayerGetter in the PyTorch module
        self.return_names = ['0', '1', '2', '3'] if return_interm_layers else ['0']
        self.use_whole_features = use_whole_features
        self.num_channels = stage_channels[-1]

        self.raw_params = []     # (w, folded_scale, folded_bias) for the f32 reference
        self.stage_params = []   # (w2_bf16, bias_padded_f32, cout) for the kernel
        c_in_true = in_channels
        c_in_pad = in_channels   # stage inputs stay channel-padded between stages
        eps = 1e-5
        for c_out in stage_channels:
            key, wk, gk, bk, mk, vk = jax.random.split(key, 6)
            w = jax.random.normal(wk, (c_out, c_in_true, 3, 3), jnp.float32) * 0.1
            # frozen BN statistics (deterministic, non-trivial), folded at init
            gamma = 1.0 + 0.25 * jax.random.normal(gk, (c_out,), jnp.float32)
            beta = 0.1 * jax.random.normal(bk, (c_out,), jnp.float32)
            running_mean = 0.1 * jax.random.normal(mk, (c_out,), jnp.float32)
            running_var = 1.0 + 0.25 * jax.random.uniform(vk, (c_out,), jnp.float32)
            scale = gamma / jnp.sqrt(running_var + eps)
            bias = beta - running_mean * scale

            cpad = _round_up(c_out, 128)
            w2, bias_pad = _fold_conv_bn_weights(w, scale, bias, c_in_pad, cpad)
            self.raw_params.append((w, scale, bias))
            self.stage_params.append((w2, bias_pad, c_out))
            c_in_true = c_out
            c_in_pad = cpad

    def __call__(self, tensor_nchw):
        """forward(tensor) -> dict of feature maps (NCHW), like xs = self.body(tensor)."""
        x = jnp.transpose(tensor_nchw, (0, 2, 3, 1)).astype(jnp.bfloat16)  # NCHW->NHWC
        h_true, w_true = x.shape[1], x.shape[2]
        feats = []
        for (w2, bias_pad, cout) in self.stage_params:
            x, h_true, w_true = conv3x3_s2_bn_relu(x, h_true, w_true, w2, bias_pad)
            feats.append((x, w_true, cout))
        # Padded (width column + channel lanes) bf16 activations flow between
        # stages; slice to true sizes / NCHW / f32 only once, here at the boundary.
        feats_nchw = [
            jnp.transpose(f[:, :, :w, :c], (0, 3, 1, 2)).astype(jnp.float32)
            for (f, w, c) in feats
        ]

        if not self.use_whole_features:
            # TODO(synk): `use_whole_features=False` returns whatever the raw backbone
            # returns; for this synthetic backbone that is the last feature map.
            return {'0': feats_nchw[-1]}
        if len(self.return_names) == 1:
            return {'0': feats_nchw[-1]}
        return {name: f for name, f in zip(self.return_names, feats_nchw)}


# ---------------------------------------------------------------------------
# Pure-JAX f32 reference (for correctness check of the bf16 kernel path).
# ---------------------------------------------------------------------------
def _reference_forward(x_nchw, raw_params):
    y = x_nchw
    feats = []
    for (w, scale, bias) in raw_params:
        y = jax.lax.conv_general_dilated(
            y, w, window_strides=(2, 2), padding=((1, 1), (1, 1)),
            dimension_numbers=('NCHW', 'OIHW', 'NCHW'),
            precision=jax.lax.Precision.HIGHEST)
        y = y * scale[None, :, None, None] + bias[None, :, None, None]
        y = jnp.maximum(y, 0.0)
        feats.append(y)
    return feats


if __name__ == "__main__":
    key = jax.random.PRNGKey(0)
    key, xk, pk = jax.random.split(key, 3)

    # Small shapes consistent with the forward: NCHW image-like input.
    B, C, H, W = 2, 4, 16, 16
    x = jax.random.normal(xk, (B, C, H, W), jnp.float32)

    backbone = BackboneBasePallas(
        pk,
        in_channels=C,
        stage_channels=(8, 16, 32, 64),
        return_interm_layers=True,
        use_whole_features=True,
    )

    forward = jax.jit(lambda t: backbone(t))
    xs = forward(x)
    xs = jax.tree_util.tree_map(jax.block_until_ready, xs)

    # Shape checks (layer1..layer4, each stride-2, NCHW).
    assert xs['0'].shape == (B, 8, 8, 8)
    assert xs['1'].shape == (B, 16, 4, 4)
    assert xs['2'].shape == (B, 32, 2, 2)
    assert xs['3'].shape == (B, 64, 1, 1)
    assert all(bool(jnp.all(jnp.isfinite(v))) for v in xs.values())

    # Numerical check vs pure-JAX f32 reference (bf16 kernel path -> loose tol).
    refs = _reference_forward(x, backbone.raw_params)
    for name, ref in zip(['0', '1', '2', '3'], refs):
        err = float(jnp.max(jnp.abs(xs[name] - ref)))
        scale_ = float(jnp.max(jnp.abs(ref))) + 1e-3
        assert err / scale_ < 5e-2, (name, err, scale_)

    print("KERNEL_OK")
</pallas_src>

<mosaic_0001>
module attributes {stable_mosaic.version = 11 : i64} {
  func.func @kernel(%arg0: i32, %arg1: memref<1x90x16xbf16, #tpu.memory_space<vmem>>, %arg2: memref<2x2x16x128xbf16, #tpu.memory_space<vmem>>, %arg3: memref<1x128xf32, #tpu.memory_space<vmem>>, %arg4: memref<72x1xf32, #tpu.memory_space<vmem>>, %arg5: memref<1x72x128xbf16, #tpu.memory_space<vmem>>) attributes {dimension_semantics = [#tpu.dimension_semantics<parallel>], iteration_bounds = array<i64: 2>, scalar_prefetch = 0 : i64, scratch_operands = 0 : i64, tpu.core_type = #tpu.core_type<tc>, window_params = [{transform_indices = @transform_0, window_bounds = array<i64: 1, 90, 16>}, {pipeline_mode = #tpu.pipeline_mode<synchronous>, transform_indices = @transform_1, window_bounds = array<i64: 2, 2, 16, 128>}, {pipeline_mode = #tpu.pipeline_mode<synchronous>, transform_indices = @transform_2, window_bounds = array<i64: 1, 128>}, {pipeline_mode = #tpu.pipeline_mode<synchronous>, transform_indices = @transform_3, window_bounds = array<i64: 72, 1>}, {transform_indices = @transform_4, window_bounds = array<i64: 1, 72, 128>}]} {
    %cst = arith.constant 0.000000e+00 : f32
    %0 = vector.broadcast %cst : f32 to vector<72x128xf32>
    %c0 = arith.constant 0 : index
    %c0_0 = arith.constant 0 : index
    %c0_1 = arith.constant 0 : index
    %1 = vector.load %arg1[%c0, %c0_0, %c0_1] : memref<1x90x16xbf16, #tpu.memory_space<vmem>>, vector<1x72x16xbf16>
    %2 = vector.shape_cast %1 : vector<1x72x16xbf16> to vector<72x16xbf16>
    %c0_2 = arith.constant 0 : index
    %c0_3 = arith.constant 0 : index
    %c0_4 = arith.constant 0 : index
    %c0_5 = arith.constant 0 : index
    %3 = vector.load %arg2[%c0_2, %c0_3, %c0_4, %c0_5] : memref<2x2x16x128xbf16, #tpu.memory_space<vmem>>, vector<1x1x16x128xbf16>
    %4 = vector.shape_cast %3 : vector<1x1x16x128xbf16> to vector<16x128xbf16>
    %cst_6 = arith.constant dense<0.000000e+00> : vector<72x128xf32>
    %5 = tpu.matmul %2, %4, %cst_6 {dimension_numbers = #tpu.dot_dimension_numbers<[1], [0], [0], [1], [0, 0, 1, 1], [], []>} : vector<72x16xbf16>, vector<16x128xbf16>, vector<72x128xf32> -> vector<72x128xf32>
    %6 = arith.addf %0, %5 : vector<72x128xf32>
    %c0_7 = arith.constant 0 : index
    %c1 = arith.constant 1 : index
    %c0_8 = arith.constant 0 : index
    %7 = vector.load %arg1[%c0_7, %c1, %c0_8] : memref<1x90x16xbf16, #tpu.memory_space<vmem>>, vector<1x72x16xbf16>
    %8 = vector.shape_cast %7 : vector<1x72x16xbf16> to vector<72x16xbf16>
    %c0_9 = arith.constant 0 : index
    %c1_10 = arith.constant 1 : index
    %c0_11 = arith.constant 0 : index
    %c0_12 = arith.constant 0 : index
    %9 = vector.load %arg2[%c0_9, %c1_10, %c0_11, %c0_12] : memref<2x2x16x128xbf16, #tpu.memory_space<vmem>>, vector<1x1x16x128xbf16>
    %10 = vector.shape_cast %9 : vector<1x1x16x128xbf16> to vector<16x128xbf16>
    %cst_13 = arith.constant dense<0.000000e+00> : vector<72x128xf32>
    %11 = tpu.matmul %8, %10, %cst_13 {dimension_numbers = #tpu.dot_dimension_numbers<[1], [0], [0], [1], [0, 0, 1, 1], [], []>} : vector<72x16xbf16>, vector<16x128xbf16>, vector<72x128xf32> -> vector<72x128xf32>
    %12 = arith.addf %6, %11 : vector<72x128xf32>
    %c0_14 = arith.constant 0 : index
    %c9 = arith.constant 9 : index
    %c0_15 = arith.constant 0 : index
    %13 = vector.load %arg1[%c0_14, %c9, %c0_15] : memref<1x90x16xbf16, #tpu.memory_space<vmem>>, vector<1x72x16xbf16>
    %14 = vector.shape_cast %13 : vector<1x72x16xbf16> to vector<72x16xbf16>
    %c1_16 = arith.constant 1 : index
    %c0_17 = arith.constant 0 : index
    %c0_18 = arith.constant 0 : index
    %c0_19 = arith.constant 0 : index
    %15 = vector.load %arg2[%c1_16, %c0_17, %c0_18, %c0_19] : memref<2x2x16x128xbf16, #tpu.memory_space<vmem>>, vector<1x1x16x128xbf16>
    %16 = vector.shape_cast %15 : vector<1x1x16x128xbf16> to vector<16x128xbf16>
    %cst_20 = arith.constant dense<0.000000e+00> : vector<72x128xf32>
    %17 = tpu.matmul %14, %16, %cst_20 {dimension_numbers = #tpu.dot_dimension_numbers<[1], [0], [0], [1], [0, 0, 1, 1], [], []>} : vector<72x16xbf16>, vector<16x128xbf16>, vector<72x128xf32> -> vector<72x128xf32>
    %18 = arith.addf %12, %17 : vector<72x128xf32>
    %c0_21 = arith.constant 0 : index
    %c10 = arith.constant 10 : index
    %c0_22 = arith.constant 0 : index
    %19 = vector.load %arg1[%c0_21, %c10, %c0_22] : memref<1x90x16xbf16, #tpu.memory_space<vmem>>, vector<1x72x16xbf16>
    %20 = vector.shape_cast %19 : vector<1x72x16xbf16> to vector<72x16xbf16>
    %c1_23 = arith.constant 1 : index
    %c1_24 = arith.constant 1 : index
    %c0_25 = arith.constant 0 : index
    %c0_26 = arith.constant 0 : index
    %21 = vector.load %arg2[%c1_23, %c1_24, %c0_25, %c0_26] : memref<2x2x16x128xbf16, #tpu.memory_space<vmem>>, vector<1x1x16x128xbf16>
    %22 = vector.shape_cast %21 : vector<1x1x16x128xbf16> to vector<16x128xbf16>
    %cst_27 = arith.constant dense<0.000000e+00> : vector<72x128xf32>
    %23 = tpu.matmul %20, %22, %cst_27 {dimension_numbers = #tpu.dot_dimension_numbers<[1], [0], [0], [1], [0, 0, 1, 1], [], []>} : vector<72x16xbf16>, vector<16x128xbf16>, vector<72x128xf32> -> vector<72x128xf32>
    %24 = arith.addf %18, %23 : vector<72x128xf32>
    %c0_28 = arith.constant 0 : index
    %c0_29 = arith.constant 0 : index
    %25 = vector.load %arg3[%c0_28, %c0_29] : memref<1x128xf32, #tpu.memory_space<vmem>>, vector<1x128xf32>
    %26 = vector.broadcast %25 : vector<1x128xf32> to vector<72x128xf32>
    %27 = arith.addf %24, %26 : vector<72x128xf32>
    %cst_30 = arith.constant 0.000000e+00 : f32
    %28 = vector.broadcast %cst_30 : f32 to vector<72x128xf32>
    %29 = arith.maximumf %27, %28 : vector<72x128xf32>
    %c0_31 = arith.constant 0 : index
    %c0_32 = arith.constant 0 : index
    %30 = vector.load %arg4[%c0_31, %c0_32] : memref<72x1xf32, #tpu.memory_space<vmem>>, vector<72x1xf32>
    %31 = vector.broadcast %30 : vector<72x1xf32> to vector<72x128xf32>
    %32 = arith.mulf %29, %31 : vector<72x128xf32>
    %33 = arith.truncf %32 : vector<72x128xf32> to vector<72x128xbf16>
    %c0_33 = arith.constant 0 : index
    %c0_34 = arith.constant 0 : index
    %c0_35 = arith.constant 0 : index
    %34 = vector.load %arg5[%c0_33, %c0_34, %c0_35] : memref<1x72x128xbf16, #tpu.memory_space<vmem>>, vector<1x72x128xbf16>
    %35 = vector.shape_cast %34 : vector<1x72x128xbf16> to vector<72x128xbf16>
    %36 = vector.shape_cast %33 : vector<72x128xbf16> to vector<1x72x128xbf16>
    tpu.vector_store %arg5[%c0_33, %c0_34, %c0_35], %36 {strides = array<i32>} : memref<1x72x128xbf16, #tpu.memory_space<vmem>>, vector<1x72x128xbf16>,
    return
  }
  func.func @transform_0(%arg0: i32) -> (i32, i32, i32) {
    %c0_i32 = arith.constant 0 : i32
    %c0_i32_0 = arith.constant 0 : i32
    %c0_i32_1 = arith.constant 0 : i32
    return %arg0, %c0_i32, %c0_i32_0 : i32, i32, i32
  }
  func.func @transform_1(%arg0: i32) -> (i32, i32, i32, i32) {
    %c0_i32 = arith.constant 0 : i32
    %c0_i32_0 = arith.constant 0 : i32
    %c0_i32_1 = arith.constant 0 : i32
    %c0_i32_2 = arith.constant 0 : i32
    %c0_i32_3 = arith.constant 0 : i32
    return %c0_i32, %c0_i32_0, %c0_i32_1, %c0_i32_2 : i32, i32, i32, i32
  }
  func.func @transform_2(%arg0: i32) -> (i32, i32) {
    %c0_i32 = arith.constant 0 : i32
    %c0_i32_0 = arith.constant 0 : i32
    %c0_i32_1 = arith.constant 0 : i32
    return %c0_i32, %c0_i32_0 : i32, i32
  }
  func.func @transform_3(%arg0: i32) -> (i32, i32) {
    %c0_i32 = arith.constant 0 : i32
    %c0_i32_0 = arith.constant 0 : i32
    %c0_i32_1 = arith.constant 0 : i32
    return %c0_i32, %c0_i32_0 : i32, i32
  }
  func.func @transform_4(%arg0: i32) -> (i32, i32, i32) {
    %c0_i32 = arith.constant 0 : i32
    %c0_i32_0 = arith.constant 0 : i32
    %c0_i32_1 = arith.constant 0 : i32
    return %arg0, %c0_i32, %c0_i32_0 : i32, i32, i32
  }
}

module attributes {stable_mosaic.version = 11 : i64} {
  func.func @kernel(%arg0: i32, %arg1: memref<1x30x512xbf16, #tpu.memory_space<vmem>>, %arg2: memref<2x2x512x128xbf16, #tpu.memory_space<vmem>>, %arg3: memref<1x128xf32, #tpu.memory_space<vmem>>, %arg4: memref<20x1xf32, #tpu.memory_space<vmem>>, %arg5: memref<1x20x128xbf16, #tpu.memory_space<vmem>>) attributes {dimension_semantics = [#tpu.dimension_semantics<parallel>], iteration_bounds = array<i64: 2>, scalar_prefetch = 0 : i64, scratch_operands = 0 : i64, tpu.core_type = #tpu.core_type<tc>, window_params = [{transform_indices = @transform_0, window_bounds = array<i64: 1, 30, 512>}, {pipeline_mode = #tpu.pipeline_mode<synchronous>, transform_indices = @transform_1, window_bounds = array<i64: 2, 2, 512, 128>}, {pipeline_mode = #tpu.pipeline_mode<synchronous>, transform_indices = @transform_2, window_bounds = array<i64: 1, 128>}, {pipeline_mode = #tpu.pipeline_mode<synchronous>, transform_indices = @transform_3, window_bounds = array<i64: 20, 1>}, {transform_indices = @transform_4, window_bounds = array<i64: 1, 20, 128>}]} {
    %cst = arith.constant 0.000000e+00 : f32
    %0 = vector.broadcast %cst : f32 to vector<20x128xf32>
    %c0 = arith.constant 0 : index
    %c0_0 = arith.constant 0 : index
    %c0_1 = arith.constant 0 : index
    %1 = vector.load %arg1[%c0, %c0_0, %c0_1] : memref<1x30x512xbf16, #tpu.memory_space<vmem>>, vector<1x20x512xbf16>
    %2 = vector.shape_cast %1 : vector<1x20x512xbf16> to vector<20x512xbf16>
    %c0_2 = arith.constant 0 : index
    %c0_3 = arith.constant 0 : index
    %c0_4 = arith.constant 0 : index
    %c0_5 = arith.constant 0 : index
    %3 = vector.load %arg2[%c0_2, %c0_3, %c0_4, %c0_5] : memref<2x2x512x128xbf16, #tpu.memory_space<vmem>>, vector<1x1x512x128xbf16>
    %4 = vector.shape_cast %3 : vector<1x1x512x128xbf16> to vector<512x128xbf16>
    %cst_6 = arith.constant dense<0.000000e+00> : vector<20x128xf32>
    %5 = tpu.matmul %2, %4, %cst_6 {dimension_numbers = #tpu.dot_dimension_numbers<[1], [0], [0], [1], [0, 0, 1, 1], [], []>} : vector<20x512xbf16>, vector<512x128xbf16>, vector<20x128xf32> -> vector<20x128xf32>
    %6 = arith.addf %0, %5 : vector<20x128xf32>
    %c0_7 = arith.constant 0 : index
    %c1 = arith.constant 1 : index
    %c0_8 = arith.constant 0 : index
    %7 = vector.load %arg1[%c0_7, %c1, %c0_8] : memref<1x30x512xbf16, #tpu.memory_space<vmem>>, vector<1x20x512xbf16>
    %8 = vector.shape_cast %7 : vector<1x20x512xbf16> to vector<20x512xbf16>
    %c0_9 = arith.constant 0 : index
    %c1_10 = arith.constant 1 : index
    %c0_11 = arith.constant 0 : index
    %c0_12 = arith.constant 0 : index
    %9 = vector.load %arg2[%c0_9, %c1_10, %c0_11, %c0_12] : memref<2x2x512x128xbf16, #tpu.memory_space<vmem>>, vector<1x1x512x128xbf16>
    %10 = vector.shape_cast %9 : vector<1x1x512x128xbf16> to vector<512x128xbf16>
    %cst_13 = arith.constant dense<0.000000e+00> : vector<20x128xf32>
    %11 = tpu.matmul %8, %10, %cst_13 {dimension_numbers = #tpu.dot_dimension_numbers<[1], [0], [0], [1], [0, 0, 1, 1], [], []>} : vector<20x512xbf16>, vector<512x128xbf16>, vector<20x128xf32> -> vector<20x128xf32>
    %12 = arith.addf %6, %11 : vector<20x128xf32>
    %c0_14 = arith.constant 0 : index
    %c5 = arith.constant 5 : index
    %c0_15 = arith.constant 0 : index
    %13 = vector.load %arg1[%c0_14, %c5, %c0_15] : memref<1x30x512xbf16, #tpu.memory_space<vmem>>, vector<1x20x512xbf16>
    %14 = vector.shape_cast %13 : vector<1x20x512xbf16> to vector<20x512xbf16>
    %c1_16 = arith.constant 1 : index
    %c0_17 = arith.constant 0 : index
    %c0_18 = arith.constant 0 : index
    %c0_19 = arith.constant 0 : index
    %15 = vector.load %arg2[%c1_16, %c0_17, %c0_18, %c0_19] : memref<2x2x512x128xbf16, #tpu.memory_space<vmem>>, vector<1x1x512x128xbf16>
    %16 = vector.shape_cast %15 : vector<1x1x512x128xbf16> to vector<512x128xbf16>
    %cst_20 = arith.constant dense<0.000000e+00> : vector<20x128xf32>
    %17 = tpu.matmul %14, %16, %cst_20 {dimension_numbers = #tpu.dot_dimension_numbers<[1], [0], [0], [1], [0, 0, 1, 1], [], []>} : vector<20x512xbf16>, vector<512x128xbf16>, vector<20x128xf32> -> vector<20x128xf32>
    %18 = arith.addf %12, %17 : vector<20x128xf32>
    %c0_21 = arith.constant 0 : index
    %c6 = arith.constant 6 : index
    %c0_22 = arith.constant 0 : index
    %19 = vector.load %arg1[%c0_21, %c6, %c0_22] : memref<1x30x512xbf16, #tpu.memory_space<vmem>>, vector<1x20x512xbf16>
    %20 = vector.shape_cast %19 : vector<1x20x512xbf16> to vector<20x512xbf16>
    %c1_23 = arith.constant 1 : index
    %c1_24 = arith.constant 1 : index
    %c0_25 = arith.constant 0 : index
    %c0_26 = arith.constant 0 : index
    %21 = vector.load %arg2[%c1_23, %c1_24, %c0_25, %c0_26] : memref<2x2x512x128xbf16, #tpu.memory_space<vmem>>, vector<1x1x512x128xbf16>
    %22 = vector.shape_cast %21 : vector<1x1x512x128xbf16> to vector<512x128xbf16>
    %cst_27 = arith.constant dense<0.000000e+00> : vector<20x128xf32>
    %23 = tpu.matmul %20, %22, %cst_27 {dimension_numbers = #tpu.dot_dimension_numbers<[1], [0], [0], [1], [0, 0, 1, 1], [], []>} : vector<20x512xbf16>, vector<512x128xbf16>, vector<20x128xf32> -> vector<20x128xf32>
    %24 = arith.addf %18, %23 : vector<20x128xf32>
    %c0_28 = arith.constant 0 : index
    %c0_29 = arith.constant 0 : index
    %25 = vector.load %arg3[%c0_28, %c0_29] : memref<1x128xf32, #tpu.memory_space<vmem>>, vector<1x128xf32>
    %26 = vector.broadcast %25 : vector<1x128xf32> to vector<20x128xf32>
    %27 = arith.addf %24, %26 : vector<20x128xf32>
    %cst_30 = arith.constant 0.000000e+00 : f32
    %28 = vector.broadcast %cst_30 : f32 to vector<20x128xf32>
    %29 = arith.maximumf %27, %28 : vector<20x128xf32>
    %c0_31 = arith.constant 0 : index
    %c0_32 = arith.constant 0 : index
    %30 = vector.load %arg4[%c0_31, %c0_32] : memref<20x1xf32, #tpu.memory_space<vmem>>, vector<20x1xf32>
    %31 = vector.broadcast %30 : vector<20x1xf32> to vector<20x128xf32>
    %32 = arith.mulf %29, %31 : vector<20x128xf32>
    %33 = arith.truncf %32 : vector<20x128xf32> to vector<20x128xbf16>
    %c0_33 = arith.constant 0 : index
    %c0_34 = arith.constant 0 : index
    %c0_35 = arith.constant 0 : index
    %34 = vector.load %arg5[%c0_33, %c0_34, %c0_35] : memref<1x20x128xbf16, #tpu.memory_space<vmem>>, vector<1x20x128xbf16>
    %35 = vector.shape_cast %34 : vector<1x20x128xbf16> to vector<20x128xbf16>
    %36 = vector.shape_cast %33 : vector<20x128xbf16> to vector<1x20x128xbf16>
    tpu.vector_store %arg5[%c0_33, %c0_34, %c0_35], %36 {strides = array<i32>} : memref<1x20x128xbf16, #tpu.memory_space<vmem>>, vector<1x20x128xbf16>,
    return
  }
  func.func @transform_0(%arg0: i32) -> (i32, i32, i32) {
    %c0_i32 = arith.constant 0 : i32
    %c0_i32_0 = arith.constant 0 : i32
    %c0_i32_1 = arith.constant 0 : i32
    return %arg0, %c0_i32, %c0_i32_0 : i32, i32, i32
  }
  func.func @transform_1(%arg0: i32) -> (i32, i32, i32, i32) {
    %c0_i32 = arith.constant 0 : i32
    %c0_i32_0 = arith.constant 0 : i32
    %c0_i32_1 = arith.constant 0 : i32
    %c0_i32_2 = arith.constant 0 : i32
    %c0_i32_3 = arith.constant 0 : i32
    return %c0_i32, %c0_i32_0, %c0_i32_1, %c0_i32_2 : i32, i32, i32, i32
  }
  func.func @transform_2(%arg0: i32) -> (i32, i32) {
    %c0_i32 = arith.constant 0 : i32
    %c0_i32_0 = arith.constant 0 : i32
    %c0_i32_1 = arith.constant 0 : i32
    return %c0_i32, %c0_i32_0 : i32, i32
  }
  func.func @transform_3(%arg0: i32) -> (i32, i32) {
    %c0_i32 = arith.constant 0 : i32
    %c0_i32_0 = arith.constant 0 : i32
    %c0_i32_1 = arith.constant 0 : i32
    return %c0_i32, %c0_i32_0 : i32, i32
  }
  func.func @transform_4(%arg0: i32) -> (i32, i32, i32) {
    %c0_i32 = arith.constant 0 : i32
    %c0_i32_0 = arith.constant 0 : i32
    %c0_i32_1 = arith.constant 0 : i32
    return %arg0, %c0_i32, %c0_i32_0 : i32, i32, i32
  }
}

module attributes {stable_mosaic.version = 11 : i64} {
  func.func @kernel(%arg0: i32, %arg1: memref<1x12x512xbf16, #tpu.memory_space<vmem>>, %arg2: memref<2x2x512x128xbf16, #tpu.memory_space<vmem>>, %arg3: memref<1x128xf32, #tpu.memory_space<vmem>>, %arg4: memref<6x1xf32, #tpu.memory_space<vmem>>, %arg5: memref<1x6x128xbf16, #tpu.memory_space<vmem>>) attributes {dimension_semantics = [#tpu.dimension_semantics<parallel>], iteration_bounds = array<i64: 2>, scalar_prefetch = 0 : i64, scratch_operands = 0 : i64, tpu.core_type = #tpu.core_type<tc>, window_params = [{transform_indices = @transform_0, window_bounds = array<i64: 1, 12, 512>}, {pipeline_mode = #tpu.pipeline_mode<synchronous>, transform_indices = @transform_1, window_bounds = array<i64: 2, 2, 512, 128>}, {pipeline_mode = #tpu.pipeline_mode<synchronous>, transform_indices = @transform_2, window_bounds = array<i64: 1, 128>}, {pipeline_mode = #tpu.pipeline_mode<synchronous>, transform_indices = @transform_3, window_bounds = array<i64: 6, 1>}, {transform_indices = @transform_4, window_bounds = array<i64: 1, 6, 128>}]} {
    %cst = arith.constant 0.000000e+00 : f32
    %0 = vector.broadcast %cst : f32 to vector<6x128xf32>
    %c0 = arith.constant 0 : index
    %c0_0 = arith.constant 0 : index
    %c0_1 = arith.constant 0 : index
    %1 = vector.load %arg1[%c0, %c0_0, %c0_1] : memref<1x12x512xbf16, #tpu.memory_space<vmem>>, vector<1x6x512xbf16>
    %2 = vector.shape_cast %1 : vector<1x6x512xbf16> to vector<6x512xbf16>
    %c0_2 = arith.constant 0 : index
    %c0_3 = arith.constant 0 : index
    %c0_4 = arith.constant 0 : index
    %c0_5 = arith.constant 0 : index
    %3 = vector.load %arg2[%c0_2, %c0_3, %c0_4, %c0_5] : memref<2x2x512x128xbf16, #tpu.memory_space<vmem>>, vector<1x1x512x128xbf16>
    %4 = vector.shape_cast %3 : vector<1x1x512x128xbf16> to vector<512x128xbf16>
    %cst_6 = arith.constant dense<0.000000e+00> : vector<6x128xf32>
    %5 = tpu.matmul %2, %4, %cst_6 {dimension_numbers = #tpu.dot_dimension_numbers<[1], [0], [0], [1], [0, 0, 1, 1], [], []>} : vector<6x512xbf16>, vector<512x128xbf16>, vector<6x128xf32> -> vector<6x128xf32>
    %6 = arith.addf %0, %5 : vector<6x128xf32>
    %c0_7 = arith.constant 0 : index
    %c1 = arith.constant 1 : index
    %c0_8 = arith.constant 0 : index
    %7 = vector.load %arg1[%c0_7, %c1, %c0_8] : memref<1x12x512xbf16, #tpu.memory_space<vmem>>, vector<1x6x512xbf16>
    %8 = vector.shape_cast %7 : vector<1x6x512xbf16> to vector<6x512xbf16>
    %c0_9 = arith.constant 0 : index
    %c1_10 = arith.constant 1 : index
    %c0_11 = arith.constant 0 : index
    %c0_12 = arith.constant 0 : index
    %9 = vector.load %arg2[%c0_9, %c1_10, %c0_11, %c0_12] : memref<2x2x512x128xbf16, #tpu.memory_space<vmem>>, vector<1x1x512x128xbf16>
    %10 = vector.shape_cast %9 : vector<1x1x512x128xbf16> to vector<512x128xbf16>
    %cst_13 = arith.constant dense<0.000000e+00> : vector<6x128xf32>
    %11 = tpu.matmul %8, %10, %cst_13 {dimension_numbers = #tpu.dot_dimension_numbers<[1], [0], [0], [1], [0, 0, 1, 1], [], []>} : vector<6x512xbf16>, vector<512x128xbf16>, vector<6x128xf32> -> vector<6x128xf32>
    %12 = arith.addf %6, %11 : vector<6x128xf32>
    %c0_14 = arith.constant 0 : index
    %c3 = arith.constant 3 : index
    %c0_15 = arith.constant 0 : index
    %13 = vector.load %arg1[%c0_14, %c3, %c0_15] : memref<1x12x512xbf16, #tpu.memory_space<vmem>>, vector<1x6x512xbf16>
    %14 = vector.shape_cast %13 : vector<1x6x512xbf16> to vector<6x512xbf16>
    %c1_16 = arith.constant 1 : index
    %c0_17 = arith.constant 0 : index
    %c0_18 = arith.constant 0 : index
    %c0_19 = arith.constant 0 : index
    %15 = vector.load %arg2[%c1_16, %c0_17, %c0_18, %c0_19] : memref<2x2x512x128xbf16, #tpu.memory_space<vmem>>, vector<1x1x512x128xbf16>
    %16 = vector.shape_cast %15 : vector<1x1x512x128xbf16> to vector<512x128xbf16>
    %cst_20 = arith.constant dense<0.000000e+00> : vector<6x128xf32>
    %17 = tpu.matmul %14, %16, %cst_20 {dimension_numbers = #tpu.dot_dimension_numbers<[1], [0], [0], [1], [0, 0, 1, 1], [], []>} : vector<6x512xbf16>, vector<512x128xbf16>, vector<6x128xf32> -> vector<6x128xf32>
    %18 = arith.addf %12, %17 : vector<6x128xf32>
    %c0_21 = arith.constant 0 : index
    %c4 = arith.constant 4 : index
    %c0_22 = arith.constant 0 : index
    %19 = vector.load %arg1[%c0_21, %c4, %c0_22] : memref<1x12x512xbf16, #tpu.memory_space<vmem>>, vector<1x6x512xbf16>
    %20 = vector.shape_cast %19 : vector<1x6x512xbf16> to vector<6x512xbf16>
    %c1_23 = arith.constant 1 : index
    %c1_24 = arith.constant 1 : index
    %c0_25 = arith.constant 0 : index
    %c0_26 = arith.constant 0 : index
    %21 = vector.load %arg2[%c1_23, %c1_24, %c0_25, %c0_26] : memref<2x2x512x128xbf16, #tpu.memory_space<vmem>>, vector<1x1x512x128xbf16>
    %22 = vector.shape_cast %21 : vector<1x1x512x128xbf16> to vector<512x128xbf16>
    %cst_27 = arith.constant dense<0.000000e+00> : vector<6x128xf32>
    %23 = tpu.matmul %20, %22, %cst_27 {dimension_numbers = #tpu.dot_dimension_numbers<[1], [0], [0], [1], [0, 0, 1, 1], [], []>} : vector<6x512xbf16>, vector<512x128xbf16>, vector<6x128xf32> -> vector<6x128xf32>
    %24 = arith.addf %18, %23 : vector<6x128xf32>
    %c0_28 = arith.constant 0 : index
    %c0_29 = arith.constant 0 : index
    %25 = vector.load %arg3[%c0_28, %c0_29] : memref<1x128xf32, #tpu.memory_space<vmem>>, vector<1x128xf32>
    %26 = vector.broadcast %25 : vector<1x128xf32> to vector<6x128xf32>
    %27 = arith.addf %24, %26 : vector<6x128xf32>
    %cst_30 = arith.constant 0.000000e+00 : f32
    %28 = vector.broadcast %cst_30 : f32 to vector<6x128xf32>
    %29 = arith.maximumf %27, %28 : vector<6x128xf32>
    %c0_31 = arith.constant 0 : index
    %c0_32 = arith.constant 0 : index
    %30 = vector.load %arg4[%c0_31, %c0_32] : memref<6x1xf32, #tpu.memory_space<vmem>>, vector<6x1xf32>
    %31 = vector.broadcast %30 : vector<6x1xf32> to vector<6x128xf32>
    %32 = arith.mulf %29, %31 : vector<6x128xf32>
    %33 = arith.truncf %32 : vector<6x128xf32> to vector<6x128xbf16>
    %c0_33 = arith.constant 0 : index
    %c0_34 = arith.constant 0 : index
    %c0_35 = arith.constant 0 : index
    %34 = vector.load %arg5[%c0_33, %c0_34, %c0_35] : memref<1x6x128xbf16, #tpu.memory_space<vmem>>, vector<1x6x128xbf16>
    %35 = vector.shape_cast %34 : vector<1x6x128xbf16> to vector<6x128xbf16>
    %36 = vector.shape_cast %33 : vector<6x128xbf16> to vector<1x6x128xbf16>
    tpu.vector_store %arg5[%c0_33, %c0_34, %c0_35], %36 {strides = array<i32>} : memref<1x6x128xbf16, #tpu.memory_space<vmem>>, vector<1x6x128xbf16>,
    return
  }
  func.func @transform_0(%arg0: i32) -> (i32, i32, i32) {
    %c0_i32 = arith.constant 0 : i32
    %c0_i32_0 = arith.constant 0 : i32
    %c0_i32_1 = arith.constant 0 : i32
    return %arg0, %c0_i32, %c0_i32_0 : i32, i32, i32
  }
  func.func @transform_1(%arg0: i32) -> (i32, i32, i32, i32) {
    %c0_i32 = arith.constant 0 : i32
    %c0_i32_0 = arith.constant 0 : i32
    %c0_i32_1 = arith.constant 0 : i32
    %c0_i32_2 = arith.constant 0 : i32
    %c0_i32_3 = arith.constant 0 : i32
    return %c0_i32, %c0_i32_0, %c0_i32_1, %c0_i32_2 : i32, i32, i32, i32
  }
  func.func @transform_2(%arg0: i32) -> (i32, i32) {
    %c0_i32 = arith.constant 0 : i32
    %c0_i32_0 = arith.constant 0 : i32
    %c0_i32_1 = arith.constant 0 : i32
    return %c0_i32, %c0_i32_0 : i32, i32
  }
  func.func @transform_3(%arg0: i32) -> (i32, i32) {
    %c0_i32 = arith.constant 0 : i32
    %c0_i32_0 = arith.constant 0 : i32
    %c0_i32_1 = arith.constant 0 : i32
    return %c0_i32, %c0_i32_0 : i32, i32
  }
  func.func @transform_4(%arg0: i32) -> (i32, i32, i32) {
    %c0_i32 = arith.constant 0 : i32
    %c0_i32_0 = arith.constant 0 : i32
    %c0_i32_1 = arith.constant 0 : i32
    return %arg0, %c0_i32, %c0_i32_0 : i32, i32, i32
  }
}

module attributes {stable_mosaic.version = 11 : i64} {
  func.func @kernel(%arg0: i32, %arg1: memref<1x6x512xbf16, #tpu.memory_space<vmem>>, %arg2: memref<2x2x512x128xbf16, #tpu.memory_space<vmem>>, %arg3: memref<1x128xf32, #tpu.memory_space<vmem>>, %arg4: memref<2x1xf32, #tpu.memory_space<vmem>>, %arg5: memref<1x2x128xbf16, #tpu.memory_space<vmem>>) attributes {dimension_semantics = [#tpu.dimension_semantics<parallel>], iteration_bounds = array<i64: 2>, scalar_prefetch = 0 : i64, scratch_operands = 0 : i64, tpu.core_type = #tpu.core_type<tc>, window_params = [{transform_indices = @transform_0, window_bounds = array<i64: 1, 6, 512>}, {pipeline_mode = #tpu.pipeline_mode<synchronous>, transform_indices = @transform_1, window_bounds = array<i64: 2, 2, 512, 128>}, {pipeline_mode = #tpu.pipeline_mode<synchronous>, transform_indices = @transform_2, window_bounds = array<i64: 1, 128>}, {pipeline_mode = #tpu.pipeline_mode<synchronous>, transform_indices = @transform_3, window_bounds = array<i64: 2, 1>}, {transform_indices = @transform_4, window_bounds = array<i64: 1, 2, 128>}]} {
    %cst = arith.constant 0.000000e+00 : f32
    %0 = vector.broadcast %cst : f32 to vector<2x128xf32>
    %c0 = arith.constant 0 : index
    %c0_0 = arith.constant 0 : index
    %c0_1 = arith.constant 0 : index
    %1 = vector.load %arg1[%c0, %c0_0, %c0_1] : memref<1x6x512xbf16, #tpu.memory_space<vmem>>, vector<1x2x512xbf16>
    %2 = vector.shape_cast %1 : vector<1x2x512xbf16> to vector<2x512xbf16>
    %c0_2 = arith.constant 0 : index
    %c0_3 = arith.constant 0 : index
    %c0_4 = arith.constant 0 : index
    %c0_5 = arith.constant 0 : index
    %3 = vector.load %arg2[%c0_2, %c0_3, %c0_4, %c0_5] : memref<2x2x512x128xbf16, #tpu.memory_space<vmem>>, vector<1x1x512x128xbf16>
    %4 = vector.shape_cast %3 : vector<1x1x512x128xbf16> to vector<512x128xbf16>
    %cst_6 = arith.constant dense<0.000000e+00> : vector<2x128xf32>
    %5 = tpu.matmul %2, %4, %cst_6 {dimension_numbers = #tpu.dot_dimension_numbers<[1], [0], [0], [1], [0, 0, 1, 1], [], []>} : vector<2x512xbf16>, vector<512x128xbf16>, vector<2x128xf32> -> vector<2x128xf32>
    %6 = arith.addf %0, %5 : vector<2x128xf32>
    %c0_7 = arith.constant 0 : index
    %c1 = arith.constant 1 : index
    %c0_8 = arith.constant 0 : index
    %7 = vector.load %arg1[%c0_7, %c1, %c0_8] : memref<1x6x512xbf16, #tpu.memory_space<vmem>>, vector<1x2x512xbf16>
    %8 = vector.shape_cast %7 : vector<1x2x512xbf16> to vector<2x512xbf16>
    %c0_9 = arith.constant 0 : index
    %c1_10 = arith.constant 1 : index
    %c0_11 = arith.constant 0 : index
    %c0_12 = arith.constant 0 : index
    %9 = vector.load %arg2[%c0_9, %c1_10, %c0_11, %c0_12] : memref<2x2x512x128xbf16, #tpu.memory_space<vmem>>, vector<1x1x512x128xbf16>
    %10 = vector.shape_cast %9 : vector<1x1x512x128xbf16> to vector<512x128xbf16>
    %cst_13 = arith.constant dense<0.000000e+00> : vector<2x128xf32>
    %11 = tpu.matmul %8, %10, %cst_13 {dimension_numbers = #tpu.dot_dimension_numbers<[1], [0], [0], [1], [0, 0, 1, 1], [], []>} : vector<2x512xbf16>, vector<512x128xbf16>, vector<2x128xf32> -> vector<2x128xf32>
    %12 = arith.addf %6, %11 : vector<2x128xf32>
    %c0_14 = arith.constant 0 : index
    %c2 = arith.constant 2 : index
    %c0_15 = arith.constant 0 : index
    %13 = vector.load %arg1[%c0_14, %c2, %c0_15] : memref<1x6x512xbf16, #tpu.memory_space<vmem>>, vector<1x2x512xbf16>
    %14 = vector.shape_cast %13 : vector<1x2x512xbf16> to vector<2x512xbf16>
    %c1_16 = arith.constant 1 : index
    %c0_17 = arith.constant 0 : index
    %c0_18 = arith.constant 0 : index
    %c0_19 = arith.constant 0 : index
    %15 = vector.load %arg2[%c1_16, %c0_17, %c0_18, %c0_19] : memref<2x2x512x128xbf16, #tpu.memory_space<vmem>>, vector<1x1x512x128xbf16>
    %16 = vector.shape_cast %15 : vector<1x1x512x128xbf16> to vector<512x128xbf16>
    %cst_20 = arith.constant dense<0.000000e+00> : vector<2x128xf32>
    %17 = tpu.matmul %14, %16, %cst_20 {dimension_numbers = #tpu.dot_dimension_numbers<[1], [0], [0], [1], [0, 0, 1, 1], [], []>} : vector<2x512xbf16>, vector<512x128xbf16>, vector<2x128xf32> -> vector<2x128xf32>
    %18 = arith.addf %12, %17 : vector<2x128xf32>
    %c0_21 = arith.constant 0 : index
    %c3 = arith.constant 3 : index
    %c0_22 = arith.constant 0 : index
    %19 = vector.load %arg1[%c0_21, %c3, %c0_22] : memref<1x6x512xbf16, #tpu.memory_space<vmem>>, vector<1x2x512xbf16>
    %20 = vector.shape_cast %19 : vector<1x2x512xbf16> to vector<2x512xbf16>
    %c1_23 = arith.constant 1 : index
    %c1_24 = arith.constant 1 : index
    %c0_25 = arith.constant 0 : index
    %c0_26 = arith.constant 0 : index
    %21 = vector.load %arg2[%c1_23, %c1_24, %c0_25, %c0_26] : memref<2x2x512x128xbf16, #tpu.memory_space<vmem>>, vector<1x1x512x128xbf16>
    %22 = vector.shape_cast %21 : vector<1x1x512x128xbf16> to vector<512x128xbf16>
    %cst_27 = arith.constant dense<0.000000e+00> : vector<2x128xf32>
    %23 = tpu.matmul %20, %22, %cst_27 {dimension_numbers = #tpu.dot_dimension_numbers<[1], [0], [0], [1], [0, 0, 1, 1], [], []>} : vector<2x512xbf16>, vector<512x128xbf16>, vector<2x128xf32> -> vector<2x128xf32>
    %24 = arith.addf %18, %23 : vector<2x128xf32>
    %c0_28 = arith.constant 0 : index
    %c0_29 = arith.constant 0 : index
    %25 = vector.load %arg3[%c0_28, %c0_29] : memref<1x128xf32, #tpu.memory_space<vmem>>, vector<1x128xf32>
    %26 = vector.broadcast %25 : vector<1x128xf32> to vector<2x128xf32>
    %27 = arith.addf %24, %26 : vector<2x128xf32>
    %cst_30 = arith.constant 0.000000e+00 : f32
    %28 = vector.broadcast %cst_30 : f32 to vector<2x128xf32>
    %29 = arith.maximumf %27, %28 : vector<2x128xf32>
    %c0_31 = arith.constant 0 : index
    %c0_32 = arith.constant 0 : index
    %30 = vector.load %arg4[%c0_31, %c0_32] : memref<2x1xf32, #tpu.memory_space<vmem>>, vector<2x1xf32>
    %31 = vector.broadcast %30 : vector<2x1xf32> to vector<2x128xf32>
    %32 = arith.mulf %29, %31 : vector<2x128xf32>
    %33 = arith.truncf %32 : vector<2x128xf32> to vector<2x128xbf16>
    %c0_33 = arith.constant 0 : index
    %c0_34 = arith.constant 0 : index
    %c0_35 = arith.constant 0 : index
    %34 = vector.load %arg5[%c0_33, %c0_34, %c0_35] : memref<1x2x128xbf16, #tpu.memory_space<vmem>>, vector<1x2x128xbf16>
    %35 = vector.shape_cast %34 : vector<1x2x128xbf16> to vector<2x128xbf16>
    %36 = vector.shape_cast %33 : vector<2x128xbf16> to vector<1x2x128xbf16>
    tpu.vector_store %arg5[%c0_33, %c0_34, %c0_35], %36 {strides = array<i32>} : memref<1x2x128xbf16, #tpu.memory_space<vmem>>, vector<1x2x128xbf16>,
    return
  }
  func.func @transform_0(%arg0: i32) -> (i32, i32, i32) {
    %c0_i32 = arith.constant 0 : i32
    %c0_i32_0 = arith.constant 0 : i32
    %c0_i32_1 = arith.constant 0 : i32
    return %arg0, %c0_i32, %c0_i32_0 : i32, i32, i32
  }
  func.func @transform_1(%arg0: i32) -> (i32, i32, i32, i32) {
    %c0_i32 = arith.constant 0 : i32
    %c0_i32_0 = arith.constant 0 : i32
    %c0_i32_1 = arith.constant 0 : i32
    %c0_i32_2 = arith.constant 0 : i32
    %c0_i32_3 = arith.constant 0 : i32
    return %c0_i32, %c0_i32_0, %c0_i32_1, %c0_i32_2 : i32, i32, i32, i32
  }
  func.func @transform_2(%arg0: i32) -> (i32, i32) {
    %c0_i32 = arith.constant 0 : i32
    %c0_i32_0 = arith.constant 0 : i32
    %c0_i32_1 = arith.constant 0 : i32
    return %c0_i32, %c0_i32_0 : i32, i32
  }
  func.func @transform_3(%arg0: i32) -> (i32, i32) {
    %c0_i32 = arith.constant 0 : i32
    %c0_i32_0 = arith.constant 0 : i32
    %c0_i32_1 = arith.constant 0 : i32
    return %c0_i32, %c0_i32_0 : i32, i32
  }
  func.func @transform_4(%arg0: i32) -> (i32, i32, i32) {
    %c0_i32 = arith.constant 0 : i32
    %c0_i32_0 = arith.constant 0 : i32
    %c0_i32_1 = arith.constant 0 : i32
    return %arg0, %c0_i32, %c0_i32_0 : i32, i32, i32
  }
}

</mosaic_0001>

<llo_original>
// kernel: _lambda_.4
$region0: #{_lambda_.4}
  #allocation0 [shape = 'u32[]', space=smem, size = 0x4, offset = 0x4, fixed_abs, tag = 'smem constant byte address 0x4 - core index']
  #allocation1 [shape = 'u32[144,128]{1,0:T(1,128)}', space=vmem, size = 0x12000, scoped, tag = 'internal scratch']
  %s0 = inlined_call_operand.vmem [shape: bf16[2,90,16], index: 0, kind: input, shape index: {}]
  %s1 = inlined_call_operand.vmem [shape: bf16[2,2,16,128], index: 1, kind: input, shape index: {}]
  %s2 = inlined_call_operand.vmem [shape: f32[1,128], index: 2, kind: input, shape index: {}]
  %s3 = inlined_call_operand.vmem [shape: f32[72,1], index: 3, kind: input, shape index: {}]
  %s4 = inlined_call_operand.vmem [shape: bf16[2,72,128], index: 4, kind: output, shape index: {}]
  %s5 = sld [smem:[#allocation0]]
  $region49: #{_lambda_.4} parent=0
    _
  %s7 = ssub.s32 1, %s5
  %s8 = scalar_select 0, %s7, %s5
  loop: start=0, step=1, limit=4
  $region2: #{_lambda_.4} parent=0 // loop_pre_header
    _
  $region3: #{_lambda_.4} parent=0 // loop_header
    %s10 = sphi 0, %s14
    %p11 = scmp.ge.s32.totalorder %s10, 4
    %s20 = sphi 0, %s22
    %s23 = sphi 0, %s20
    %s24 = sphi 0, %s23
    %s40 = sphi 0, %s24
    %s44 = sphi 0, %s44
    %s46 = sphi 0, %s44
    %s47 = sphi 0, %s46
    %s61 = sphi 0, %s47
    %s65 = sphi 0, %s65
    %s67 = sphi 0, %s65
    %s68 = sphi 0, %s67
    %s82 = sphi 0, %s68
    %s86 = sphi 0, %s86
    %s88 = sphi 0, %s86
    %s89 = sphi 0, %s88
    %s103 = sphi 0, %s89
    %s109 = sphi 0, %s111
    %s112 = sphi 0, %s109
    %s113 = sphi 0, %s112
    %s129 = sphi 0, %s113
  $region4: #{_lambda_.4} parent=0 // loop_header_branch
    %13 = sbr.rel (%p11) target = $region8
  $region5: #{_lambda_.4} parent=0 // loop_body
    %s15 = ssub.s32 %s10, 1
    %s16 = ssub.s32 %s10, 2
    %s17 = sadd.s32 %s10, 1
    %s18 = ssub.s32 %s10, %s17
    %p19 = scmp.eq.s32.totalorder %s18, 0
    %s21 = sadd.s32 %s20, 1
    %s22 = scalar_select %p19, %s20, %s21
    %p25 = pneg %p19
    %p26 = scmp.eq.s32.totalorder %s10, 1
    %p27 = por %p25, %p26
    %p28 = scmp.ne.s32.totalorder %s20, %s23
    %p29 = scmp.eq.s32.totalorder %s10, 0
    %p30 = por %p28, %p29
    %p31 = scmp.ne.s32.totalorder %s20, %s23
    %p32 = scmp.eq.s32.totalorder %s15, 1
    %p33 = por %p31, %p32
    %p34 = scmp.ne.s32.totalorder %s23, %s24
    %p35 = scmp.eq.s32.totalorder %s15, 0
    %p36 = por %p34, %p35
    %p37 = scmp.ne.s32.totalorder %s23, %s24
    %p38 = scmp.eq.s32.totalorder %s16, 1
    %p39 = por %p37, %p38
    %p41 = scmp.ne.s32.totalorder %s24, %s40
    %p42 = scmp.eq.s32.totalorder %s16, 0
    %p43 = por %p41, %p42
    %s45 = sadd.s32 %s44, 1
    %p48 = scmp.eq.s32.totalorder %s10, 1
    %p49 = scmp.ne.s32.totalorder %s44, %s46
    %p50 = scmp.eq.s32.totalorder %s10, 0
    %p51 = por %p49, %p50
    %p52 = scmp.ne.s32.totalorder %s44, %s46
    %p53 = scmp.eq.s32.totalorder %s15, 1
    %p54 = por %p52, %p53
    %p55 = scmp.ne.s32.totalorder %s46, %s47
    %p56 = scmp.eq.s32.totalorder %s15, 0
    %p57 = por %p55, %p56
    %p58 = scmp.ne.s32.totalorder %s46, %s47
    %p59 = scmp.eq.s32.totalorder %s16, 1
    %p60 = por %p58, %p59
    %p62 = scmp.ne.s32.totalorder %s47, %s61
    %p63 = scmp.eq.s32.totalorder %s16, 0
    %p64 = por %p62, %p63
    %s66 = sadd.s32 %s65, 1
    %p69 = scmp.eq.s32.totalorder %s10, 1
    %p70 = scmp.ne.s32.totalorder %s65, %s67
    %p71 = scmp.eq.s32.totalorder %s10, 0
    %p72 = por %p70, %p71
    %p73 = scmp.ne.s32.totalorder %s65, %s67
    %p74 = scmp.eq.s32.totalorder %s15, 1
    %p75 = por %p73, %p74
    %p76 = scmp.ne.s32.totalorder %s67, %s68
    %p77 = scmp.eq.s32.totalorder %s15, 0
    %p78 = por %p76, %p77
    %p79 = scmp.ne.s32.totalorder %s67, %s68
    %p80 = scmp.eq.s32.totalorder %s16, 1
    %p81 = por %p79, %p80
    %p83 = scmp.ne.s32.totalorder %s68, %s82
    %p84 = scmp.eq.s32.totalorder %s16, 0
    %p85 = por %p83, %p84
    %s87 = sadd.s32 %s86, 1
    %p90 = scmp.eq.s32.totalorder %s10, 1
    %p91 = scmp.ne.s32.totalorder %s86, %s88
    %p92 = scmp.eq.s32.totalorder %s10, 0
    %p93 = por %p91, %p92
    %p94 = scmp.ne.s32.totalorder %s86, %s88
    %p95 = scmp.eq.s32.totalorder %s15, 1
    %p96 = por %p94, %p95
    %p97 = scmp.ne.s32.totalorder %s88, %s89
    %p98 = scmp.eq.s32.totalorder %s15, 0
    %p99 = por %p97, %p98
    %p100 = scmp.ne.s32.totalorder %s88, %s89
    %p101 = scmp.eq.s32.totalorder %s16, 1
    %p102 = por %p100, %p101
    %p104 = scmp.ne.s32.totalorder %s89, %s103
    %p105 = scmp.eq.s32.totalorder %s16, 0
    %p106 = por %p104, %p105
    %s107 = ssub.s32 %s10, %s17
    %p108 = scmp.eq.s32.totalorder %s107, 0
    %s110 = sadd.s32 %s109, 1
    %s111 = scalar_select %p108, %s109, %s110
    %p114 = pneg %p108
    %p115 = scmp.eq.s32.totalorder %s10, 1
    %p116 = por %p114, %p115
    %p117 = scmp.ne.s32.totalorder %s109, %s112
    %p118 = scmp.eq.s32.totalorder %s10, 0
    %p119 = por %p117, %p118
    %p120 = scmp.ne.s32.totalorder %s109, %s112
    %p121 = scmp.eq.s32.totalorder %s15, 1
    %p122 = por %p120, %p121
    %p123 = scmp.ne.s32.totalorder %s112, %s113
    %p124 = scmp.eq.s32.totalorder %s15, 0
    %p125 = por %p123, %p124
    %p126 = scmp.ne.s32.totalorder %s112, %s113
    %p127 = scmp.eq.s32.totalorder %s16, 1
    %p128 = por %p126, %p127
    %p130 = scmp.ne.s32.totalorder %s113, %s129
    %p131 = scmp.eq.s32.totalorder %s16, 0
    %p132 = por %p130, %p131
    %p133 = scmp.le.s32.totalorder 1, %s10
    %p134 = scmp.lt.s32.totalorder %s10, 3
    %p135 = pnand %p133, %p134
    %p136 = pneg %p135
    // Predicated region
    $region9: #{_lambda_.4} parent=5 // pred_check
      _
    $region10: #{_lambda_.4} parent=5 // pred_check_branch
      %138 = sbr.rel (%p135) target = $region12
    $region11: #{_lambda_.4} parent=5 // pred_region
      %s139 = ssub.s32 %s10, 1
      // Predicated region
      $region13: #{_lambda_.4} parent=11 // pred_check
        %p140 = pneg %p57
      $region14: #{_lambda_.4} parent=11 // pred_check_branch
        %142 = sbr.rel (%p140) target = $region16
      $region15: #{_lambda_.4} parent=11 // pred_region
        _
      $region16: #{_lambda_.4} parent=11 // pred_fallthru
        _
      // Predicated region
      $region17: #{_lambda_.4} parent=11 // pred_check
        %p143 = pneg %p78
      $region18: #{_lambda_.4} parent=11 // pred_check_branch
        %145 = sbr.rel (%p143) target = $region20
      $region19: #{_lambda_.4} parent=11 // pred_region
        _
      $region20: #{_lambda_.4} parent=11 // pred_fallthru
        _
      // Predicated region
      $region21: #{_lambda_.4} parent=11 // pred_check
        %p146 = pneg %p99
      $region22: #{_lambda_.4} parent=11 // pred_check_branch
        %148 = sbr.rel (%p146) target = $region24
      $region23: #{_lambda_.4} parent=11 // pred_region
        _
      $region24: #{_lambda_.4} parent=11 // pred_fallthru
        _
    $region12: #{_lambda_.4} parent=5 // pred_fallthru
      _
    %p149 = scmp.lt.s32.totalorder %s10, 2
    // Predicated region
    $region25: #{_lambda_.4} parent=5 // pred_check
      %p150 = pneg %p149
    $region26: #{_lambda_.4} parent=5 // pred_check_branch
      %152 = sbr.rel (%p150) target = $region28
    $region27: #{_lambda_.4} parent=5 // pred_region
      // Predicated region
      $region29: #{_lambda_.4} parent=27 // pred_check
        %p153 = pneg %p30
      $region30: #{_lambda_.4} parent=27 // pred_check_branch
        %155 = sbr.rel (%p153) target = $region32
      $region31: #{_lambda_.4} parent=27 // pred_region
        %p156 = scmp.lt.s32.totalorder %s10, 1
        %s157 = scalar_select %p156, %s10, 1
        %s158 = smul.addr %s157, 12
        %s159 = smul.addr %s158, 4
        %s160 = scalar_lea.vmem %s0, %s159
      $region32: #{_lambda_.4} parent=27 // pred_fallthru
        _
    $region28: #{_lambda_.4} parent=5 // pred_fallthru
      _
    %p161 = scmp.le.s32.totalorder 1, %s10
    %p162 = scmp.lt.s32.totalorder %s10, 3
    %p163 = pnand %p161, %p162
    %p164 = pneg %p163
    // Predicated region
    $region33: #{_lambda_.4} parent=5 // pred_check
      _
    $region34: #{_lambda_.4} parent=5 // pred_check_branch
      %166 = sbr.rel (%p163) target = $region36
    $region35: #{_lambda_.4} parent=5 // pred_region
      %s167 = ssub.s32 %s10, 1
      %p168 = scmp.lt.s32.totalorder %s15, 1
      %s169 = scalar_select %p168, %s15, 1
      %s170 = smul.addr %s169, 12
      %s171 = smul.addr %s170, 4
      %s172 = scalar_lea.vmem %s0, %s171
      %p173 = pneg %p36
      %p174 = pneg %p33
      %p175 = pneg %p57
      %p176 = pneg %p54
      %p177 = pneg %p78
      %p178 = pneg %p75
      %p179 = pneg %p99
      %p180 = pneg %p96
      %p181 = pneg %p125
      %p182 = pneg %p122
      %p183 = scmp.lt.s32.totalorder %s15, 1
      %s184 = scalar_select %p183, %s15, 1
      %s185 = smul.addr %s184, 9
      %s186 = smul.addr %s185, 4
      %s187 = scalar_lea.vmem %s4, %s186
      %p188 = scmp.lt.s32.totalorder %s15, 1
      %s189 = scalar_select %p188, %s15, 1
      %s190 = smul.addr %s189, 12
      %s191 = smul.addr %s190, 4
      %s192 = scalar_lea.vmem %s0, %s191
      %p193 = scmp.lt.s32.totalorder %s15, 1
      %s194 = scalar_select %p193, %s15, 1
      %s195 = smul.addr %s194, 9
      %s196 = smul.addr %s195, 4
      %s197 = scalar_lea.vmem %s4, %s196
      %v199 = vld [vmem:[%s192] sm:$0xf]
      %v200 = vld [vmem:[%s192 + $0x4] sm:$0xf]
      %v201 = vld [vmem:[%s192 + $0x8] sm:$0xf]
      %v202 = vld [vmem:[%s192 + $0xc] sm:$0xf]
      %v203 = vld [vmem:[%s192 + $0x10] sm:$0xf]
      %v204 = vld [vmem:[%s192 + $0x14] sm:$0xf]
      %v205 = vld [vmem:[%s192 + $0x18] sm:$0xf]
      %v206 = vld [vmem:[%s192 + $0x1c] sm:$0xf]
      %v207 = vld [vmem:[%s192 + $0x20] sm:$0xf]
      %v208 = vld [vmem:[%s1] sm:$0xf]
      %v209 = vld [vmem:[%s1 + $0x4] sm:$0xf]
      %v210 = vld [vmem:[%s192 + $0x24] sm:$0x1]
      %s211 = scalar_lea.vmem %s1, 8
      %v212 = vld [vmem:[%s211] sm:$0xf]
      %v213 = vld [vmem:[%s211 + $0x4] sm:$0xf]
      %v224 = vunpack.c.l.b16 %v199
      %v225 = vunpack.c.l.b16 %v200
      %v226 = vunpack.c.l.b16 %v201
      %v227 = vunpack.c.l.b16 %v202
      %v228 = vunpack.c.l.b16 %v203
      %v229 = vunpack.c.l.b16 %v204
      %v230 = vunpack.c.l.b16 %v205
      %v231 = vunpack.c.l.b16 %v206
      %v232 = vunpack.c.l.b16 %v207
      %v233 = vunpack.c.l.b16 %v210
      %v234 = vpack.c.b16 %v225, %v224
      %v235 = vpack.c.b16 %v227, %v226
      %v236 = vpack.c.b16 %v229, %v228
      %v237 = vpack.c.b16 %v231, %v230
      %v238 = vpack.c.b16 %v233, %v232
      %vm239 = vsmask.f32 7424
      %v241 = vshrl.u32 %v234, 16
      %v243 = vshll.u32 %v234, 16
      %v245 = vrot.slane %v243, 1
      %v246 = vor.u32 %v241, %v245
      %v248 = vshll.u32 %v235, 16
      %v250 = vrot.slane %v248, 1
      %v251 = vsel %vm239, %v246, %v250
      %v252 = vshrl.u32 %v235, 16
      %v254 = vor.u32 %v252, %v250
      %v256 = vshll.u32 %v236, 16
      %v258 = vrot.slane %v256, 1
      %v259 = vsel %vm239, %v254, %v258
      %v260 = vshrl.u32 %v236, 16
      %v262 = vor.u32 %v260, %v258
      %v264 = vshll.u32 %v237, 16
      %v266 = vrot.slane %v264, 1
      %v267 = vsel %vm239, %v262, %v266
      %v268 = vshrl.u32 %v237, 16
      %v270 = vor.u32 %v268, %v266
      %v272 = vshll.u32 %v238, 16
      %v274 = vrot.slane %v272, 1
      %v275 = vsel %vm239, %v270, %v274
      %v276 = vshrl.u32 %v238, 16
      %v278 = vor.u32 %v276, %v274
      %v281 = vunpack.c.l.b16 %v212
      %v282 = vunpack.c.l.b16 %v213
      %v283 = vpack.c.b16 %v282, %v281
      %vm285 = vcmask 130048
      %v287 = vsel %vm285, %v251, 0
      %v290 = vsel %vm285, %v259, 0
      %v293 = vsel %vm285, %v267, 0
      %v296 = vsel %vm285, %v275, 0
      %v299 = vsel %vm285, %v278, 0
      %301 = vmatprep.subr.bf16.mxu0 0
      %302 = vmatpush1.bf16.msra.mxu0 0
      %303 = vmatprep.subr.bf16.mxu0 0
      %304 = vmatpush1.bf16.msra.mxu0 0
      %305 = vmatprep.subr.bf16.mxu0 0
      %306 = vmatpush1.bf16.msra.mxu0 0
      %307 = vmatprep.subr.bf16.mxu0 0
      %308 = vmatpush1.bf16.msra.mxu0 0
      %309 = vmatprep.subr.bf16.mxu0 0
      %310 = vmatpush1.bf16.msra.mxu0 0
      %311 = vmatprep.subr.bf16.mxu0 0
      %312 = vmatpush1.bf16.msra.mxu0 0
      %313 = vmatprep.subr.bf16.mxu0 0
      %314 = vmatpush1.bf16.msra.mxu0 0
      %315 = vmatprep.subr.bf16.mxu0 0
      %316 = vmatpush1.bf16.msra.mxu0 %v283
      %317 = vmatprep.subr.bf16.mxu0 0
      %318 = vmatpush2.bf16.msra.mxu0 0
      %319 = vmatprep.subr.bf16.mxu0 0
      %320 = vmatpush2.bf16.msra.mxu0 0
      %321 = vmatprep.subr.bf16.mxu0 0
      %322 = vmatpush2.bf16.msra.mxu0 0
      %323 = vmatprep.subr.bf16.mxu0 0
      %324 = vmatpush2.bf16.msra.mxu0 0
      %325 = vmatprep.subr.bf16.mxu0 0
      %326 = vmatpush2.bf16.msra.mxu0 0
      %327 = vmatprep.subr.bf16.mxu0 0
      %328 = vmatpush2.bf16.msra.mxu0 0
      %329 = vmatprep.subr.bf16.mxu0 0
      %330 = vmatpush2.bf16.msra.mxu0 0
      %331 = vmatprep.subr.bf16.mxu0 0
      %332 = vmatpush2.bf16.msra.mxu0 0
      %333 = vmatprep.mubr.bf16.mxu0 0
      %334 = vmatmul.mubr.bf16.gmra.mxu0 %v287
      %v335 = vpop.f32.mrf.mxu0
      %v336 = vadd.f32 0.0, %v335
      %v337 = vpop.f32.mrf.mxu0
      %v338 = vpop.f32.mrf.mxu0
      %v339 = vadd.f32 0.0, %v338
      %v340 = vpop.f32.mrf.mxu0
      %341 = vmatprep.mubr.bf16.mxu0 0
      %342 = vmatmul.mubr.bf16.gmra.mxu0 %v290
      %v343 = vpop.f32.mrf.mxu0
      %v344 = vadd.f32 0.0, %v343
      %v345 = vpop.f32.mrf.mxu0
      %v346 = vpop.f32.mrf.mxu0
      %v347 = vadd.f32 0.0, %v346
      %v348 = vpop.f32.mrf.mxu0
      %349 = vmatprep.mubr.bf16.mxu0 0
      %350 = vmatmul.mubr.bf16.gmra.mxu0 %v293
      %v351 = vpop.f32.mrf.mxu0
      %v352 = vadd.f32 0.0, %v351
      %v353 = vpop.f32.mrf.mxu0
      %v354 = vpop.f32.mrf.mxu0
      %v355 = vadd.f32 0.0, %v354
      %v356 = vpop.f32.mrf.mxu0
      %357 = vmatprep.mubr.bf16.mxu0 0
      %358 = vmatmul.mubr.bf16.gmra.mxu0 %v296
      %v359 = vpop.f32.mrf.mxu0
      %v360 = vadd.f32 0.0, %v359
      %v361 = vpop.f32.mrf.mxu0
      %v362 = vpop.f32.mrf.mxu0
      %v363 = vadd.f32 0.0, %v362
      %v364 = vpop.f32.mrf.mxu0
      %365 = vmatprep.mubr.bf16.mxu0 0
      %366 = vmatmul.mubr.bf16.gmra.mxu0 %v299
      %v367 = vpop.f32.mrf.mxu0
      %v368 = vadd.f32 0.0, %v367
      %v369 = vpop.f32.mrf.mxu0
      %v370 = vpop.f32.mrf.mxu0
      %v371 = vpop.f32.mrf.mxu0
      %372 = vdwg.mxu0
      %v373 = vpack.c.b16 %v232, %v232
      %v376 = vunpack.c.l.b16 %v208
      %v377 = vunpack.c.l.b16 %v209
      %v378 = vpack.c.b16 %v377, %v376
      %v380 = vsel %vm285, %v234, 0
      %v382 = vsel %vm285, %v235, 0
      %v384 = vsel %vm285, %v236, 0
      %v386 = vsel %vm285, %v237, 0
      %v389 = vsel %vm285, %v373, 0
      %391 = vmatprep.subr.bf16.mxu0 0
      %392 = vmatpush1.bf16.msra.mxu0 0
      %393 = vmatprep.subr.bf16.mxu0 0
      %394 = vmatpush1.bf16.msra.mxu0 0
      %395 = vmatprep.subr.bf16.mxu0 0
      %396 = vmatpush1.bf16.msra.mxu0 0
      %397 = vmatprep.subr.bf16.mxu0 0
      %398 = vmatpush1.bf16.msra.mxu0 0
      %399 = vmatprep.subr.bf16.mxu0 0
      %400 = vmatpush1.bf16.msra.mxu0 0
      %401 = vmatprep.subr.bf16.mxu0 0
      %402 = vmatpush1.bf16.msra.mxu0 0
      %403 = vmatprep.subr.bf16.mxu0 0
      %404 = vmatpush1.bf16.msra.mxu0 0
      %405 = vmatprep.subr.bf16.mxu0 0
      %406 = vmatpush1.bf16.msra.mxu0 %v378
      %407 = vmatprep.subr.bf16.mxu0 0
      %408 = vmatpush2.bf16.msra.mxu0 0
      %409 = vmatprep.subr.bf16.mxu0 0
      %410 = vmatpush2.bf16.msra.mxu0 0
      %411 = vmatprep.subr.bf16.mxu0 0
      %412 = vmatpush2.bf16.msra.mxu0 0
      %413 = vmatprep.subr.bf16.mxu0 0
      %414 = vmatpush2.bf16.msra.mxu0 0
      %415 = vmatprep.subr.bf16.mxu0 0
      %416 = vmatpush2.bf16.msra.mxu0 0
      %417 = vmatprep.subr.bf16.mxu0 0
      %418 = vmatpush2.bf16.msra.mxu0 0
      %419 = vmatprep.subr.bf16.mxu0 0
      %420 = vmatpush2.bf16.msra.mxu0 0
      %421 = vmatprep.subr.bf16.mxu0 0
      %422 = vmatpush2.bf16.msra.mxu0 0
      %423 = vmatprep.mubr.bf16.mxu0 0
      %424 = vmatmul.mubr.bf16.gmra.mxu0 %v380
      %v425 = vpop.f32.mrf.mxu0
      %v426 = vadd.f32 %v336, %v425
      %v427 = vpop.f32.mrf.mxu0
      %v428 = vpop.f32.mrf.mxu0
      %v429 = vadd.f32 %v339, %v428
      %v430 = vpop.f32.mrf.mxu0
      %431 = vmatprep.mubr.bf16.mxu0 0
      %432 = vmatmul.mubr.bf16.gmra.mxu0 %v382
      %v433 = vpop.f32.mrf.mxu0
      %v434 = vadd.f32 %v344, %v433
      %v435 = vpop.f32.mrf.mxu0
      %v436 = vpop.f32.mrf.mxu0
      %v437 = vadd.f32 %v347, %v436
      %v438 = vpop.f32.mrf.mxu0
      %439 = vmatprep.mubr.bf16.mxu0 0
      %440 = vmatmul.mubr.bf16.gmra.mxu0 %v384
      %v441 = vpop.f32.mrf.mxu0
      %v442 = vadd.f32 %v352, %v441
      %v443 = vpop.f32.mrf.mxu0
      %v444 = vpop.f32.mrf.mxu0
      %v445 = vadd.f32 %v355, %v444
      %v446 = vpop.f32.mrf.mxu0
      %447 = vmatprep.mubr.bf16.mxu0 0
      %448 = vmatmul.mubr.bf16.gmra.mxu0 %v386
      %v449 = vpop.f32.mrf.mxu0
      %v450 = vadd.f32 %v360, %v449
      %v451 = vpop.f32.mrf.mxu0
      %v452 = vpop.f32.mrf.mxu0
      %v453 = vadd.f32 %v363, %v452
      %v454 = vpop.f32.mrf.mxu0
      %455 = vmatprep.mubr.bf16.mxu0 0
      %456 = vmatmul.mubr.bf16.gmra.mxu0 %v389
      %v457 = vpop.f32.mrf.mxu0
      %v458 = vadd.f32 %v368, %v457
      %v459 = vpop.f32.mrf.mxu0
      %v460 = vpop.f32.mrf.mxu0
      %v461 = vpop.f32.mrf.mxu0
      %462 = vdwg.mxu0
      %v463 = vld [vmem:[%s192 + $0x4] sm:$0xf]
      %v464 = vld [vmem:[%s192 + $0x8] sm:$0xf]
      %v465 = vld [vmem:[%s192 + $0xc] sm:$0xf]
      %v466 = vld [vmem:[%s192 + $0x10] sm:$0xf]
      %v467 = vld [vmem:[%s192 + $0x14] sm:$0xf]
      %v468 = vld [vmem:[%s192 + $0x18] sm:$0xf]
      %v469 = vld [vmem:[%s192 + $0x1c] sm:$0xf]
      %v470 = vld [vmem:[%s192 + $0x20] sm:$0xf]
      %v471 = vld [vmem:[%s192 + $0x24] sm:$0xf]
      %v472 = vld [vmem:[%s192 + $0x28] sm:$0x1]
      %s473 = scalar_lea.vmem %s1, 16
      %v474 = vld [vmem:[%s473] sm:$0xf]
      %v475 = vld [vmem:[%s473 + $0x4] sm:$0xf]
      %v486 = vunpack.c.l.b16 %v463
      %v487 = vunpack.c.l.b16 %v464
      %v488 = vunpack.c.l.b16 %v465
      %v489 = vunpack.c.l.b16 %v466
      %v490 = vunpack.c.l.b16 %v467
      %v491 = vunpack.c.l.b16 %v468
      %v492 = vunpack.c.l.b16 %v469
      %v493 = vunpack.c.l.b16 %v470
      %v494 = vunpack.c.l.b16 %v471
      %v495 = vunpack.c.l.b16 %v472
      %v496 = vpack.c.b16 %v487, %v486
      %v497 = vpack.c.b16 %v489, %v488
      %v498 = vpack.c.b16 %v491, %v490
      %v499 = vpack.c.b16 %v493, %v492
      %v500 = vpack.c.b16 %v495, %v494
      %v502 = vshrl.u32 %v496, 16
      %v504 = vshll.u32 %v496, 16
      %v506 = vrot.slane %v504, 1
      %v507 = vor.u32 %v502, %v506
      %v509 = vshll.u32 %v497, 16
      %v511 = vrot.slane %v509, 1
      %v512 = vsel %vm239, %v507, %v511
      %v513 = vshrl.u32 %v497, 16
      %v515 = vor.u32 %v513, %v511
      %v517 = vshll.u32 %v498, 16
      %v519 = vrot.slane %v517, 1
      %v520 = vsel %vm239, %v515, %v519
      %v521 = vshrl.u32 %v498, 16
      %v523 = vor.u32 %v521, %v519
      %v525 = vshll.u32 %v499, 16
      %v527 = vrot.slane %v525, 1
      %v528 = vsel %vm239, %v523, %v527
      %v529 = vshrl.u32 %v499, 16
      %v531 = vor.u32 %v529, %v527
      %v533 = vshll.u32 %v500, 16
      %v535 = vrot.slane %v533, 1
      %v536 = vsel %vm239, %v531, %v535
      %v537 = vshrl.u32 %v500, 16
      %v539 = vor.u32 %v537, %v535
      %v542 = vunpack.c.l.b16 %v474
      %v543 = vunpack.c.l.b16 %v475
      %v544 = vpack.c.b16 %v543, %v542
      %v547 = vsel %vm285, %v512, 0
      %v550 = vsel %vm285, %v520, 0
      %v553 = vsel %vm285, %v528, 0
      %v556 = vsel %vm285, %v536, 0
      %v559 = vsel %vm285, %v539, 0
      %561 = vmatprep.subr.bf16.mxu0 0
      %562 = vmatpush1.bf16.msra.mxu0 0
      %563 = vmatprep.subr.bf16.mxu0 0
      %564 = vmatpush1.bf16.msra.mxu0 0
      %565 = vmatprep.subr.bf16.mxu0 0
      %566 = vmatpush1.bf16.msra.mxu0 0
      %567 = vmatprep.subr.bf16.mxu0 0
      %568 = vmatpush1.bf16.msra.mxu0 0
      %569 = vmatprep.subr.bf16.mxu0 0
      %570 = vmatpush1.bf16.msra.mxu0 0
      %571 = vmatprep.subr.bf16.mxu0 0
      %572 = vmatpush1.bf16.msra.mxu0 0
      %573 = vmatprep.subr.bf16.mxu0 0
      %574 = vmatpush1.bf16.msra.mxu0 0
      %575 = vmatprep.subr.bf16.mxu0 0
      %576 = vmatpush1.bf16.msra.mxu0 %v544
      %577 = vmatprep.subr.bf16.mxu0 0
      %578 = vmatpush2.bf16.msra.mxu0 0
      %579 = vmatprep.subr.bf16.mxu0 0
      %580 = vmatpush2.bf16.msra.mxu0 0
      %581 = vmatprep.subr.bf16.mxu0 0
      %582 = vmatpush2.bf16.msra.mxu0 0
      %583 = vmatprep.subr.bf16.mxu0 0
      %584 = vmatpush2.bf16.msra.mxu0 0
      %585 = vmatprep.subr.bf16.mxu0 0
      %586 = vmatpush2.bf16.msra.mxu0 0
      %587 = vmatprep.subr.bf16.mxu0 0
      %588 = vmatpush2.bf16.msra.mxu0 0
      %589 = vmatprep.subr.bf16.mxu0 0
      %590 = vmatpush2.bf16.msra.mxu0 0
      %591 = vmatprep.subr.bf16.mxu0 0
      %592 = vmatpush2.bf16.msra.mxu0 0
      %593 = vmatprep.mubr.bf16.mxu0 0
      %594 = vmatmul.mubr.bf16.gmra.mxu0 %v547
      %v595 = vpop.f32.mrf.mxu0
      %v596 = vadd.f32 0.0, %v595
      %v597 = vpop.f32.mrf.mxu0
      %v598 = vpop.f32.mrf.mxu0
      %v599 = vadd.f32 0.0, %v598
      %v600 = vpop.f32.mrf.mxu0
      %601 = vmatprep.mubr.bf16.mxu0 0
      %602 = vmatmul.mubr.bf16.gmra.mxu0 %v550
      %v603 = vpop.f32.mrf.mxu0
      %v604 = vadd.f32 0.0, %v603
      %v605 = vpop.f32.mrf.mxu0
      %v606 = vpop.f32.mrf.mxu0
      %v607 = vadd.f32 0.0, %v606
      %v608 = vpop.f32.mrf.mxu0
      %609 = vmatprep.mubr.bf16.mxu0 0
      %610 = vmatmul.mubr.bf16.gmra.mxu0 %v553
      %v611 = vpop.f32.mrf.mxu0
      %v612 = vadd.f32 0.0, %v611
      %v613 = vpop.f32.mrf.mxu0
      %v614 = vpop.f32.mrf.mxu0
      %v615 = vadd.f32 0.0, %v614
      %v616 = vpop.f32.mrf.mxu0
      %617 = vmatprep.mubr.bf16.mxu0 0
      %618 = vmatmul.mubr.bf16.gmra.mxu0 %v556
      %v619 = vpop.f32.mrf.mxu0
      %v620 = vadd.f32 0.0, %v619
      %v621 = vpop.f32.mrf.mxu0
      %v622 = vpop.f32.mrf.mxu0
      %v623 = vadd.f32 0.0, %v622
      %v624 = vpop.f32.mrf.mxu0
      %625 = vmatprep.mubr.bf16.mxu0 0
      %626 = vmatmul.mubr.bf16.gmra.mxu0 %v559
      %v627 = vpop.f32.mrf.mxu0
      %v628 = vadd.f32 0.0, %v627
      %v629 = vpop.f32.mrf.mxu0
      %v630 = vpop.f32.mrf.mxu0
      %v631 = vpop.f32.mrf.mxu0
      %632 = vdwg.mxu0
      %v633 = vadd.f32 %v426, %v596
      %v634 = vadd.f32 %v429, %v599
      %v635 = vadd.f32 %v434, %v604
      %v636 = vadd.f32 %v437, %v607
      %v637 = vadd.f32 %v442, %v612
      %v638 = vadd.f32 %v445, %v615
      %v639 = vadd.f32 %v450, %v620
      %v640 = vadd.f32 %v453, %v623
      %v641 = vadd.f32 %v458, %v628
      %v642 = vld [vmem:[%s192 + $0x4] sm:$0xe]
      %s643 = scalar_lea.vmem %s1, 24
      %v644 = vld [vmem:[%s643] sm:$0xf]
      %v645 = vld [vmem:[%s643 + $0x4] sm:$0xf]
      %v647 = vunpack.c.l.b16 %v642
      %v648 = vpack.c.b16 %v487, %v647
      %vm649 = vcmask 1046528
      %v650 = vrot.slane %v648, 1
      %v651 = vrot.slane %v497, 1
      %v652 = vsel %vm649, %v650, %v651
      %v653 = vrot.slane %v498, 1
      %v654 = vsel %vm649, %v651, %v653
      %v655 = vrot.slane %v499, 1
      %v656 = vsel %vm649, %v653, %v655
      %v657 = vrot.slane %v500, 1
      %v658 = vsel %vm649, %v655, %v657
      %v661 = vunpack.c.l.b16 %v644
      %v662 = vunpack.c.l.b16 %v645
      %v663 = vpack.c.b16 %v662, %v661
      %v666 = vsel %vm285, %v652, 0
      %v669 = vsel %vm285, %v654, 0
      %v672 = vsel %vm285, %v656, 0
      %v675 = vsel %vm285, %v658, 0
      %v678 = vsel %vm285, %v657, 0
      %680 = vmatprep.subr.bf16.mxu0 0
      %681 = vmatpush1.bf16.msra.mxu0 0
      %682 = vmatprep.subr.bf16.mxu0 0
      %683 = vmatpush1.bf16.msra.mxu0 0
      %684 = vmatprep.subr.bf16.mxu0 0
      %685 = vmatpush1.bf16.msra.mxu0 0
      %686 = vmatprep.subr.bf16.mxu0 0
      %687 = vmatpush1.bf16.msra.mxu0 0
      %688 = vmatprep.subr.bf16.mxu0 0
      %689 = vmatpush1.bf16.msra.mxu0 0
      %690 = vmatprep.subr.bf16.mxu0 0
      %691 = vmatpush1.bf16.msra.mxu0 0
      %692 = vmatprep.subr.bf16.mxu0 0
      %693 = vmatpush1.bf16.msra.mxu0 0
      %694 = vmatprep.subr.bf16.mxu0 0
      %695 = vmatpush1.bf16.msra.mxu0 %v663
      %696 = vmatprep.subr.bf16.mxu0 0
      %697 = vmatpush2.bf16.msra.mxu0 0
      %698 = vmatprep.subr.bf16.mxu0 0
      %699 = vmatpush2.bf16.msra.mxu0 0
      %700 = vmatprep.subr.bf16.mxu0 0
      %701 = vmatpush2.bf16.msra.mxu0 0
      %702 = vmatprep.subr.bf16.mxu0 0
      %703 = vmatpush2.bf16.msra.mxu0 0
      %704 = vmatprep.subr.bf16.mxu0 0
      %705 = vmatpush2.bf16.msra.mxu0 0
      %706 = vmatprep.subr.bf16.mxu0 0
      %707 = vmatpush2.bf16.msra.mxu0 0
      %708 = vmatprep.subr.bf16.mxu0 0
      %709 = vmatpush2.bf16.msra.mxu0 0
      %710 = vmatprep.subr.bf16.mxu0 0
      %711 = vmatpush2.bf16.msra.mxu0 0
      %712 = vmatprep.mubr.bf16.mxu0 0
      %713 = vmatmul.mubr.bf16.gmra.mxu0 %v666
      %v714 = vpop.f32.mrf.mxu0
      %v715 = vadd.f32 0.0, %v714
      %v716 = vpop.f32.mrf.mxu0
      %v717 = vpop.f32.mrf.mxu0
      %v718 = vadd.f32 0.0, %v717
      %v719 = vpop.f32.mrf.mxu0
      %720 = vmatprep.mubr.bf16.mxu0 0
      %721 = vmatmul.mubr.bf16.gmra.mxu0 %v669
      %v722 = vpop.f32.mrf.mxu0
      %v723 = vadd.f32 0.0, %v722
      %v724 = vpop.f32.mrf.mxu0
      %v725 = vpop.f32.mrf.mxu0
      %v726 = vadd.f32 0.0, %v725
      %v727 = vpop.f32.mrf.mxu0
      %728 = vmatprep.mubr.bf16.mxu0 0
      %729 = vmatmul.mubr.bf16.gmra.mxu0 %v672
      %v730 = vpop.f32.mrf.mxu0
      %v731 = vadd.f32 0.0, %v730
      %v732 = vpop.f32.mrf.mxu0
      %v733 = vpop.f32.mrf.mxu0
      %v734 = vadd.f32 0.0, %v733
      %v735 = vpop.f32.mrf.mxu0
      %736 = vmatprep.mubr.bf16.mxu0 0
      %737 = vmatmul.mubr.bf16.gmra.mxu0 %v675
      %v738 = vpop.f32.mrf.mxu0
      %v739 = vadd.f32 0.0, %v738
      %v740 = vpop.f32.mrf.mxu0
      %v741 = vpop.f32.mrf.mxu0
      %v742 = vadd.f32 0.0, %v741
      %v743 = vpop.f32.mrf.mxu0
      %744 = vmatprep.mubr.bf16.mxu0 0
      %745 = vmatmul.mubr.bf16.gmra.mxu0 %v678
      %v746 = vpop.f32.mrf.mxu0
      %v747 = vadd.f32 0.0, %v746
      %v748 = vpop.f32.mrf.mxu0
      %v749 = vpop.f32.mrf.mxu0
      %v750 = vpop.f32.mrf.mxu0
      %751 = vdwg.mxu0
      %v752 = vadd.f32 %v633, %v715
      %v753 = vadd.f32 %v634, %v718
      %v754 = vadd.f32 %v635, %v723
      %v755 = vadd.f32 %v636, %v726
      %v756 = vadd.f32 %v637, %v731
      %v757 = vadd.f32 %v638, %v734
      %v758 = vadd.f32 %v639, %v739
      %v759 = vadd.f32 %v640, %v742
      %v760 = vadd.f32 %v641, %v747
      %v761 = vld [vmem:[%s2] sm:$0x1]
      %v763 = vlaneseq
      %v764 = vshrl.u32 %v763, 7
      %v765 = vsub.s32 0, %v764
      %v766 = vrot.slane %v761, %v765
      %v768 = vadd.f32 %v752, %v766
      %v769 = vadd.f32 %v753, %v766
      %v770 = vadd.f32 %v754, %v766
      %v771 = vadd.f32 %v755, %v766
      %v772 = vadd.f32 %v756, %v766
      %v773 = vadd.f32 %v757, %v766
      %v774 = vadd.f32 %v758, %v766
      %v775 = vadd.f32 %v759, %v766
      %v776 = vadd.f32 %v760, %v766
      %v777 = vmax.f32 %v768, 0.0
      %v778 = vmax.f32 %v769, 0.0
      %v779 = vmax.f32 %v770, 0.0
      %v780 = vmax.f32 %v771, 0.0
      %v781 = vmax.f32 %v772, 0.0
      %v782 = vmax.f32 %v773, 0.0
      %v783 = vmax.f32 %v774, 0.0
      %v784 = vmax.f32 %v775, 0.0
      %v785 = vmax.f32 %v776, 0.0
      %v786 = vld [vmem:[%s3] sm:$0xff]
      %v787 = vld [vmem:[%s3 + $0x8] sm:$0xff]
      %v788 = vld [vmem:[%s3 + $0x10] sm:$0xff]
      %v789 = vld [vmem:[%s3 + $0x18] sm:$0xff]
      %v790 = vld [vmem:[%s3 + $0x20] sm:$0xff]
      %v791 = vld [vmem:[%s3 + $0x28] sm:$0xff]
      %v792 = vld [vmem:[%s3 + $0x30] sm:$0xff]
      %v793 = vld [vmem:[%s3 + $0x38] sm:$0xff]
      %v794 = vld [vmem:[%s3 + $0x40] sm:$0xff]
      %796 = vset.pattern.permute.xlu0 0
      %797 = vperm.xlu0 %796, %v786
      %v798 = vpop.permute.xlu0 %797
      %801 = vset.pattern.permute.xlu0 0
      %802 = vperm.xlu0 %801, %v787
      %v803 = vpop.permute.xlu0 %802
      %806 = vset.pattern.permute.xlu0 0
      %807 = vperm.xlu0 %806, %v788
      %v808 = vpop.permute.xlu0 %807
      %811 = vset.pattern.permute.xlu0 0
      %812 = vperm.xlu0 %811, %v789
      %v813 = vpop.permute.xlu0 %812
      %816 = vset.pattern.permute.xlu0 0
      %817 = vperm.xlu0 %816, %v790
      %v818 = vpop.permute.xlu0 %817
      %821 = vset.pattern.permute.xlu0 0
      %822 = vperm.xlu0 %821, %v791
      %v823 = vpop.permute.xlu0 %822
      %826 = vset.pattern.permute.xlu0 0
      %827 = vperm.xlu0 %826, %v792
      %v828 = vpop.permute.xlu0 %827
      %831 = vset.pattern.permute.xlu0 0
      %832 = vperm.xlu0 %831, %v793
      %v833 = vpop.permute.xlu0 %832
      %836 = vset.pattern.permute.xlu0 0
      %837 = vperm.xlu0 %836, %v794
      %v838 = vpop.permute.xlu0 %837
      %v840 = vmul.f32 %v777, %v798
      %v841 = vmul.f32 %v778, %v803
      %v842 = vmul.f32 %v779, %v808
      %v843 = vmul.f32 %v780, %v813
      %v844 = vmul.f32 %v781, %v818
      %v845 = vmul.f32 %v782, %v823
      %v846 = vmul.f32 %v783, %v828
      %v847 = vmul.f32 %v784, %v833
      %v848 = vmul.f32 %v785, %v838
      %v849 = vpack.c.bf16 %v841, %v840
      %v850 = vpack.c.bf16 %v843, %v842
      %v851 = vpack.c.bf16 %v845, %v844
      %v852 = vpack.c.bf16 %v847, %v846
      %v853 = vpack.c.bf16 %v848, %v848
      %v859 = vunpack.c.l.b16 %v849
      %v860 = vunpack.c.h.b16 %v849
      %v861 = vunpack.c.l.b16 %v850
      %v862 = vunpack.c.h.b16 %v850
      %v863 = vunpack.c.l.b16 %v851
      %v864 = vunpack.c.h.b16 %v851
      %v865 = vunpack.c.l.b16 %v852
      %v866 = vunpack.c.h.b16 %v852
      %v867 = vunpack.c.l.b16 %v853
      %v868 = vpack.c.b16 %v859, %v859
      %v869 = vpack.c.b16 %v860, %v860
      %v870 = vpack.c.b16 %v861, %v861
      %v871 = vpack.c.b16 %v862, %v862
      %v872 = vpack.c.b16 %v863, %v863
      %v873 = vpack.c.b16 %v864, %v864
      %v874 = vpack.c.b16 %v865, %v865
      %v875 = vpack.c.b16 %v866, %v866
      %v876 = vpack.c.b16 %v867, %v867
      %886 = vst [vmem:[%s197] sm:$0xf] %v868
      %887 = vst [vmem:[%s197 + $0x4] sm:$0xf] %v869
      %888 = vst [vmem:[%s197 + $0x8] sm:$0xf] %v870
      %889 = vst [vmem:[%s197 + $0xc] sm:$0xf] %v871
      %890 = vst [vmem:[%s197 + $0x10] sm:$0xf] %v872
      %891 = vst [vmem:[%s197 + $0x14] sm:$0xf] %v873
      %892 = vst [vmem:[%s197 + $0x18] sm:$0xf] %v874
      %893 = vst [vmem:[%s197 + $0x1c] sm:$0xf] %v875
      %894 = vst [vmem:[%s197 + $0x20] sm:$0xf] %v876
      %p895 = scmp.lt.s32.totalorder %s15, 1
      %s896 = scalar_select %p895, %s15, 1
      %s897 = smul.addr %s896, 9
      %s898 = smul.addr %s897, 4
      %s899 = scalar_lea.vmem %s4, %s898
      // Predicated region
      $region37: #{_lambda_.4} parent=35 // pred_check
        %p900 = pneg %p122
      $region38: #{_lambda_.4} parent=35 // pred_check_branch
        %902 = sbr.rel (%p900) target = $region40
      $region39: #{_lambda_.4} parent=35 // pred_region
        _
      $region40: #{_lambda_.4} parent=35 // pred_fallthru
        _
    $region36: #{_lambda_.4} parent=5 // pred_fallthru
      _
    %p903 = scmp.le.s32.totalorder 2, %s10
    // Predicated region
    $region41: #{_lambda_.4} parent=5 // pred_check
      %p904 = pneg %p903
    $region42: #{_lambda_.4} parent=5 // pred_check_branch
      %906 = sbr.rel (%p904) target = $region44
    $region43: #{_lambda_.4} parent=5 // pred_region
      %s907 = ssub.s32 %s10, 2
      // Predicated region
      $region45: #{_lambda_.4} parent=43 // pred_check
        %p908 = pneg %p128
      $region46: #{_lambda_.4} parent=43 // pred_check_branch
        %910 = sbr.rel (%p908) target = $region48
      $region47: #{_lambda_.4} parent=43 // pred_region
        %p911 = scmp.lt.s32.totalorder %s16, 1
        %s912 = scalar_select %p911, %s16, 1
        %s913 = smul.addr %s912, 9
        %s914 = smul.addr %s913, 4
        %s915 = scalar_lea.vmem %s4, %s914
      $region48: #{_lambda_.4} parent=43 // pred_fallthru
        _
    $region44: #{_lambda_.4} parent=5 // pred_fallthru
      _
  $region6: #{_lambda_.4} parent=0 // loop_footer
    %s14 = sadd.s32 1, %s10
  $region7: #{_lambda_.4} parent=0 // loop_footer_branch
    %9 = sbr.rel target = $region3
  $region8: #{_lambda_.4} parent=0 // loop_exit
    _

// kernel: _lambda_.5
$region0: #{_lambda_.5}
  #allocation0 [shape = 'u32[]', space=smem, size = 0x4, offset = 0x4, fixed_abs, tag = 'smem constant byte address 0x4 - core index']
  #allocation1 [shape = 'u32[144,128]{1,0:T(1,128)}', space=vmem, size = 0x12000, scoped, tag = 'internal scratch']
  %s0 = inlined_call_operand.vmem [shape: bf16[2,30,512], index: 0, kind: input, shape index: {}]
  %s1 = inlined_call_operand.vmem [shape: bf16[2,2,512,128], index: 1, kind: input, shape index: {}]
  %s2 = inlined_call_operand.vmem [shape: f32[1,128], index: 2, kind: input, shape index: {}]
  %s3 = inlined_call_operand.vmem [shape: f32[20,1], index: 3, kind: input, shape index: {}]
  %s4 = inlined_call_operand.vmem [shape: bf16[2,20,128], index: 4, kind: output, shape index: {}]
  %s5 = sld [smem:[#allocation0]]
  $region49: #{_lambda_.5} parent=0
    _
  %s7 = ssub.s32 1, %s5
  %s8 = scalar_select 0, %s7, %s5
  loop: start=0, step=1, limit=4
  $region2: #{_lambda_.5} parent=0 // loop_pre_header
    _
  $region3: #{_lambda_.5} parent=0 // loop_header
    %s10 = sphi 0, %s14
    %p11 = scmp.ge.s32.totalorder %s10, 4
    %s20 = sphi 0, %s22
    %s23 = sphi 0, %s20
    %s24 = sphi 0, %s23
    %s40 = sphi 0, %s24
    %s44 = sphi 0, %s44
    %s46 = sphi 0, %s44
    %s47 = sphi 0, %s46
    %s61 = sphi 0, %s47
    %s65 = sphi 0, %s65
    %s67 = sphi 0, %s65
    %s68 = sphi 0, %s67
    %s82 = sphi 0, %s68
    %s86 = sphi 0, %s86
    %s88 = sphi 0, %s86
    %s89 = sphi 0, %s88
    %s103 = sphi 0, %s89
    %s109 = sphi 0, %s111
    %s112 = sphi 0, %s109
    %s113 = sphi 0, %s112
    %s129 = sphi 0, %s113
  $region4: #{_lambda_.5} parent=0 // loop_header_branch
    %13 = sbr.rel (%p11) target = $region8
  $region5: #{_lambda_.5} parent=0 // loop_body
    %s15 = ssub.s32 %s10, 1
    %s16 = ssub.s32 %s10, 2
    %s17 = sadd.s32 %s10, 1
    %s18 = ssub.s32 %s10, %s17
    %p19 = scmp.eq.s32.totalorder %s18, 0
    %s21 = sadd.s32 %s20, 1
    %s22 = scalar_select %p19, %s20, %s21
    %p25 = pneg %p19
    %p26 = scmp.eq.s32.totalorder %s10, 1
    %p27 = por %p25, %p26
    %p28 = scmp.ne.s32.totalorder %s20, %s23
    %p29 = scmp.eq.s32.totalorder %s10, 0
    %p30 = por %p28, %p29
    %p31 = scmp.ne.s32.totalorder %s20, %s23
    %p32 = scmp.eq.s32.totalorder %s15, 1
    %p33 = por %p31, %p32
    %p34 = scmp.ne.s32.totalorder %s23, %s24
    %p35 = scmp.eq.s32.totalorder %s15, 0
    %p36 = por %p34, %p35
    %p37 = scmp.ne.s32.totalorder %s23, %s24
    %p38 = scmp.eq.s32.totalorder %s16, 1
    %p39 = por %p37, %p38
    %p41 = scmp.ne.s32.totalorder %s24, %s40
    %p42 = scmp.eq.s32.totalorder %s16, 0
    %p43 = por %p41, %p42
    %s45 = sadd.s32 %s44, 1
    %p48 = scmp.eq.s32.totalorder %s10, 1
    %p49 = scmp.ne.s32.totalorder %s44, %s46
    %p50 = scmp.eq.s32.totalorder %s10, 0
    %p51 = por %p49, %p50
    %p52 = scmp.ne.s32.totalorder %s44, %s46
    %p53 = scmp.eq.s32.totalorder %s15, 1
    %p54 = por %p52, %p53
    %p55 = scmp.ne.s32.totalorder %s46, %s47
    %p56 = scmp.eq.s32.totalorder %s15, 0
    %p57 = por %p55, %p56
    %p58 = scmp.ne.s32.totalorder %s46, %s47
    %p59 = scmp.eq.s32.totalorder %s16, 1
    %p60 = por %p58, %p59
    %p62 = scmp.ne.s32.totalorder %s47, %s61
    %p63 = scmp.eq.s32.totalorder %s16, 0
    %p64 = por %p62, %p63
    %s66 = sadd.s32 %s65, 1
    %p69 = scmp.eq.s32.totalorder %s10, 1
    %p70 = scmp.ne.s32.totalorder %s65, %s67
    %p71 = scmp.eq.s32.totalorder %s10, 0
    %p72 = por %p70, %p71
    %p73 = scmp.ne.s32.totalorder %s65, %s67
    %p74 = scmp.eq.s32.totalorder %s15, 1
    %p75 = por %p73, %p74
    %p76 = scmp.ne.s32.totalorder %s67, %s68
    %p77 = scmp.eq.s32.totalorder %s15, 0
    %p78 = por %p76, %p77
    %p79 = scmp.ne.s32.totalorder %s67, %s68
    %p80 = scmp.eq.s32.totalorder %s16, 1
    %p81 = por %p79, %p80
    %p83 = scmp.ne.s32.totalorder %s68, %s82
    %p84 = scmp.eq.s32.totalorder %s16, 0
    %p85 = por %p83, %p84
    %s87 = sadd.s32 %s86, 1
    %p90 = scmp.eq.s32.totalorder %s10, 1
    %p91 = scmp.ne.s32.totalorder %s86, %s88
    %p92 = scmp.eq.s32.totalorder %s10, 0
    %p93 = por %p91, %p92
    %p94 = scmp.ne.s32.totalorder %s86, %s88
    %p95 = scmp.eq.s32.totalorder %s15, 1
    %p96 = por %p94, %p95
    %p97 = scmp.ne.s32.totalorder %s88, %s89
    %p98 = scmp.eq.s32.totalorder %s15, 0
    %p99 = por %p97, %p98
    %p100 = scmp.ne.s32.totalorder %s88, %s89
    %p101 = scmp.eq.s32.totalorder %s16, 1
    %p102 = por %p100, %p101
    %p104 = scmp.ne.s32.totalorder %s89, %s103
    %p105 = scmp.eq.s32.totalorder %s16, 0
    %p106 = por %p104, %p105
    %s107 = ssub.s32 %s10, %s17
    %p108 = scmp.eq.s32.totalorder %s107, 0
    %s110 = sadd.s32 %s109, 1
    %s111 = scalar_select %p108, %s109, %s110
    %p114 = pneg %p108
    %p115 = scmp.eq.s32.totalorder %s10, 1
    %p116 = por %p114, %p115
    %p117 = scmp.ne.s32.totalorder %s109, %s112
    %p118 = scmp.eq.s32.totalorder %s10, 0
    %p119 = por %p117, %p118
    %p120 = scmp.ne.s32.totalorder %s109, %s112
    %p121 = scmp.eq.s32.totalorder %s15, 1
    %p122 = por %p120, %p121
    %p123 = scmp.ne.s32.totalorder %s112, %s113
    %p124 = scmp.eq.s32.totalorder %s15, 0
    %p125 = por %p123, %p124
    %p126 = scmp.ne.s32.totalorder %s112, %s113
    %p127 = scmp.eq.s32.totalorder %s16, 1
    %p128 = por %p126, %p127
    %p130 = scmp.ne.s32.totalorder %s113, %s129
    %p131 = scmp.eq.s32.totalorder %s16, 0
    %p132 = por %p130, %p131
    %p133 = scmp.le.s32.totalorder 1, %s10
    %p134 = scmp.lt.s32.totalorder %s10, 3
    %p135 = pnand %p133, %p134
    %p136 = pneg %p135
    // Predicated region
    $region9: #{_lambda_.5} parent=5 // pred_check
      _
    $region10: #{_lambda_.5} parent=5 // pred_check_branch
      %138 = sbr.rel (%p135) target = $region12
    $region11: #{_lambda_.5} parent=5 // pred_region
      %s139 = ssub.s32 %s10, 1
      // Predicated region
      $region13: #{_lambda_.5} parent=11 // pred_check
        %p140 = pneg %p57
      $region14: #{_lambda_.5} parent=11 // pred_check_branch
        %142 = sbr.rel (%p140) target = $region16
      $region15: #{_lambda_.5} parent=11 // pred_region
        _
      $region16: #{_lambda_.5} parent=11 // pred_fallthru
        _
      // Predicated region
      $region17: #{_lambda_.5} parent=11 // pred_check
        %p143 = pneg %p78
      $region18: #{_lambda_.5} parent=11 // pred_check_branch
        %145 = sbr.rel (%p143) target = $region20
      $region19: #{_lambda_.5} parent=11 // pred_region
        _
      $region20: #{_lambda_.5} parent=11 // pred_fallthru
        _
      // Predicated region
      $region21: #{_lambda_.5} parent=11 // pred_check
        %p146 = pneg %p99
      $region22: #{_lambda_.5} parent=11 // pred_check_branch
        %148 = sbr.rel (%p146) target = $region24
      $region23: #{_lambda_.5} parent=11 // pred_region
        _
      $region24: #{_lambda_.5} parent=11 // pred_fallthru
        _
    $region12: #{_lambda_.5} parent=5 // pred_fallthru
      _
    %p149 = scmp.lt.s32.totalorder %s10, 2
    // Predicated region
    $region25: #{_lambda_.5} parent=5 // pred_check
      %p150 = pneg %p149
    $region26: #{_lambda_.5} parent=5 // pred_check_branch
      %152 = sbr.rel (%p150) target = $region28
    $region27: #{_lambda_.5} parent=5 // pred_region
      // Predicated region
      $region29: #{_lambda_.5} parent=27 // pred_check
        %p153 = pneg %p30
      $region30: #{_lambda_.5} parent=27 // pred_check_branch
        %155 = sbr.rel (%p153) target = $region32
      $region31: #{_lambda_.5} parent=27 // pred_region
        %p156 = scmp.lt.s32.totalorder %s10, 1
        %s157 = scalar_select %p156, %s10, 1
        %s158 = smul.addr %s157, 16
        %s159 = smul.addr %s158, 4
        %s160 = scalar_lea.vmem %s0, %s159
      $region32: #{_lambda_.5} parent=27 // pred_fallthru
        _
    $region28: #{_lambda_.5} parent=5 // pred_fallthru
      _
    %p161 = scmp.le.s32.totalorder 1, %s10
    %p162 = scmp.lt.s32.totalorder %s10, 3
    %p163 = pnand %p161, %p162
    %p164 = pneg %p163
    // Predicated region
    $region33: #{_lambda_.5} parent=5 // pred_check
      _
    $region34: #{_lambda_.5} parent=5 // pred_check_branch
      %166 = sbr.rel (%p163) target = $region36
    $region35: #{_lambda_.5} parent=5 // pred_region
      %s167 = ssub.s32 %s10, 1
      %p168 = scmp.lt.s32.totalorder %s15, 1
      %s169 = scalar_select %p168, %s15, 1
      %s170 = smul.addr %s169, 16
      %s171 = smul.addr %s170, 4
      %s172 = scalar_lea.vmem %s0, %s171
      %p173 = pneg %p36
      %p174 = pneg %p33
      %p175 = pneg %p57
      %p176 = pneg %p54
      %p177 = pneg %p78
      %p178 = pneg %p75
      %p179 = pneg %p99
      %p180 = pneg %p96
      %p181 = pneg %p125
      %p182 = pneg %p122
      %p183 = scmp.lt.s32.totalorder %s15, 1
      %s184 = scalar_select %p183, %s15, 1
      %s185 = smul.addr %s184, 3
      %s186 = smul.addr %s185, 4
      %s187 = scalar_lea.vmem %s4, %s186
      %p188 = scmp.lt.s32.totalorder %s15, 1
      %s189 = scalar_select %p188, %s15, 1
      %s190 = smul.addr %s189, 16
      %s191 = smul.addr %s190, 4
      %s192 = scalar_lea.vmem %s0, %s191
      %p193 = scmp.lt.s32.totalorder %s15, 1
      %s194 = scalar_select %p193, %s15, 1
      %s195 = smul.addr %s194, 3
      %s196 = smul.addr %s195, 4
      %s197 = scalar_lea.vmem %s4, %s196
      %v199 = vld [vmem:[%s192] sm:$0xff]
      %v200 = vld [vmem:[%s192 + $0x8] sm:$0xff]
      %v201 = vld [vmem:[%s192 + $0x10] sm:$0xff]
      %v202 = vld [vmem:[%s192 + $0x18] sm:$0xff]
      %v203 = vld [vmem:[%s192 + $0x20] sm:$0x33]
      %v204 = vld [vmem:[%s192 + $0x28] sm:$0x33]
      %v205 = vld [vmem:[%s1] sm:$0xf]
      %v206 = vld [vmem:[%s1 + $0x4] sm:$0xf]
      %v207 = vld [vmem:[%s1 + $0x8] sm:$0xf]
      %v208 = vld [vmem:[%s1 + $0xc] sm:$0xf]
      %v209 = vld [vmem:[%s1 + $0x10] sm:$0xf]
      %v210 = vld [vmem:[%s1 + $0x14] sm:$0xf]
      %v211 = vld [vmem:[%s1 + $0x18] sm:$0xf]
      %v212 = vld [vmem:[%s1 + $0x1c] sm:$0xf]
      %v213 = vld [vmem:[%s1 + $0x20] sm:$0xf]
      %v214 = vld [vmem:[%s1 + $0x24] sm:$0xf]
      %v215 = vld [vmem:[%s1 + $0x28] sm:$0xf]
      %v216 = vld [vmem:[%s1 + $0x2c] sm:$0xf]
      %v217 = vld [vmem:[%s1 + $0x30] sm:$0xf]
      %v218 = vld [vmem:[%s1 + $0x34] sm:$0xf]
      %v219 = vld [vmem:[%s1 + $0x38] sm:$0xf]
      %v220 = vld [vmem:[%s1 + $0x3c] sm:$0xf]
      %v221 = vld [vmem:[%s1 + $0x40] sm:$0xf]
      %v222 = vld [vmem:[%s1 + $0x44] sm:$0xf]
      %v223 = vld [vmem:[%s1 + $0x48] sm:$0xf]
      %v224 = vld [vmem:[%s1 + $0x4c] sm:$0xf]
      %v225 = vld [vmem:[%s1 + $0x50] sm:$0xf]
      %v226 = vld [vmem:[%s1 + $0x54] sm:$0xf]
      %v227 = vld [vmem:[%s1 + $0x58] sm:$0xf]
      %v228 = vld [vmem:[%s1 + $0x5c] sm:$0xf]
      %v229 = vld [vmem:[%s1 + $0x60] sm:$0xf]
      %v230 = vld [vmem:[%s1 + $0x64] sm:$0xf]
      %v231 = vld [vmem:[%s1 + $0x68] sm:$0xf]
      %v232 = vld [vmem:[%s1 + $0x6c] sm:$0xf]
      %v233 = vld [vmem:[%s1 + $0x70] sm:$0xf]
      %v234 = vld [vmem:[%s1 + $0x74] sm:$0xf]
      %v235 = vld [vmem:[%s1 + $0x78] sm:$0xf]
      %v236 = vld [vmem:[%s1 + $0x7c] sm:$0xf]
      %v237 = vld [vmem:[%s1 + $0x80] sm:$0xf]
      %v238 = vld [vmem:[%s1 + $0x84] sm:$0xf]
      %v239 = vld [vmem:[%s1 + $0x88] sm:$0xf]
      %v240 = vld [vmem:[%s1 + $0x8c] sm:$0xf]
      %v241 = vld [vmem:[%s1 + $0x90] sm:$0xf]
      %v242 = vld [vmem:[%s1 + $0x94] sm:$0xf]
      %v243 = vld [vmem:[%s1 + $0x98] sm:$0xf]
      %v244 = vld [vmem:[%s1 + $0x9c] sm:$0xf]
      %v245 = vld [vmem:[%s1 + $0xa0] sm:$0xf]
      %v246 = vld [vmem:[%s1 + $0xa4] sm:$0xf]
      %v247 = vld [vmem:[%s1 + $0xa8] sm:$0xf]
      %v248 = vld [vmem:[%s1 + $0xac] sm:$0xf]
      %v249 = vld [vmem:[%s1 + $0xb0] sm:$0xf]
      %v250 = vld [vmem:[%s1 + $0xb4] sm:$0xf]
      %v251 = vld [vmem:[%s1 + $0xb8] sm:$0xf]
      %v252 = vld [vmem:[%s1 + $0xbc] sm:$0xf]
      %v253 = vld [vmem:[%s1 + $0xc0] sm:$0xf]
      %v254 = vld [vmem:[%s1 + $0xc4] sm:$0xf]
      %v255 = vld [vmem:[%s1 + $0xc8] sm:$0xf]
      %v256 = vld [vmem:[%s1 + $0xcc] sm:$0xf]
      %v257 = vld [vmem:[%s1 + $0xd0] sm:$0xf]
      %v258 = vld [vmem:[%s1 + $0xd4] sm:$0xf]
      %v259 = vld [vmem:[%s1 + $0xd8] sm:$0xf]
      %v260 = vld [vmem:[%s1 + $0xdc] sm:$0xf]
      %v261 = vld [vmem:[%s1 + $0xe0] sm:$0xf]
      %v262 = vld [vmem:[%s1 + $0xe4] sm:$0xf]
      %v263 = vld [vmem:[%s1 + $0xe8] sm:$0xf]
      %v264 = vld [vmem:[%s1 + $0xec] sm:$0xf]
      %v265 = vld [vmem:[%s1 + $0xf0] sm:$0xf]
      %v266 = vld [vmem:[%s1 + $0xf4] sm:$0xf]
      %v267 = vld [vmem:[%s1 + $0xf8] sm:$0xf]
      %v268 = vld [vmem:[%s1 + $0xfc] sm:$0xf]
      %v269 = vld [vmem:[%s192 + $0x20] sm:$0x77]
      %v270 = vld [vmem:[%s192 + $0x28] sm:$0x77]
      %s271 = scalar_lea.vmem %s1, 256
      %v272 = vld [vmem:[%s271] sm:$0xf]
      %v273 = vld [vmem:[%s271 + $0x4] sm:$0xf]
      %v274 = vld [vmem:[%s271 + $0x8] sm:$0xf]
      %v275 = vld [vmem:[%s271 + $0xc] sm:$0xf]
      %v276 = vld [vmem:[%s271 + $0x10] sm:$0xf]
      %v277 = vld [vmem:[%s271 + $0x14] sm:$0xf]
      %v278 = vld [vmem:[%s271 + $0x18] sm:$0xf]
      %v279 = vld [vmem:[%s271 + $0x1c] sm:$0xf]
      %v280 = vld [vmem:[%s271 + $0x20] sm:$0xf]
      %v281 = vld [vmem:[%s271 + $0x24] sm:$0xf]
      %v282 = vld [vmem:[%s271 + $0x28] sm:$0xf]
      %v283 = vld [vmem:[%s271 + $0x2c] sm:$0xf]
      %v284 = vld [vmem:[%s271 + $0x30] sm:$0xf]
      %v285 = vld [vmem:[%s271 + $0x34] sm:$0xf]
      %v286 = vld [vmem:[%s271 + $0x38] sm:$0xf]
      %v287 = vld [vmem:[%s271 + $0x3c] sm:$0xf]
      %v288 = vld [vmem:[%s271 + $0x40] sm:$0xf]
      %v289 = vld [vmem:[%s271 + $0x44] sm:$0xf]
      %v290 = vld [vmem:[%s271 + $0x48] sm:$0xf]
      %v291 = vld [vmem:[%s271 + $0x4c] sm:$0xf]
      %v292 = vld [vmem:[%s271 + $0x50] sm:$0xf]
      %v293 = vld [vmem:[%s271 + $0x54] sm:$0xf]
      %v294 = vld [vmem:[%s271 + $0x58] sm:$0xf]
      %v295 = vld [vmem:[%s271 + $0x5c] sm:$0xf]
      %v296 = vld [vmem:[%s271 + $0x60] sm:$0xf]
      %v297 = vld [vmem:[%s271 + $0x64] sm:$0xf]
      %v298 = vld [vmem:[%s271 + $0x68] sm:$0xf]
      %v299 = vld [vmem:[%s271 + $0x6c] sm:$0xf]
      %v300 = vld [vmem:[%s271 + $0x70] sm:$0xf]
      %v301 = vld [vmem:[%s271 + $0x74] sm:$0xf]
      %v302 = vld [vmem:[%s271 + $0x78] sm:$0xf]
      %v303 = vld [vmem:[%s271 + $0x7c] sm:$0xf]
      %v304 = vld [vmem:[%s271 + $0x80] sm:$0xf]
      %v305 = vld [vmem:[%s271 + $0x84] sm:$0xf]
      %v306 = vld [vmem:[%s271 + $0x88] sm:$0xf]
      %v307 = vld [vmem:[%s271 + $0x8c] sm:$0xf]
      %v308 = vld [vmem:[%s271 + $0x90] sm:$0xf]
      %v309 = vld [vmem:[%s271 + $0x94] sm:$0xf]
      %v310 = vld [vmem:[%s271 + $0x98] sm:$0xf]
      %v311 = vld [vmem:[%s271 + $0x9c] sm:$0xf]
      %v312 = vld [vmem:[%s271 + $0xa0] sm:$0xf]
      %v313 = vld [vmem:[%s271 + $0xa4] sm:$0xf]
      %v314 = vld [vmem:[%s271 + $0xa8] sm:$0xf]
      %v315 = vld [vmem:[%s271 + $0xac] sm:$0xf]
      %v316 = vld [vmem:[%s271 + $0xb0] sm:$0xf]
      %v317 = vld [vmem:[%s271 + $0xb4] sm:$0xf]
      %v318 = vld [vmem:[%s271 + $0xb8] sm:$0xf]
      %v319 = vld [vmem:[%s271 + $0xbc] sm:$0xf]
      %v320 = vld [vmem:[%s271 + $0xc0] sm:$0xf]
      %v321 = vld [vmem:[%s271 + $0xc4] sm:$0xf]
      %v322 = vld [vmem:[%s271 + $0xc8] sm:$0xf]
      %v323 = vld [vmem:[%s271 + $0xcc] sm:$0xf]
      %v324 = vld [vmem:[%s271 + $0xd0] sm:$0xf]
      %v325 = vld [vmem:[%s271 + $0xd4] sm:$0xf]
      %v326 = vld [vmem:[%s271 + $0xd8] sm:$0xf]
      %v327 = vld [vmem:[%s271 + $0xdc] sm:$0xf]
      %v328 = vld [vmem:[%s271 + $0xe0] sm:$0xf]
      %v329 = vld [vmem:[%s271 + $0xe4] sm:$0xf]
      %v330 = vld [vmem:[%s271 + $0xe8] sm:$0xf]
      %v331 = vld [vmem:[%s271 + $0xec] sm:$0xf]
      %v332 = vld [vmem:[%s271 + $0xf0] sm:$0xf]
      %v333 = vld [vmem:[%s271 + $0xf4] sm:$0xf]
      %v334 = vld [vmem:[%s271 + $0xf8] sm:$0xf]
      %v335 = vld [vmem:[%s271 + $0xfc] sm:$0xf]
      %v342 = vunpack.c.l.b16 %v199
      %v343 = vunpack.c.h.b16 %v199
      %v344 = vunpack.c.l.b16 %v200
      %v345 = vunpack.c.h.b16 %v200
      %v346 = vunpack.c.l.b16 %v201
      %v347 = vunpack.c.h.b16 %v201
      %v348 = vunpack.c.l.b16 %v202
      %v349 = vunpack.c.h.b16 %v202
      %v350 = vunpack.c.l.b16 %v269
      %v351 = vunpack.c.h.b16 %v269
      %v352 = vunpack.c.l.b16 %v270
      %v353 = vunpack.c.h.b16 %v270
      %v354 = vpack.c.b16 %v346, %v342
      %v355 = vpack.c.b16 %v347, %v343
      %v356 = vpack.c.b16 %v348, %v344
      %v357 = vpack.c.b16 %v349, %v345
      %v358 = vpack.c.b16 %v350, %v350
      %v359 = vpack.c.b16 %v351, %v351
      %v360 = vpack.c.b16 %v352, %v352
      %v361 = vpack.c.b16 %v353, %v353
      %vm362 = vsmask.f32 7424
      %v364 = vshrl.u32 %v354, 16
      %v366 = vshll.u32 %v354, 16
      %v368 = vrot.slane %v366, 1
      %v369 = vor.u32 %v364, %v368
      %v371 = vshll.u32 %v358, 16
      %v373 = vrot.slane %v371, 1
      %v374 = vsel %vm362, %v369, %v373
      %v376 = vshrl.u32 %v355, 16
      %v378 = vshll.u32 %v355, 16
      %v380 = vrot.slane %v378, 1
      %v381 = vor.u32 %v376, %v380
      %v383 = vshll.u32 %v359, 16
      %v385 = vrot.slane %v383, 1
      %v386 = vsel %vm362, %v381, %v385
      %v388 = vshrl.u32 %v356, 16
      %v390 = vshll.u32 %v356, 16
      %v392 = vrot.slane %v390, 1
      %v393 = vor.u32 %v388, %v392
      %v395 = vshll.u32 %v360, 16
      %v397 = vrot.slane %v395, 1
      %v398 = vsel %vm362, %v393, %v397
      %v400 = vshrl.u32 %v357, 16
      %v402 = vshll.u32 %v357, 16
      %v404 = vrot.slane %v402, 1
      %v405 = vor.u32 %v400, %v404
      %v407 = vshll.u32 %v361, 16
      %v409 = vrot.slane %v407, 1
      %v410 = vsel %vm362, %v405, %v409
      %v411 = vshrl.u32 %v358, 16
      %v413 = vor.u32 %v411, %v373
      %v414 = vshrl.u32 %v359, 16
      %v416 = vor.u32 %v414, %v385
      %v417 = vshrl.u32 %v360, 16
      %v419 = vor.u32 %v417, %v397
      %v420 = vshrl.u32 %v361, 16
      %v422 = vor.u32 %v420, %v409
      %v495 = vunpack.c.l.b16 %v272
      %v496 = vunpack.c.l.b16 %v273
      %v497 = vunpack.c.l.b16 %v274
      %v498 = vunpack.c.l.b16 %v275
      %v499 = vunpack.c.l.b16 %v276
      %v500 = vunpack.c.l.b16 %v277
      %v501 = vunpack.c.l.b16 %v278
      %v502 = vunpack.c.l.b16 %v279
      %v503 = vunpack.c.l.b16 %v280
      %v504 = vunpack.c.l.b16 %v281
      %v505 = vunpack.c.l.b16 %v282
      %v506 = vunpack.c.l.b16 %v283
      %v507 = vunpack.c.l.b16 %v284
      %v508 = vunpack.c.l.b16 %v285
      %v509 = vunpack.c.l.b16 %v286
      %v510 = vunpack.c.l.b16 %v287
      %v511 = vunpack.c.l.b16 %v288
      %v512 = vunpack.c.l.b16 %v289
      %v513 = vunpack.c.l.b16 %v290
      %v514 = vunpack.c.l.b16 %v291
      %v515 = vunpack.c.l.b16 %v292
      %v516 = vunpack.c.l.b16 %v293
      %v517 = vunpack.c.l.b16 %v294
      %v518 = vunpack.c.l.b16 %v295
      %v519 = vunpack.c.l.b16 %v296
      %v520 = vunpack.c.l.b16 %v297
      %v521 = vunpack.c.l.b16 %v298
      %v522 = vunpack.c.l.b16 %v299
      %v523 = vunpack.c.l.b16 %v300
      %v524 = vunpack.c.l.b16 %v301
      %v525 = vunpack.c.l.b16 %v302
      %v526 = vunpack.c.l.b16 %v303
      %v527 = vunpack.c.l.b16 %v304
      %v528 = vunpack.c.l.b16 %v305
      %v529 = vunpack.c.l.b16 %v306
      %v530 = vunpack.c.l.b16 %v307
      %v531 = vunpack.c.l.b16 %v308
      %v532 = vunpack.c.l.b16 %v309
      %v533 = vunpack.c.l.b16 %v310
      %v534 = vunpack.c.l.b16 %v311
      %v535 = vunpack.c.l.b16 %v312
      %v536 = vunpack.c.l.b16 %v313
      %v537 = vunpack.c.l.b16 %v314
      %v538 = vunpack.c.l.b16 %v315
      %v539 = vunpack.c.l.b16 %v316
      %v540 = vunpack.c.l.b16 %v317
      %v541 = vunpack.c.l.b16 %v318
      %v542 = vunpack.c.l.b16 %v319
      %v543 = vunpack.c.l.b16 %v320
      %v544 = vunpack.c.l.b16 %v321
      %v545 = vunpack.c.l.b16 %v322
      %v546 = vunpack.c.l.b16 %v323
      %v547 = vunpack.c.l.b16 %v324
      %v548 = vunpack.c.l.b16 %v325
      %v549 = vunpack.c.l.b16 %v326
      %v550 = vunpack.c.l.b16 %v327
      %v551 = vunpack.c.l.b16 %v328
      %v552 = vunpack.c.l.b16 %v329
      %v553 = vunpack.c.l.b16 %v330
      %v554 = vunpack.c.l.b16 %v331
      %v555 = vunpack.c.l.b16 %v332
      %v556 = vunpack.c.l.b16 %v333
      %v557 = vunpack.c.l.b16 %v334
      %v558 = vunpack.c.l.b16 %v335
      %v559 = vpack.c.b16 %v496, %v495
      %v560 = vpack.c.b16 %v498, %v497
      %v561 = vpack.c.b16 %v500, %v499
      %v562 = vpack.c.b16 %v502, %v501
      %v563 = vpack.c.b16 %v504, %v503
      %v564 = vpack.c.b16 %v506, %v505
      %v565 = vpack.c.b16 %v508, %v507
      %v566 = vpack.c.b16 %v510, %v509
      %v567 = vpack.c.b16 %v512, %v511
      %v568 = vpack.c.b16 %v514, %v513
      %v569 = vpack.c.b16 %v516, %v515
      %v570 = vpack.c.b16 %v518, %v517
      %v571 = vpack.c.b16 %v520, %v519
      %v572 = vpack.c.b16 %v522, %v521
      %v573 = vpack.c.b16 %v524, %v523
      %v574 = vpack.c.b16 %v526, %v525
      %v575 = vpack.c.b16 %v528, %v527
      %v576 = vpack.c.b16 %v530, %v529
      %v577 = vpack.c.b16 %v532, %v531
      %v578 = vpack.c.b16 %v534, %v533
      %v579 = vpack.c.b16 %v536, %v535
      %v580 = vpack.c.b16 %v538, %v537
      %v581 = vpack.c.b16 %v540, %v539
      %v582 = vpack.c.b16 %v542, %v541
      %v583 = vpack.c.b16 %v544, %v543
      %v584 = vpack.c.b16 %v546, %v545
      %v585 = vpack.c.b16 %v548, %v547
      %v586 = vpack.c.b16 %v550, %v549
      %v587 = vpack.c.b16 %v552, %v551
      %v588 = vpack.c.b16 %v554, %v553
      %v589 = vpack.c.b16 %v556, %v555
      %v590 = vpack.c.b16 %v558, %v557
      %623 = vmatprep.subr.bf16.mxu0 0
      %624 = vmatpush1.bf16.msra.mxu0 %v566
      %625 = vmatprep.subr.bf16.mxu0 0
      %626 = vmatpush1.bf16.msra.mxu0 %v565
      %627 = vmatprep.subr.bf16.mxu0 0
      %628 = vmatpush1.bf16.msra.mxu0 %v564
      %629 = vmatprep.subr.bf16.mxu0 0
      %630 = vmatpush1.bf16.msra.mxu0 %v563
      %631 = vmatprep.subr.bf16.mxu0 0
      %632 = vmatpush1.bf16.msra.mxu0 %v562
      %633 = vmatprep.subr.bf16.mxu0 0
      %634 = vmatpush1.bf16.msra.mxu0 %v561
      %635 = vmatprep.subr.bf16.mxu0 0
      %636 = vmatpush1.bf16.msra.mxu0 %v560
      %637 = vmatprep.subr.bf16.mxu0 0
      %638 = vmatpush1.bf16.msra.mxu0 %v559
      %639 = vmatprep.subr.bf16.mxu0 0
      %640 = vmatpush2.bf16.msra.mxu0 %v574
      %641 = vmatprep.subr.bf16.mxu0 0
      %642 = vmatpush2.bf16.msra.mxu0 %v573
      %643 = vmatprep.subr.bf16.mxu0 0
      %644 = vmatpush2.bf16.msra.mxu0 %v572
      %645 = vmatprep.subr.bf16.mxu0 0
      %646 = vmatpush2.bf16.msra.mxu0 %v571
      %647 = vmatprep.subr.bf16.mxu0 0
      %648 = vmatpush2.bf16.msra.mxu0 %v570
      %649 = vmatprep.subr.bf16.mxu0 0
      %650 = vmatpush2.bf16.msra.mxu0 %v569
      %651 = vmatprep.subr.bf16.mxu0 0
      %652 = vmatpush2.bf16.msra.mxu0 %v568
      %653 = vmatprep.subr.bf16.mxu0 0
      %654 = vmatpush2.bf16.msra.mxu0 %v567
      %655 = vmatprep.mubr.bf16.mxu0 %v386
      %656 = vmatmul.mubr.bf16.gmra.mxu0 %v374
      %v657 = vpop.f32.mrf.mxu0
      %v658 = vadd.f32 0.0, %v657
      %v659 = vpop.f32.mrf.mxu0
      %v660 = vpop.f32.mrf.mxu0
      %v661 = vadd.f32 0.0, %v660
      %v662 = vpop.f32.mrf.mxu0
      %663 = vmatprep.mubr.bf16.mxu0 %v416
      %664 = vmatmul.mubr.bf16.gmra.mxu0 %v413
      %v665 = vpop.f32.mrf.mxu0
      %v666 = vadd.f32 0.0, %v665
      %v667 = vpop.f32.mrf.mxu0
      %v668 = vpop.f32.mrf.mxu0
      %v669 = vpop.f32.mrf.mxu0
      %670 = vdwg.mxu0
      %671 = vmatprep.subr.bf16.mxu0 0
      %672 = vmatpush1.bf16.msra.mxu0 %v582
      %673 = vmatprep.subr.bf16.mxu0 0
      %674 = vmatpush1.bf16.msra.mxu0 %v581
      %675 = vmatprep.subr.bf16.mxu0 0
      %676 = vmatpush1.bf16.msra.mxu0 %v580
      %677 = vmatprep.subr.bf16.mxu0 0
      %678 = vmatpush1.bf16.msra.mxu0 %v579
      %679 = vmatprep.subr.bf16.mxu0 0
      %680 = vmatpush1.bf16.msra.mxu0 %v578
      %681 = vmatprep.subr.bf16.mxu0 0
      %682 = vmatpush1.bf16.msra.mxu0 %v577
      %683 = vmatprep.subr.bf16.mxu0 0
      %684 = vmatpush1.bf16.msra.mxu0 %v576
      %685 = vmatprep.subr.bf16.mxu0 0
      %686 = vmatpush1.bf16.msra.mxu0 %v575
      %687 = vmatprep.subr.bf16.mxu0 0
      %688 = vmatpush2.bf16.msra.mxu0 %v590
      %689 = vmatprep.subr.bf16.mxu0 0
      %690 = vmatpush2.bf16.msra.mxu0 %v589
      %691 = vmatprep.subr.bf16.mxu0 0
      %692 = vmatpush2.bf16.msra.mxu0 %v588
      %693 = vmatprep.subr.bf16.mxu0 0
      %694 = vmatpush2.bf16.msra.mxu0 %v587
      %695 = vmatprep.subr.bf16.mxu0 0
      %696 = vmatpush2.bf16.msra.mxu0 %v586
      %697 = vmatprep.subr.bf16.mxu0 0
      %698 = vmatpush2.bf16.msra.mxu0 %v585
      %699 = vmatprep.subr.bf16.mxu0 0
      %700 = vmatpush2.bf16.msra.mxu0 %v584
      %701 = vmatprep.subr.bf16.mxu0 0
      %702 = vmatpush2.bf16.msra.mxu0 %v583
      %703 = vmatprep.mubr.bf16.mxu0 %v410
      %704 = vmatmul.mubr.bf16.gmra.mxu0 %v398
      %v705 = vpop.f32.mrf.mxu0
      %v706 = vadd.f32 %v658, %v705
      %v707 = vpop.f32.mrf.mxu0
      %v708 = vpop.f32.mrf.mxu0
      %v709 = vadd.f32 %v661, %v708
      %v710 = vpop.f32.mrf.mxu0
      %711 = vmatprep.mubr.bf16.mxu0 %v422
      %712 = vmatmul.mubr.bf16.gmra.mxu0 %v419
      %v713 = vpop.f32.mrf.mxu0
      %v714 = vadd.f32 %v666, %v713
      %v715 = vpop.f32.mrf.mxu0
      %v716 = vpop.f32.mrf.mxu0
      %v717 = vpop.f32.mrf.mxu0
      %718 = vdwg.mxu0
      %v721 = vunpack.c.l.b16 %v203
      %v722 = vunpack.c.h.b16 %v203
      %v723 = vunpack.c.l.b16 %v204
      %v724 = vunpack.c.h.b16 %v204
      %v725 = vpack.c.b16 %v721, %v721
      %v726 = vpack.c.b16 %v722, %v722
      %v727 = vpack.c.b16 %v723, %v723
      %v728 = vpack.c.b16 %v724, %v724
      %v801 = vunpack.c.l.b16 %v205
      %v802 = vunpack.c.l.b16 %v206
      %v803 = vunpack.c.l.b16 %v207
      %v804 = vunpack.c.l.b16 %v208
      %v805 = vunpack.c.l.b16 %v209
      %v806 = vunpack.c.l.b16 %v210
      %v807 = vunpack.c.l.b16 %v211
      %v808 = vunpack.c.l.b16 %v212
      %v809 = vunpack.c.l.b16 %v213
      %v810 = vunpack.c.l.b16 %v214
      %v811 = vunpack.c.l.b16 %v215
      %v812 = vunpack.c.l.b16 %v216
      %v813 = vunpack.c.l.b16 %v217
      %v814 = vunpack.c.l.b16 %v218
      %v815 = vunpack.c.l.b16 %v219
      %v816 = vunpack.c.l.b16 %v220
      %v817 = vunpack.c.l.b16 %v221
      %v818 = vunpack.c.l.b16 %v222
      %v819 = vunpack.c.l.b16 %v223
      %v820 = vunpack.c.l.b16 %v224
      %v821 = vunpack.c.l.b16 %v225
      %v822 = vunpack.c.l.b16 %v226
      %v823 = vunpack.c.l.b16 %v227
      %v824 = vunpack.c.l.b16 %v228
      %v825 = vunpack.c.l.b16 %v229
      %v826 = vunpack.c.l.b16 %v230
      %v827 = vunpack.c.l.b16 %v231
      %v828 = vunpack.c.l.b16 %v232
      %v829 = vunpack.c.l.b16 %v233
      %v830 = vunpack.c.l.b16 %v234
      %v831 = vunpack.c.l.b16 %v235
      %v832 = vunpack.c.l.b16 %v236
      %v833 = vunpack.c.l.b16 %v237
      %v834 = vunpack.c.l.b16 %v238
      %v835 = vunpack.c.l.b16 %v239
      %v836 = vunpack.c.l.b16 %v240
      %v837 = vunpack.c.l.b16 %v241
      %v838 = vunpack.c.l.b16 %v242
      %v839 = vunpack.c.l.b16 %v243
      %v840 = vunpack.c.l.b16 %v244
      %v841 = vunpack.c.l.b16 %v245
      %v842 = vunpack.c.l.b16 %v246
      %v843 = vunpack.c.l.b16 %v247
      %v844 = vunpack.c.l.b16 %v248
      %v845 = vunpack.c.l.b16 %v249
      %v846 = vunpack.c.l.b16 %v250
      %v847 = vunpack.c.l.b16 %v251
      %v848 = vunpack.c.l.b16 %v252
      %v849 = vunpack.c.l.b16 %v253
      %v850 = vunpack.c.l.b16 %v254
      %v851 = vunpack.c.l.b16 %v255
      %v852 = vunpack.c.l.b16 %v256
      %v853 = vunpack.c.l.b16 %v257
      %v854 = vunpack.c.l.b16 %v258
      %v855 = vunpack.c.l.b16 %v259
      %v856 = vunpack.c.l.b16 %v260
      %v857 = vunpack.c.l.b16 %v261
      %v858 = vunpack.c.l.b16 %v262
      %v859 = vunpack.c.l.b16 %v263
      %v860 = vunpack.c.l.b16 %v264
      %v861 = vunpack.c.l.b16 %v265
      %v862 = vunpack.c.l.b16 %v266
      %v863 = vunpack.c.l.b16 %v267
      %v864 = vunpack.c.l.b16 %v268
      %v865 = vpack.c.b16 %v802, %v801
      %v866 = vpack.c.b16 %v804, %v803
      %v867 = vpack.c.b16 %v806, %v805
      %v868 = vpack.c.b16 %v808, %v807
      %v869 = vpack.c.b16 %v810, %v809
      %v870 = vpack.c.b16 %v812, %v811
      %v871 = vpack.c.b16 %v814, %v813
      %v872 = vpack.c.b16 %v816, %v815
      %v873 = vpack.c.b16 %v818, %v817
      %v874 = vpack.c.b16 %v820, %v819
      %v875 = vpack.c.b16 %v822, %v821
      %v876 = vpack.c.b16 %v824, %v823
      %v877 = vpack.c.b16 %v826, %v825
      %v878 = vpack.c.b16 %v828, %v827
      %v879 = vpack.c.b16 %v830, %v829
      %v880 = vpack.c.b16 %v832, %v831
      %v881 = vpack.c.b16 %v834, %v833
      %v882 = vpack.c.b16 %v836, %v835
      %v883 = vpack.c.b16 %v838, %v837
      %v884 = vpack.c.b16 %v840, %v839
      %v885 = vpack.c.b16 %v842, %v841
      %v886 = vpack.c.b16 %v844, %v843
      %v887 = vpack.c.b16 %v846, %v845
      %v888 = vpack.c.b16 %v848, %v847
      %v889 = vpack.c.b16 %v850, %v849
      %v890 = vpack.c.b16 %v852, %v851
      %v891 = vpack.c.b16 %v854, %v853
      %v892 = vpack.c.b16 %v856, %v855
      %v893 = vpack.c.b16 %v858, %v857
      %v894 = vpack.c.b16 %v860, %v859
      %v895 = vpack.c.b16 %v862, %v861
      %v896 = vpack.c.b16 %v864, %v863
      %929 = vmatprep.subr.bf16.mxu0 0
      %930 = vmatpush1.bf16.msra.mxu0 %v872
      %931 = vmatprep.subr.bf16.mxu0 0
      %932 = vmatpush1.bf16.msra.mxu0 %v871
      %933 = vmatprep.subr.bf16.mxu0 0
      %934 = vmatpush1.bf16.msra.mxu0 %v870
      %935 = vmatprep.subr.bf16.mxu0 0
      %936 = vmatpush1.bf16.msra.mxu0 %v869
      %937 = vmatprep.subr.bf16.mxu0 0
      %938 = vmatpush1.bf16.msra.mxu0 %v868
      %939 = vmatprep.subr.bf16.mxu0 0
      %940 = vmatpush1.bf16.msra.mxu0 %v867
      %941 = vmatprep.subr.bf16.mxu0 0
      %942 = vmatpush1.bf16.msra.mxu0 %v866
      %943 = vmatprep.subr.bf16.mxu0 0
      %944 = vmatpush1.bf16.msra.mxu0 %v865
      %945 = vmatprep.subr.bf16.mxu0 0
      %946 = vmatpush2.bf16.msra.mxu0 %v880
      %947 = vmatprep.subr.bf16.mxu0 0
      %948 = vmatpush2.bf16.msra.mxu0 %v879
      %949 = vmatprep.subr.bf16.mxu0 0
      %950 = vmatpush2.bf16.msra.mxu0 %v878
      %951 = vmatprep.subr.bf16.mxu0 0
      %952 = vmatpush2.bf16.msra.mxu0 %v877
      %953 = vmatprep.subr.bf16.mxu0 0
      %954 = vmatpush2.bf16.msra.mxu0 %v876
      %955 = vmatprep.subr.bf16.mxu0 0
      %956 = vmatpush2.bf16.msra.mxu0 %v875
      %957 = vmatprep.subr.bf16.mxu0 0
      %958 = vmatpush2.bf16.msra.mxu0 %v874
      %959 = vmatprep.subr.bf16.mxu0 0
      %960 = vmatpush2.bf16.msra.mxu0 %v873
      %961 = vmatprep.mubr.bf16.mxu0 %v355
      %962 = vmatmul.mubr.bf16.gmra.mxu0 %v354
      %v963 = vpop.f32.mrf.mxu0
      %v964 = vadd.f32 %v706, %v963
      %v965 = vpop.f32.mrf.mxu0
      %v966 = vpop.f32.mrf.mxu0
      %v967 = vadd.f32 %v709, %v966
      %v968 = vpop.f32.mrf.mxu0
      %969 = vmatprep.mubr.bf16.mxu0 %v726
      %970 = vmatmul.mubr.bf16.gmra.mxu0 %v725
      %v971 = vpop.f32.mrf.mxu0
      %v972 = vadd.f32 %v714, %v971
      %v973 = vpop.f32.mrf.mxu0
      %v974 = vpop.f32.mrf.mxu0
      %v975 = vpop.f32.mrf.mxu0
      %976 = vdwg.mxu0
      %977 = vmatprep.subr.bf16.mxu0 0
      %978 = vmatpush1.bf16.msra.mxu0 %v888
      %979 = vmatprep.subr.bf16.mxu0 0
      %980 = vmatpush1.bf16.msra.mxu0 %v887
      %981 = vmatprep.subr.bf16.mxu0 0
      %982 = vmatpush1.bf16.msra.mxu0 %v886
      %983 = vmatprep.subr.bf16.mxu0 0
      %984 = vmatpush1.bf16.msra.mxu0 %v885
      %985 = vmatprep.subr.bf16.mxu0 0
      %986 = vmatpush1.bf16.msra.mxu0 %v884
      %987 = vmatprep.subr.bf16.mxu0 0
      %988 = vmatpush1.bf16.msra.mxu0 %v883
      %989 = vmatprep.subr.bf16.mxu0 0
      %990 = vmatpush1.bf16.msra.mxu0 %v882
      %991 = vmatprep.subr.bf16.mxu0 0
      %992 = vmatpush1.bf16.msra.mxu0 %v881
      %993 = vmatprep.subr.bf16.mxu0 0
      %994 = vmatpush2.bf16.msra.mxu0 %v896
      %995 = vmatprep.subr.bf16.mxu0 0
      %996 = vmatpush2.bf16.msra.mxu0 %v895
      %997 = vmatprep.subr.bf16.mxu0 0
      %998 = vmatpush2.bf16.msra.mxu0 %v894
      %999 = vmatprep.subr.bf16.mxu0 0
      %1000 = vmatpush2.bf16.msra.mxu0 %v893
      %1001 = vmatprep.subr.bf16.mxu0 0
      %1002 = vmatpush2.bf16.msra.mxu0 %v892
      %1003 = vmatprep.subr.bf16.mxu0 0
      %1004 = vmatpush2.bf16.msra.mxu0 %v891
      %1005 = vmatprep.subr.bf16.mxu0 0
      %1006 = vmatpush2.bf16.msra.mxu0 %v890
      %1007 = vmatprep.subr.bf16.mxu0 0
      %1008 = vmatpush2.bf16.msra.mxu0 %v889
      %1009 = vmatprep.mubr.bf16.mxu0 %v357
      %1010 = vmatmul.mubr.bf16.gmra.mxu0 %v356
      %v1011 = vpop.f32.mrf.mxu0
      %v1012 = vadd.f32 %v964, %v1011
      %v1013 = vpop.f32.mrf.mxu0
      %v1014 = vpop.f32.mrf.mxu0
      %v1015 = vadd.f32 %v967, %v1014
      %v1016 = vpop.f32.mrf.mxu0
      %1017 = vmatprep.mubr.bf16.mxu0 %v728
      %1018 = vmatmul.mubr.bf16.gmra.mxu0 %v727
      %v1019 = vpop.f32.mrf.mxu0
      %v1020 = vadd.f32 %v972, %v1019
      %v1021 = vpop.f32.mrf.mxu0
      %v1022 = vpop.f32.mrf.mxu0
      %v1023 = vpop.f32.mrf.mxu0
      %1024 = vdwg.mxu0
      %v1025 = vld [vmem:[%s192] sm:$0xcc]
      %v1026 = vld [vmem:[%s192 + $0x8] sm:$0xcc]
      %v1027 = vld [vmem:[%s192 + $0x10] sm:$0xff]
      %v1028 = vld [vmem:[%s192 + $0x18] sm:$0xff]
      %v1029 = vld [vmem:[%s192 + $0x20] sm:$0xff]
      %v1030 = vld [vmem:[%s192 + $0x28] sm:$0xff]
      %v1031 = vld [vmem:[%s192 + $0x30] sm:$0x11]
      %v1032 = vld [vmem:[%s192 + $0x38] sm:$0x11]
      %s1033 = scalar_lea.vmem %s1, 512
      %v1034 = vld [vmem:[%s1033] sm:$0xf]
      %v1035 = vld [vmem:[%s1033 + $0x4] sm:$0xf]
      %v1036 = vld [vmem:[%s1033 + $0x8] sm:$0xf]
      %v1037 = vld [vmem:[%s1033 + $0xc] sm:$0xf]
      %v1038 = vld [vmem:[%s1033 + $0x10] sm:$0xf]
      %v1039 = vld [vmem:[%s1033 + $0x14] sm:$0xf]
      %v1040 = vld [vmem:[%s1033 + $0x18] sm:$0xf]
      %v1041 = vld [vmem:[%s1033 + $0x1c] sm:$0xf]
      %v1042 = vld [vmem:[%s1033 + $0x20] sm:$0xf]
      %v1043 = vld [vmem:[%s1033 + $0x24] sm:$0xf]
      %v1044 = vld [vmem:[%s1033 + $0x28] sm:$0xf]
      %v1045 = vld [vmem:[%s1033 + $0x2c] sm:$0xf]
      %v1046 = vld [vmem:[%s1033 + $0x30] sm:$0xf]
      %v1047 = vld [vmem:[%s1033 + $0x34] sm:$0xf]
      %v1048 = vld [vmem:[%s1033 + $0x38] sm:$0xf]
      %v1049 = vld [vmem:[%s1033 + $0x3c] sm:$0xf]
      %v1050 = vld [vmem:[%s1033 + $0x40] sm:$0xf]
      %v1051 = vld [vmem:[%s1033 + $0x44] sm:$0xf]
      %v1052 = vld [vmem:[%s1033 + $0x48] sm:$0xf]
      %v1053 = vld [vmem:[%s1033 + $0x4c] sm:$0xf]
      %v1054 = vld [vmem:[%s1033 + $0x50] sm:$0xf]
      %v1055 = vld [vmem:[%s1033 + $0x54] sm:$0xf]
      %v1056 = vld [vmem:[%s1033 + $0x58] sm:$0xf]
      %v1057 = vld [vmem:[%s1033 + $0x5c] sm:$0xf]
      %v1058 = vld [vmem:[%s1033 + $0x60] sm:$0xf]
      %v1059 = vld [vmem:[%s1033 + $0x64] sm:$0xf]
      %v1060 = vld [vmem:[%s1033 + $0x68] sm:$0xf]
      %v1061 = vld [vmem:[%s1033 + $0x6c] sm:$0xf]
      %v1062 = vld [vmem:[%s1033 + $0x70] sm:$0xf]
      %v1063 = vld [vmem:[%s1033 + $0x74] sm:$0xf]
      %v1064 = vld [vmem:[%s1033 + $0x78] sm:$0xf]
      %v1065 = vld [vmem:[%s1033 + $0x7c] sm:$0xf]
      %v1066 = vld [vmem:[%s1033 + $0x80] sm:$0xf]
      %v1067 = vld [vmem:[%s1033 + $0x84] sm:$0xf]
      %v1068 = vld [vmem:[%s1033 + $0x88] sm:$0xf]
      %v1069 = vld [vmem:[%s1033 + $0x8c] sm:$0xf]
      %v1070 = vld [vmem:[%s1033 + $0x90] sm:$0xf]
      %v1071 = vld [vmem:[%s1033 + $0x94] sm:$0xf]
      %v1072 = vld [vmem:[%s1033 + $0x98] sm:$0xf]
      %v1073 = vld [vmem:[%s1033 + $0x9c] sm:$0xf]
      %v1074 = vld [vmem:[%s1033 + $0xa0] sm:$0xf]
      %v1075 = vld [vmem:[%s1033 + $0xa4] sm:$0xf]
      %v1076 = vld [vmem:[%s1033 + $0xa8] sm:$0xf]
      %v1077 = vld [vmem:[%s1033 + $0xac] sm:$0xf]
      %v1078 = vld [vmem:[%s1033 + $0xb0] sm:$0xf]
      %v1079 = vld [vmem:[%s1033 + $0xb4] sm:$0xf]
      %v1080 = vld [vmem:[%s1033 + $0xb8] sm:$0xf]
      %v1081 = vld [vmem:[%s1033 + $0xbc] sm:$0xf]
      %v1082 = vld [vmem:[%s1033 + $0xc0] sm:$0xf]
      %v1083 = vld [vmem:[%s1033 + $0xc4] sm:$0xf]
      %v1084 = vld [vmem:[%s1033 + $0xc8] sm:$0xf]
      %v1085 = vld [vmem:[%s1033 + $0xcc] sm:$0xf]
      %v1086 = vld [vmem:[%s1033 + $0xd0] sm:$0xf]
      %v1087 = vld [vmem:[%s1033 + $0xd4] sm:$0xf]
      %v1088 = vld [vmem:[%s1033 + $0xd8] sm:$0xf]
      %v1089 = vld [vmem:[%s1033 + $0xdc] sm:$0xf]
      %v1090 = vld [vmem:[%s1033 + $0xe0] sm:$0xf]
      %v1091 = vld [vmem:[%s1033 + $0xe4] sm:$0xf]
      %v1092 = vld [vmem:[%s1033 + $0xe8] sm:$0xf]
      %v1093 = vld [vmem:[%s1033 + $0xec] sm:$0xf]
      %v1094 = vld [vmem:[%s1033 + $0xf0] sm:$0xf]
      %v1095 = vld [vmem:[%s1033 + $0xf4] sm:$0xf]
      %v1096 = vld [vmem:[%s1033 + $0xf8] sm:$0xf]
      %v1097 = vld [vmem:[%s1033 + $0xfc] sm:$0xf]
      %v1106 = vunpack.c.l.b16 %v1025
      %v1107 = vunpack.c.h.b16 %v1025
      %v1108 = vunpack.c.l.b16 %v1026
      %v1109 = vunpack.c.h.b16 %v1026
      %v1110 = vunpack.c.l.b16 %v1027
      %v1111 = vunpack.c.h.b16 %v1027
      %v1112 = vunpack.c.l.b16 %v1028
      %v1113 = vunpack.c.h.b16 %v1028
      %v1114 = vunpack.c.l.b16 %v1029
      %v1115 = vunpack.c.h.b16 %v1029
      %v1116 = vunpack.c.l.b16 %v1030
      %v1117 = vunpack.c.h.b16 %v1030
      %v1118 = vunpack.c.l.b16 %v1031
      %v1119 = vunpack.c.h.b16 %v1031
      %v1120 = vunpack.c.l.b16 %v1032
      %v1121 = vunpack.c.h.b16 %v1032
      %v1122 = vpack.c.b16 %v1110, %v1106
      %v1123 = vpack.c.b16 %v1111, %v1107
      %v1124 = vpack.c.b16 %v1112, %v1108
      %v1125 = vpack.c.b16 %v1113, %v1109
      %v1126 = vpack.c.b16 %v1118, %v1114
      %v1127 = vpack.c.b16 %v1119, %v1115
      %v1128 = vpack.c.b16 %v1120, %v1116
      %v1129 = vpack.c.b16 %v1121, %v1117
      %vm1130 = vsmask.f32 5376
      %v1132 = vshrl.u32 %v1122, 16
      %v1134 = vrot.slane %v1132, 2
      %v1135 = vshll.u32 %v1122, 16
      %v1137 = vrot.slane %v1135, 3
      %v1138 = vor.u32 %v1134, %v1137
      %v1140 = vshrl.u32 %v1126, 16
      %v1142 = vrot.slane %v1140, 2
      %v1143 = vshll.u32 %v1126, 16
      %v1145 = vrot.slane %v1143, 3
      %v1146 = vor.u32 %v1142, %v1145
      %v1147 = vsel %vm1130, %v1138, %v1146
      %v1149 = vshrl.u32 %v1123, 16
      %v1151 = vrot.slane %v1149, 2
      %v1152 = vshll.u32 %v1123, 16
      %v1154 = vrot.slane %v1152, 3
      %v1155 = vor.u32 %v1151, %v1154
      %v1157 = vshrl.u32 %v1127, 16
      %v1159 = vrot.slane %v1157, 2
      %v1160 = vshll.u32 %v1127, 16
      %v1162 = vrot.slane %v1160, 3
      %v1163 = vor.u32 %v1159, %v1162
      %v1164 = vsel %vm1130, %v1155, %v1163
      %v1166 = vshrl.u32 %v1124, 16
      %v1168 = vrot.slane %v1166, 2
      %v1169 = vshll.u32 %v1124, 16
      %v1171 = vrot.slane %v1169, 3
      %v1172 = vor.u32 %v1168, %v1171
      %v1174 = vshrl.u32 %v1128, 16
      %v1176 = vrot.slane %v1174, 2
      %v1177 = vshll.u32 %v1128, 16
      %v1179 = vrot.slane %v1177, 3
      %v1180 = vor.u32 %v1176, %v1179
      %v1181 = vsel %vm1130, %v1172, %v1180
      %v1183 = vshrl.u32 %v1125, 16
      %v1185 = vrot.slane %v1183, 2
      %v1186 = vshll.u32 %v1125, 16
      %v1188 = vrot.slane %v1186, 3
      %v1189 = vor.u32 %v1185, %v1188
      %v1191 = vshrl.u32 %v1129, 16
      %v1193 = vrot.slane %v1191, 2
      %v1194 = vshll.u32 %v1129, 16
      %v1196 = vrot.slane %v1194, 3
      %v1197 = vor.u32 %v1193, %v1196
      %v1198 = vsel %vm1130, %v1189, %v1197
      %v1271 = vunpack.c.l.b16 %v1034
      %v1272 = vunpack.c.l.b16 %v1035
      %v1273 = vunpack.c.l.b16 %v1036
      %v1274 = vunpack.c.l.b16 %v1037
      %v1275 = vunpack.c.l.b16 %v1038
      %v1276 = vunpack.c.l.b16 %v1039
      %v1277 = vunpack.c.l.b16 %v1040
      %v1278 = vunpack.c.l.b16 %v1041
      %v1279 = vunpack.c.l.b16 %v1042
      %v1280 = vunpack.c.l.b16 %v1043
      %v1281 = vunpack.c.l.b16 %v1044
      %v1282 = vunpack.c.l.b16 %v1045
      %v1283 = vunpack.c.l.b16 %v1046
      %v1284 = vunpack.c.l.b16 %v1047
      %v1285 = vunpack.c.l.b16 %v1048
      %v1286 = vunpack.c.l.b16 %v1049
      %v1287 = vunpack.c.l.b16 %v1050
      %v1288 = vunpack.c.l.b16 %v1051
      %v1289 = vunpack.c.l.b16 %v1052
      %v1290 = vunpack.c.l.b16 %v1053
      %v1291 = vunpack.c.l.b16 %v1054
      %v1292 = vunpack.c.l.b16 %v1055
      %v1293 = vunpack.c.l.b16 %v1056
      %v1294 = vunpack.c.l.b16 %v1057
      %v1295 = vunpack.c.l.b16 %v1058
      %v1296 = vunpack.c.l.b16 %v1059
      %v1297 = vunpack.c.l.b16 %v1060
      %v1298 = vunpack.c.l.b16 %v1061
      %v1299 = vunpack.c.l.b16 %v1062
      %v1300 = vunpack.c.l.b16 %v1063
      %v1301 = vunpack.c.l.b16 %v1064
      %v1302 = vunpack.c.l.b16 %v1065
      %v1303 = vunpack.c.l.b16 %v1066
      %v1304 = vunpack.c.l.b16 %v1067
      %v1305 = vunpack.c.l.b16 %v1068
      %v1306 = vunpack.c.l.b16 %v1069
      %v1307 = vunpack.c.l.b16 %v1070
      %v1308 = vunpack.c.l.b16 %v1071
      %v1309 = vunpack.c.l.b16 %v1072
      %v1310 = vunpack.c.l.b16 %v1073
      %v1311 = vunpack.c.l.b16 %v1074
      %v1312 = vunpack.c.l.b16 %v1075
      %v1313 = vunpack.c.l.b16 %v1076
      %v1314 = vunpack.c.l.b16 %v1077
      %v1315 = vunpack.c.l.b16 %v1078
      %v1316 = vunpack.c.l.b16 %v1079
      %v1317 = vunpack.c.l.b16 %v1080
      %v1318 = vunpack.c.l.b16 %v1081
      %v1319 = vunpack.c.l.b16 %v1082
      %v1320 = vunpack.c.l.b16 %v1083
      %v1321 = vunpack.c.l.b16 %v1084
      %v1322 = vunpack.c.l.b16 %v1085
      %v1323 = vunpack.c.l.b16 %v1086
      %v1324 = vunpack.c.l.b16 %v1087
      %v1325 = vunpack.c.l.b16 %v1088
      %v1326 = vunpack.c.l.b16 %v1089
      %v1327 = vunpack.c.l.b16 %v1090
      %v1328 = vunpack.c.l.b16 %v1091
      %v1329 = vunpack.c.l.b16 %v1092
      %v1330 = vunpack.c.l.b16 %v1093
      %v1331 = vunpack.c.l.b16 %v1094
      %v1332 = vunpack.c.l.b16 %v1095
      %v1333 = vunpack.c.l.b16 %v1096
      %v1334 = vunpack.c.l.b16 %v1097
      %v1335 = vpack.c.b16 %v1272, %v1271
      %v1336 = vpack.c.b16 %v1274, %v1273
      %v1337 = vpack.c.b16 %v1276, %v1275
      %v1338 = vpack.c.b16 %v1278, %v1277
      %v1339 = vpack.c.b16 %v1280, %v1279
      %v1340 = vpack.c.b16 %v1282, %v1281
      %v1341 = vpack.c.b16 %v1284, %v1283
      %v1342 = vpack.c.b16 %v1286, %v1285
      %v1343 = vpack.c.b16 %v1288, %v1287
      %v1344 = vpack.c.b16 %v1290, %v1289
      %v1345 = vpack.c.b16 %v1292, %v1291
      %v1346 = vpack.c.b16 %v1294, %v1293
      %v1347 = vpack.c.b16 %v1296, %v1295
      %v1348 = vpack.c.b16 %v1298, %v1297
      %v1349 = vpack.c.b16 %v1300, %v1299
      %v1350 = vpack.c.b16 %v1302, %v1301
      %v1351 = vpack.c.b16 %v1304, %v1303
      %v1352 = vpack.c.b16 %v1306, %v1305
      %v1353 = vpack.c.b16 %v1308, %v1307
      %v1354 = vpack.c.b16 %v1310, %v1309
      %v1355 = vpack.c.b16 %v1312, %v1311
      %v1356 = vpack.c.b16 %v1314, %v1313
      %v1357 = vpack.c.b16 %v1316, %v1315
      %v1358 = vpack.c.b16 %v1318, %v1317
      %v1359 = vpack.c.b16 %v1320, %v1319
      %v1360 = vpack.c.b16 %v1322, %v1321
      %v1361 = vpack.c.b16 %v1324, %v1323
      %v1362 = vpack.c.b16 %v1326, %v1325
      %v1363 = vpack.c.b16 %v1328, %v1327
      %v1364 = vpack.c.b16 %v1330, %v1329
      %v1365 = vpack.c.b16 %v1332, %v1331
      %v1366 = vpack.c.b16 %v1334, %v1333
      %1399 = vmatprep.subr.bf16.mxu0 0
      %1400 = vmatpush1.bf16.msra.mxu0 %v1342
      %1401 = vmatprep.subr.bf16.mxu0 0
      %1402 = vmatpush1.bf16.msra.mxu0 %v1341
      %1403 = vmatprep.subr.bf16.mxu0 0
      %1404 = vmatpush1.bf16.msra.mxu0 %v1340
      %1405 = vmatprep.subr.bf16.mxu0 0
      %1406 = vmatpush1.bf16.msra.mxu0 %v1339
      %1407 = vmatprep.subr.bf16.mxu0 0
      %1408 = vmatpush1.bf16.msra.mxu0 %v1338
      %1409 = vmatprep.subr.bf16.mxu0 0
      %1410 = vmatpush1.bf16.msra.mxu0 %v1337
      %1411 = vmatprep.subr.bf16.mxu0 0
      %1412 = vmatpush1.bf16.msra.mxu0 %v1336
      %1413 = vmatprep.subr.bf16.mxu0 0
      %1414 = vmatpush1.bf16.msra.mxu0 %v1335
      %1415 = vmatprep.subr.bf16.mxu0 0
      %1416 = vmatpush2.bf16.msra.mxu0 %v1350
      %1417 = vmatprep.subr.bf16.mxu0 0
      %1418 = vmatpush2.bf16.msra.mxu0 %v1349
      %1419 = vmatprep.subr.bf16.mxu0 0
      %1420 = vmatpush2.bf16.msra.mxu0 %v1348
      %1421 = vmatprep.subr.bf16.mxu0 0
      %1422 = vmatpush2.bf16.msra.mxu0 %v1347
      %1423 = vmatprep.subr.bf16.mxu0 0
      %1424 = vmatpush2.bf16.msra.mxu0 %v1346
      %1425 = vmatprep.subr.bf16.mxu0 0
      %1426 = vmatpush2.bf16.msra.mxu0 %v1345
      %1427 = vmatprep.subr.bf16.mxu0 0
      %1428 = vmatpush2.bf16.msra.mxu0 %v1344
      %1429 = vmatprep.subr.bf16.mxu0 0
      %1430 = vmatpush2.bf16.msra.mxu0 %v1343
      %1431 = vmatprep.mubr.bf16.mxu0 %v1164
      %1432 = vmatmul.mubr.bf16.gmra.mxu0 %v1147
      %v1433 = vpop.f32.mrf.mxu0
      %v1434 = vadd.f32 0.0, %v1433
      %v1435 = vpop.f32.mrf.mxu0
      %v1436 = vpop.f32.mrf.mxu0
      %v1437 = vadd.f32 0.0, %v1436
      %v1438 = vpop.f32.mrf.mxu0
      %1439 = vmatprep.mubr.bf16.mxu0 %v1163
      %1440 = vmatmul.mubr.bf16.gmra.mxu0 %v1146
      %v1441 = vpop.f32.mrf.mxu0
      %v1442 = vadd.f32 0.0, %v1441
      %v1443 = vpop.f32.mrf.mxu0
      %v1444 = vpop.f32.mrf.mxu0
      %v1445 = vpop.f32.mrf.mxu0
      %1446 = vdwg.mxu0
      %1447 = vmatprep.subr.bf16.mxu0 0
      %1448 = vmatpush1.bf16.msra.mxu0 %v1358
      %1449 = vmatprep.subr.bf16.mxu0 0
      %1450 = vmatpush1.bf16.msra.mxu0 %v1357
      %1451 = vmatprep.subr.bf16.mxu0 0
      %1452 = vmatpush1.bf16.msra.mxu0 %v1356
      %1453 = vmatprep.subr.bf16.mxu0 0
      %1454 = vmatpush1.bf16.msra.mxu0 %v1355
      %1455 = vmatprep.subr.bf16.mxu0 0
      %1456 = vmatpush1.bf16.msra.mxu0 %v1354
      %1457 = vmatprep.subr.bf16.mxu0 0
      %1458 = vmatpush1.bf16.msra.mxu0 %v1353
      %1459 = vmatprep.subr.bf16.mxu0 0
      %1460 = vmatpush1.bf16.msra.mxu0 %v1352
      %1461 = vmatprep.subr.bf16.mxu0 0
      %1462 = vmatpush1.bf16.msra.mxu0 %v1351
      %1463 = vmatprep.subr.bf16.mxu0 0
      %1464 = vmatpush2.bf16.msra.mxu0 %v1366
      %1465 = vmatprep.subr.bf16.mxu0 0
      %1466 = vmatpush2.bf16.msra.mxu0 %v1365
      %1467 = vmatprep.subr.bf16.mxu0 0
      %1468 = vmatpush2.bf16.msra.mxu0 %v1364
      %1469 = vmatprep.subr.bf16.mxu0 0
      %1470 = vmatpush2.bf16.msra.mxu0 %v1363
      %1471 = vmatprep.subr.bf16.mxu0 0
      %1472 = vmatpush2.bf16.msra.mxu0 %v1362
      %1473 = vmatprep.subr.bf16.mxu0 0
      %1474 = vmatpush2.bf16.msra.mxu0 %v1361
      %1475 = vmatprep.subr.bf16.mxu0 0
      %1476 = vmatpush2.bf16.msra.mxu0 %v1360
      %1477 = vmatprep.subr.bf16.mxu0 0
      %1478 = vmatpush2.bf16.msra.mxu0 %v1359
      %1479 = vmatprep.mubr.bf16.mxu0 %v1198
      %1480 = vmatmul.mubr.bf16.gmra.mxu0 %v1181
      %v1481 = vpop.f32.mrf.mxu0
      %v1482 = vadd.f32 %v1434, %v1481
      %v1483 = vpop.f32.mrf.mxu0
      %v1484 = vpop.f32.mrf.mxu0
      %v1485 = vadd.f32 %v1437, %v1484
      %v1486 = vpop.f32.mrf.mxu0
      %1487 = vmatprep.mubr.bf16.mxu0 %v1197
      %1488 = vmatmul.mubr.bf16.gmra.mxu0 %v1180
      %v1489 = vpop.f32.mrf.mxu0
      %v1490 = vadd.f32 %v1442, %v1489
      %v1491 = vpop.f32.mrf.mxu0
      %v1492 = vpop.f32.mrf.mxu0
      %v1493 = vpop.f32.mrf.mxu0
      %1494 = vdwg.mxu0
      %v1495 = vadd.f32 %v1012, %v1482
      %v1496 = vadd.f32 %v1015, %v1485
      %v1497 = vadd.f32 %v1020, %v1490
      %v1498 = vld [vmem:[%s192] sm:$0x88]
      %v1499 = vld [vmem:[%s192 + $0x8] sm:$0x88]
      %s1500 = scalar_lea.vmem %s1, 768
      %v1501 = vld [vmem:[%s1500] sm:$0xf]
      %v1502 = vld [vmem:[%s1500 + $0x4] sm:$0xf]
      %v1503 = vld [vmem:[%s1500 + $0x8] sm:$0xf]
      %v1504 = vld [vmem:[%s1500 + $0xc] sm:$0xf]
      %v1505 = vld [vmem:[%s1500 + $0x10] sm:$0xf]
      %v1506 = vld [vmem:[%s1500 + $0x14] sm:$0xf]
      %v1507 = vld [vmem:[%s1500 + $0x18] sm:$0xf]
      %v1508 = vld [vmem:[%s1500 + $0x1c] sm:$0xf]
      %v1509 = vld [vmem:[%s1500 + $0x20] sm:$0xf]
      %v1510 = vld [vmem:[%s1500 + $0x24] sm:$0xf]
      %v1511 = vld [vmem:[%s1500 + $0x28] sm:$0xf]
      %v1512 = vld [vmem:[%s1500 + $0x2c] sm:$0xf]
      %v1513 = vld [vmem:[%s1500 + $0x30] sm:$0xf]
      %v1514 = vld [vmem:[%s1500 + $0x34] sm:$0xf]
      %v1515 = vld [vmem:[%s1500 + $0x38] sm:$0xf]
      %v1516 = vld [vmem:[%s1500 + $0x3c] sm:$0xf]
      %v1517 = vld [vmem:[%s1500 + $0x40] sm:$0xf]
      %v1518 = vld [vmem:[%s1500 + $0x44] sm:$0xf]
      %v1519 = vld [vmem:[%s1500 + $0x48] sm:$0xf]
      %v1520 = vld [vmem:[%s1500 + $0x4c] sm:$0xf]
      %v1521 = vld [vmem:[%s1500 + $0x50] sm:$0xf]
      %v1522 = vld [vmem:[%s1500 + $0x54] sm:$0xf]
      %v1523 = vld [vmem:[%s1500 + $0x58] sm:$0xf]
      %v1524 = vld [vmem:[%s1500 + $0x5c] sm:$0xf]
      %v1525 = vld [vmem:[%s1500 + $0x60] sm:$0xf]
      %v1526 = vld [vmem:[%s1500 + $0x64] sm:$0xf]
      %v1527 = vld [vmem:[%s1500 + $0x68] sm:$0xf]
      %v1528 = vld [vmem:[%s1500 + $0x6c] sm:$0xf]
      %v1529 = vld [vmem:[%s1500 + $0x70] sm:$0xf]
      %v1530 = vld [vmem:[%s1500 + $0x74] sm:$0xf]
      %v1531 = vld [vmem:[%s1500 + $0x78] sm:$0xf]
      %v1532 = vld [vmem:[%s1500 + $0x7c] sm:$0xf]
      %v1533 = vld [vmem:[%s1500 + $0x80] sm:$0xf]
      %v1534 = vld [vmem:[%s1500 + $0x84] sm:$0xf]
      %v1535 = vld [vmem:[%s1500 + $0x88] sm:$0xf]
      %v1536 = vld [vmem:[%s1500 + $0x8c] sm:$0xf]
      %v1537 = vld [vmem:[%s1500 + $0x90] sm:$0xf]
      %v1538 = vld [vmem:[%s1500 + $0x94] sm:$0xf]
      %v1539 = vld [vmem:[%s1500 + $0x98] sm:$0xf]
      %v1540 = vld [vmem:[%s1500 + $0x9c] sm:$0xf]
      %v1541 = vld [vmem:[%s1500 + $0xa0] sm:$0xf]
      %v1542 = vld [vmem:[%s1500 + $0xa4] sm:$0xf]
      %v1543 = vld [vmem:[%s1500 + $0xa8] sm:$0xf]
      %v1544 = vld [vmem:[%s1500 + $0xac] sm:$0xf]
      %v1545 = vld [vmem:[%s1500 + $0xb0] sm:$0xf]
      %v1546 = vld [vmem:[%s1500 + $0xb4] sm:$0xf]
      %v1547 = vld [vmem:[%s1500 + $0xb8] sm:$0xf]
      %v1548 = vld [vmem:[%s1500 + $0xbc] sm:$0xf]
      %v1549 = vld [vmem:[%s1500 + $0xc0] sm:$0xf]
      %v1550 = vld [vmem:[%s1500 + $0xc4] sm:$0xf]
      %v1551 = vld [vmem:[%s1500 + $0xc8] sm:$0xf]
      %v1552 = vld [vmem:[%s1500 + $0xcc] sm:$0xf]
      %v1553 = vld [vmem:[%s1500 + $0xd0] sm:$0xf]
      %v1554 = vld [vmem:[%s1500 + $0xd4] sm:$0xf]
      %v1555 = vld [vmem:[%s1500 + $0xd8] sm:$0xf]
      %v1556 = vld [vmem:[%s1500 + $0xdc] sm:$0xf]
      %v1557 = vld [vmem:[%s1500 + $0xe0] sm:$0xf]
      %v1558 = vld [vmem:[%s1500 + $0xe4] sm:$0xf]
      %v1559 = vld [vmem:[%s1500 + $0xe8] sm:$0xf]
      %v1560 = vld [vmem:[%s1500 + $0xec] sm:$0xf]
      %v1561 = vld [vmem:[%s1500 + $0xf0] sm:$0xf]
      %v1562 = vld [vmem:[%s1500 + $0xf4] sm:$0xf]
      %v1563 = vld [vmem:[%s1500 + $0xf8] sm:$0xf]
      %v1564 = vld [vmem:[%s1500 + $0xfc] sm:$0xf]
      %v1567 = vunpack.c.l.b16 %v1498
      %v1568 = vunpack.c.h.b16 %v1498
      %v1569 = vunpack.c.l.b16 %v1499
      %v1570 = vunpack.c.h.b16 %v1499
      %v1571 = vpack.c.b16 %v1110, %v1567
      %v1572 = vpack.c.b16 %v1111, %v1568
      %v1573 = vpack.c.b16 %v1112, %v1569
      %v1574 = vpack.c.b16 %v1113, %v1570
      %vm1575 = vcmask 1044480
      %v1576 = vrot.slane %v1571, 3
      %v1577 = vrot.slane %v1126, 3
      %v1578 = vsel %vm1575, %v1576, %v1577
      %v1579 = vrot.slane %v1572, 3
      %v1580 = vrot.slane %v1127, 3
      %v1581 = vsel %vm1575, %v1579, %v1580
      %v1582 = vrot.slane %v1573, 3
      %v1583 = vrot.slane %v1128, 3
      %v1584 = vsel %vm1575, %v1582, %v1583
      %v1585 = vrot.slane %v1574, 3
      %v1586 = vrot.slane %v1129, 3
      %v1587 = vsel %vm1575, %v1585, %v1586
      %v1660 = vunpack.c.l.b16 %v1501
      %v1661 = vunpack.c.l.b16 %v1502
      %v1662 = vunpack.c.l.b16 %v1503
      %v1663 = vunpack.c.l.b16 %v1504
      %v1664 = vunpack.c.l.b16 %v1505
      %v1665 = vunpack.c.l.b16 %v1506
      %v1666 = vunpack.c.l.b16 %v1507
      %v1667 = vunpack.c.l.b16 %v1508
      %v1668 = vunpack.c.l.b16 %v1509
      %v1669 = vunpack.c.l.b16 %v1510
      %v1670 = vunpack.c.l.b16 %v1511
      %v1671 = vunpack.c.l.b16 %v1512
      %v1672 = vunpack.c.l.b16 %v1513
      %v1673 = vunpack.c.l.b16 %v1514
      %v1674 = vunpack.c.l.b16 %v1515
      %v1675 = vunpack.c.l.b16 %v1516
      %v1676 = vunpack.c.l.b16 %v1517
      %v1677 = vunpack.c.l.b16 %v1518
      %v1678 = vunpack.c.l.b16 %v1519
      %v1679 = vunpack.c.l.b16 %v1520
      %v1680 = vunpack.c.l.b16 %v1521
      %v1681 = vunpack.c.l.b16 %v1522
      %v1682 = vunpack.c.l.b16 %v1523
      %v1683 = vunpack.c.l.b16 %v1524
      %v1684 = vunpack.c.l.b16 %v1525
      %v1685 = vunpack.c.l.b16 %v1526
      %v1686 = vunpack.c.l.b16 %v1527
      %v1687 = vunpack.c.l.b16 %v1528
      %v1688 = vunpack.c.l.b16 %v1529
      %v1689 = vunpack.c.l.b16 %v1530
      %v1690 = vunpack.c.l.b16 %v1531
      %v1691 = vunpack.c.l.b16 %v1532
      %v1692 = vunpack.c.l.b16 %v1533
      %v1693 = vunpack.c.l.b16 %v1534
      %v1694 = vunpack.c.l.b16 %v1535
      %v1695 = vunpack.c.l.b16 %v1536
      %v1696 = vunpack.c.l.b16 %v1537
      %v1697 = vunpack.c.l.b16 %v1538
      %v1698 = vunpack.c.l.b16 %v1539
      %v1699 = vunpack.c.l.b16 %v1540
      %v1700 = vunpack.c.l.b16 %v1541
      %v1701 = vunpack.c.l.b16 %v1542
      %v1702 = vunpack.c.l.b16 %v1543
      %v1703 = vunpack.c.l.b16 %v1544
      %v1704 = vunpack.c.l.b16 %v1545
      %v1705 = vunpack.c.l.b16 %v1546
      %v1706 = vunpack.c.l.b16 %v1547
      %v1707 = vunpack.c.l.b16 %v1548
      %v1708 = vunpack.c.l.b16 %v1549
      %v1709 = vunpack.c.l.b16 %v1550
      %v1710 = vunpack.c.l.b16 %v1551
      %v1711 = vunpack.c.l.b16 %v1552
      %v1712 = vunpack.c.l.b16 %v1553
      %v1713 = vunpack.c.l.b16 %v1554
      %v1714 = vunpack.c.l.b16 %v1555
      %v1715 = vunpack.c.l.b16 %v1556
      %v1716 = vunpack.c.l.b16 %v1557
      %v1717 = vunpack.c.l.b16 %v1558
      %v1718 = vunpack.c.l.b16 %v1559
      %v1719 = vunpack.c.l.b16 %v1560
      %v1720 = vunpack.c.l.b16 %v1561
      %v1721 = vunpack.c.l.b16 %v1562
      %v1722 = vunpack.c.l.b16 %v1563
      %v1723 = vunpack.c.l.b16 %v1564
      %v1724 = vpack.c.b16 %v1661, %v1660
      %v1725 = vpack.c.b16 %v1663, %v1662
      %v1726 = vpack.c.b16 %v1665, %v1664
      %v1727 = vpack.c.b16 %v1667, %v1666
      %v1728 = vpack.c.b16 %v1669, %v1668
      %v1729 = vpack.c.b16 %v1671, %v1670
      %v1730 = vpack.c.b16 %v1673, %v1672
      %v1731 = vpack.c.b16 %v1675, %v1674
      %v1732 = vpack.c.b16 %v1677, %v1676
      %v1733 = vpack.c.b16 %v1679, %v1678
      %v1734 = vpack.c.b16 %v1681, %v1680
      %v1735 = vpack.c.b16 %v1683, %v1682
      %v1736 = vpack.c.b16 %v1685, %v1684
      %v1737 = vpack.c.b16 %v1687, %v1686
      %v1738 = vpack.c.b16 %v1689, %v1688
      %v1739 = vpack.c.b16 %v1691, %v1690
      %v1740 = vpack.c.b16 %v1693, %v1692
      %v1741 = vpack.c.b16 %v1695, %v1694
      %v1742 = vpack.c.b16 %v1697, %v1696
      %v1743 = vpack.c.b16 %v1699, %v1698
      %v1744 = vpack.c.b16 %v1701, %v1700
      %v1745 = vpack.c.b16 %v1703, %v1702
      %v1746 = vpack.c.b16 %v1705, %v1704
      %v1747 = vpack.c.b16 %v1707, %v1706
      %v1748 = vpack.c.b16 %v1709, %v1708
      %v1749 = vpack.c.b16 %v1711, %v1710
      %v1750 = vpack.c.b16 %v1713, %v1712
      %v1751 = vpack.c.b16 %v1715, %v1714
      %v1752 = vpack.c.b16 %v1717, %v1716
      %v1753 = vpack.c.b16 %v1719, %v1718
      %v1754 = vpack.c.b16 %v1721, %v1720
      %v1755 = vpack.c.b16 %v1723, %v1722
      %1788 = vmatprep.subr.bf16.mxu0 0
      %1789 = vmatpush1.bf16.msra.mxu0 %v1731
      %1790 = vmatprep.subr.bf16.mxu0 0
      %1791 = vmatpush1.bf16.msra.mxu0 %v1730
      %1792 = vmatprep.subr.bf16.mxu0 0
      %1793 = vmatpush1.bf16.msra.mxu0 %v1729
      %1794 = vmatprep.subr.bf16.mxu0 0
      %1795 = vmatpush1.bf16.msra.mxu0 %v1728
      %1796 = vmatprep.subr.bf16.mxu0 0
      %1797 = vmatpush1.bf16.msra.mxu0 %v1727
      %1798 = vmatprep.subr.bf16.mxu0 0
      %1799 = vmatpush1.bf16.msra.mxu0 %v1726
      %1800 = vmatprep.subr.bf16.mxu0 0
      %1801 = vmatpush1.bf16.msra.mxu0 %v1725
      %1802 = vmatprep.subr.bf16.mxu0 0
      %1803 = vmatpush1.bf16.msra.mxu0 %v1724
      %1804 = vmatprep.subr.bf16.mxu0 0
      %1805 = vmatpush2.bf16.msra.mxu0 %v1739
      %1806 = vmatprep.subr.bf16.mxu0 0
      %1807 = vmatpush2.bf16.msra.mxu0 %v1738
      %1808 = vmatprep.subr.bf16.mxu0 0
      %1809 = vmatpush2.bf16.msra.mxu0 %v1737
      %1810 = vmatprep.subr.bf16.mxu0 0
      %1811 = vmatpush2.bf16.msra.mxu0 %v1736
      %1812 = vmatprep.subr.bf16.mxu0 0
      %1813 = vmatpush2.bf16.msra.mxu0 %v1735
      %1814 = vmatprep.subr.bf16.mxu0 0
      %1815 = vmatpush2.bf16.msra.mxu0 %v1734
      %1816 = vmatprep.subr.bf16.mxu0 0
      %1817 = vmatpush2.bf16.msra.mxu0 %v1733
      %1818 = vmatprep.subr.bf16.mxu0 0
      %1819 = vmatpush2.bf16.msra.mxu0 %v1732
      %1820 = vmatprep.mubr.bf16.mxu0 %v1581
      %1821 = vmatmul.mubr.bf16.gmra.mxu0 %v1578
      %v1822 = vpop.f32.mrf.mxu0
      %v1823 = vadd.f32 0.0, %v1822
      %v1824 = vpop.f32.mrf.mxu0
      %v1825 = vpop.f32.mrf.mxu0
      %v1826 = vadd.f32 0.0, %v1825
      %v1827 = vpop.f32.mrf.mxu0
      %1828 = vmatprep.mubr.bf16.mxu0 %v1580
      %1829 = vmatmul.mubr.bf16.gmra.mxu0 %v1577
      %v1830 = vpop.f32.mrf.mxu0
      %v1831 = vadd.f32 0.0, %v1830
      %v1832 = vpop.f32.mrf.mxu0
      %v1833 = vpop.f32.mrf.mxu0
      %v1834 = vpop.f32.mrf.mxu0
      %1835 = vdwg.mxu0
      %1836 = vmatprep.subr.bf16.mxu0 0
      %1837 = vmatpush1.bf16.msra.mxu0 %v1747
      %1838 = vmatprep.subr.bf16.mxu0 0
      %1839 = vmatpush1.bf16.msra.mxu0 %v1746
      %1840 = vmatprep.subr.bf16.mxu0 0
      %1841 = vmatpush1.bf16.msra.mxu0 %v1745
      %1842 = vmatprep.subr.bf16.mxu0 0
      %1843 = vmatpush1.bf16.msra.mxu0 %v1744
      %1844 = vmatprep.subr.bf16.mxu0 0
      %1845 = vmatpush1.bf16.msra.mxu0 %v1743
      %1846 = vmatprep.subr.bf16.mxu0 0
      %1847 = vmatpush1.bf16.msra.mxu0 %v1742
      %1848 = vmatprep.subr.bf16.mxu0 0
      %1849 = vmatpush1.bf16.msra.mxu0 %v1741
      %1850 = vmatprep.subr.bf16.mxu0 0
      %1851 = vmatpush1.bf16.msra.mxu0 %v1740
      %1852 = vmatprep.subr.bf16.mxu0 0
      %1853 = vmatpush2.bf16.msra.mxu0 %v1755
      %1854 = vmatprep.subr.bf16.mxu0 0
      %1855 = vmatpush2.bf16.msra.mxu0 %v1754
      %1856 = vmatprep.subr.bf16.mxu0 0
      %1857 = vmatpush2.bf16.msra.mxu0 %v1753
      %1858 = vmatprep.subr.bf16.mxu0 0
      %1859 = vmatpush2.bf16.msra.mxu0 %v1752
      %1860 = vmatprep.subr.bf16.mxu0 0
      %1861 = vmatpush2.bf16.msra.mxu0 %v1751
      %1862 = vmatprep.subr.bf16.mxu0 0
      %1863 = vmatpush2.bf16.msra.mxu0 %v1750
      %1864 = vmatprep.subr.bf16.mxu0 0
      %1865 = vmatpush2.bf16.msra.mxu0 %v1749
      %1866 = vmatprep.subr.bf16.mxu0 0
      %1867 = vmatpush2.bf16.msra.mxu0 %v1748
      %1868 = vmatprep.mubr.bf16.mxu0 %v1587
      %1869 = vmatmul.mubr.bf16.gmra.mxu0 %v1584
      %v1870 = vpop.f32.mrf.mxu0
      %v1871 = vadd.f32 %v1823, %v1870
      %v1872 = vpop.f32.mrf.mxu0
      %v1873 = vpop.f32.mrf.mxu0
      %v1874 = vadd.f32 %v1826, %v1873
      %v1875 = vpop.f32.mrf.mxu0
      %1876 = vmatprep.mubr.bf16.mxu0 %v1586
      %1877 = vmatmul.mubr.bf16.gmra.mxu0 %v1583
      %v1878 = vpop.f32.mrf.mxu0
      %v1879 = vadd.f32 %v1831, %v1878
      %v1880 = vpop.f32.mrf.mxu0
      %v1881 = vpop.f32.mrf.mxu0
      %v1882 = vpop.f32.mrf.mxu0
      %1883 = vdwg.mxu0
      %v1884 = vadd.f32 %v1495, %v1871
      %v1885 = vadd.f32 %v1496, %v1874
      %v1886 = vadd.f32 %v1497, %v1879
      %v1887 = vld [vmem:[%s2] sm:$0x1]
      %v1889 = vlaneseq
      %v1890 = vshrl.u32 %v1889, 7
      %v1891 = vsub.s32 0, %v1890
      %v1892 = vrot.slane %v1887, %v1891
      %v1894 = vadd.f32 %v1884, %v1892
      %v1895 = vadd.f32 %v1885, %v1892
      %v1896 = vadd.f32 %v1886, %v1892
      %v1897 = vmax.f32 %v1894, 0.0
      %v1898 = vmax.f32 %v1895, 0.0
      %v1899 = vmax.f32 %v1896, 0.0
      %v1900 = vld [vmem:[%s3] sm:$0xff]
      %v1901 = vld [vmem:[%s3 + $0x8] sm:$0xff]
      %v1902 = vld [vmem:[%s3 + $0x10] sm:$0xf]
      %1904 = vset.pattern.permute.xlu0 0
      %1905 = vperm.xlu0 %1904, %v1900
      %v1906 = vpop.permute.xlu0 %1905
      %1909 = vset.pattern.permute.xlu0 0
      %1910 = vperm.xlu0 %1909, %v1901
      %v1911 = vpop.permute.xlu0 %1910
      %1914 = vset.pattern.permute.xlu0 0
      %1915 = vperm.xlu0 %1914, %v1902
      %v1916 = vpop.permute.xlu0 %1915
      %v1918 = vmul.f32 %v1897, %v1906
      %v1919 = vmul.f32 %v1898, %v1911
      %v1920 = vmul.f32 %v1899, %v1916
      %v1921 = vpack.c.bf16 %v1919, %v1918
      %v1922 = vpack.c.bf16 %v1920, %v1920
      %v1925 = vunpack.c.l.b16 %v1921
      %v1926 = vunpack.c.h.b16 %v1921
      %v1927 = vunpack.c.l.b16 %v1922
      %v1928 = vpack.c.b16 %v1925, %v1925
      %v1929 = vpack.c.b16 %v1926, %v1926
      %v1930 = vpack.c.b16 %v1927, %v1927
      %1934 = vst [vmem:[%s197] sm:$0xf] %v1928
      %1935 = vst [vmem:[%s197 + $0x4] sm:$0xf] %v1929
      %1936 = vst [vmem:[%s197 + $0x8] sm:$0x3] %v1930
      %p1937 = scmp.lt.s32.totalorder %s15, 1
      %s1938 = scalar_select %p1937, %s15, 1
      %s1939 = smul.addr %s1938, 3
      %s1940 = smul.addr %s1939, 4
      %s1941 = scalar_lea.vmem %s4, %s1940
      // Predicated region
      $region37: #{_lambda_.5} parent=35 // pred_check
        %p1942 = pneg %p122
      $region38: #{_lambda_.5} parent=35 // pred_check_branch
        %1944 = sbr.rel (%p1942) target = $region40
      $region39: #{_lambda_.5} parent=35 // pred_region
        _
      $region40: #{_lambda_.5} parent=35 // pred_fallthru
        _
    $region36: #{_lambda_.5} parent=5 // pred_fallthru
      _
    %p1945 = scmp.le.s32.totalorder 2, %s10
    // Predicated region
    $region41: #{_lambda_.5} parent=5 // pred_check
      %p1946 = pneg %p1945
    $region42: #{_lambda_.5} parent=5 // pred_check_branch
      %1948 = sbr.rel (%p1946) target = $region44
    $region43: #{_lambda_.5} parent=5 // pred_region
      %s1949 = ssub.s32 %s10, 2
      // Predicated region
      $region45: #{_lambda_.5} parent=43 // pred_check
        %p1950 = pneg %p128
      $region46: #{_lambda_.5} parent=43 // pred_check_branch
        %1952 = sbr.rel (%p1950) target = $region48
      $region47: #{_lambda_.5} parent=43 // pred_region
        %p1953 = scmp.lt.s32.totalorder %s16, 1
        %s1954 = scalar_select %p1953, %s16, 1
        %s1955 = smul.addr %s1954, 3
        %s1956 = smul.addr %s1955, 4
        %s1957 = scalar_lea.vmem %s4, %s1956
      $region48: #{_lambda_.5} parent=43 // pred_fallthru
        _
    $region44: #{_lambda_.5} parent=5 // pred_fallthru
      _
  $region6: #{_lambda_.5} parent=0 // loop_footer
    %s14 = sadd.s32 1, %s10
  $region7: #{_lambda_.5} parent=0 // loop_footer_branch
    %9 = sbr.rel target = $region3
  $region8: #{_lambda_.5} parent=0 // loop_exit
    _

// kernel: _lambda_.6
$region0: #{_lambda_.6}
  #allocation0 [shape = 'u32[]', space=smem, size = 0x4, offset = 0x4, fixed_abs, tag = 'smem constant byte address 0x4 - core index']
  #allocation1 [shape = 'u32[144,128]{1,0:T(1,128)}', space=vmem, size = 0x12000, scoped, tag = 'internal scratch']
  %s0 = inlined_call_operand.vmem [shape: bf16[2,12,512], index: 0, kind: input, shape index: {}]
  %s1 = inlined_call_operand.vmem [shape: bf16[2,2,512,128], index: 1, kind: input, shape index: {}]
  %s2 = inlined_call_operand.vmem [shape: f32[1,128], index: 2, kind: input, shape index: {}]
  %s3 = inlined_call_operand.vmem [shape: f32[6,1], index: 3, kind: input, shape index: {}]
  %s4 = inlined_call_operand.vmem [shape: bf16[2,6,128], index: 4, kind: output, shape index: {}]
  %s5 = sld [smem:[#allocation0]]
  $region49: #{_lambda_.6} parent=0
    _
  %s7 = ssub.s32 1, %s5
  %s8 = scalar_select 0, %s7, %s5
  loop: start=0, step=1, limit=4
  $region2: #{_lambda_.6} parent=0 // loop_pre_header
    _
  $region3: #{_lambda_.6} parent=0 // loop_header
    %s10 = sphi 0, %s14
    %p11 = scmp.ge.s32.totalorder %s10, 4
    %s20 = sphi 0, %s22
    %s23 = sphi 0, %s20
    %s24 = sphi 0, %s23
    %s40 = sphi 0, %s24
    %s44 = sphi 0, %s44
    %s46 = sphi 0, %s44
    %s47 = sphi 0, %s46
    %s61 = sphi 0, %s47
    %s65 = sphi 0, %s65
    %s67 = sphi 0, %s65
    %s68 = sphi 0, %s67
    %s82 = sphi 0, %s68
    %s86 = sphi 0, %s86
    %s88 = sphi 0, %s86
    %s89 = sphi 0, %s88
    %s103 = sphi 0, %s89
    %s109 = sphi 0, %s111
    %s112 = sphi 0, %s109
    %s113 = sphi 0, %s112
    %s129 = sphi 0, %s113
  $region4: #{_lambda_.6} parent=0 // loop_header_branch
    %13 = sbr.rel (%p11) target = $region8
  $region5: #{_lambda_.6} parent=0 // loop_body
    %s15 = ssub.s32 %s10, 1
    %s16 = ssub.s32 %s10, 2
    %s17 = sadd.s32 %s10, 1
    %s18 = ssub.s32 %s10, %s17
    %p19 = scmp.eq.s32.totalorder %s18, 0
    %s21 = sadd.s32 %s20, 1
    %s22 = scalar_select %p19, %s20, %s21
    %p25 = pneg %p19
    %p26 = scmp.eq.s32.totalorder %s10, 1
    %p27 = por %p25, %p26
    %p28 = scmp.ne.s32.totalorder %s20, %s23
    %p29 = scmp.eq.s32.totalorder %s10, 0
    %p30 = por %p28, %p29
    %p31 = scmp.ne.s32.totalorder %s20, %s23
    %p32 = scmp.eq.s32.totalorder %s15, 1
    %p33 = por %p31, %p32
    %p34 = scmp.ne.s32.totalorder %s23, %s24
    %p35 = scmp.eq.s32.totalorder %s15, 0
    %p36 = por %p34, %p35
    %p37 = scmp.ne.s32.totalorder %s23, %s24
    %p38 = scmp.eq.s32.totalorder %s16, 1
    %p39 = por %p37, %p38
    %p41 = scmp.ne.s32.totalorder %s24, %s40
    %p42 = scmp.eq.s32.totalorder %s16, 0
    %p43 = por %p41, %p42
    %s45 = sadd.s32 %s44, 1
    %p48 = scmp.eq.s32.totalorder %s10, 1
    %p49 = scmp.ne.s32.totalorder %s44, %s46
    %p50 = scmp.eq.s32.totalorder %s10, 0
    %p51 = por %p49, %p50
    %p52 = scmp.ne.s32.totalorder %s44, %s46
    %p53 = scmp.eq.s32.totalorder %s15, 1
    %p54 = por %p52, %p53
    %p55 = scmp.ne.s32.totalorder %s46, %s47
    %p56 = scmp.eq.s32.totalorder %s15, 0
    %p57 = por %p55, %p56
    %p58 = scmp.ne.s32.totalorder %s46, %s47
    %p59 = scmp.eq.s32.totalorder %s16, 1
    %p60 = por %p58, %p59
    %p62 = scmp.ne.s32.totalorder %s47, %s61
    %p63 = scmp.eq.s32.totalorder %s16, 0
    %p64 = por %p62, %p63
    %s66 = sadd.s32 %s65, 1
    %p69 = scmp.eq.s32.totalorder %s10, 1
    %p70 = scmp.ne.s32.totalorder %s65, %s67
    %p71 = scmp.eq.s32.totalorder %s10, 0
    %p72 = por %p70, %p71
    %p73 = scmp.ne.s32.totalorder %s65, %s67
    %p74 = scmp.eq.s32.totalorder %s15, 1
    %p75 = por %p73, %p74
    %p76 = scmp.ne.s32.totalorder %s67, %s68
    %p77 = scmp.eq.s32.totalorder %s15, 0
    %p78 = por %p76, %p77
    %p79 = scmp.ne.s32.totalorder %s67, %s68
    %p80 = scmp.eq.s32.totalorder %s16, 1
    %p81 = por %p79, %p80
    %p83 = scmp.ne.s32.totalorder %s68, %s82
    %p84 = scmp.eq.s32.totalorder %s16, 0
    %p85 = por %p83, %p84
    %s87 = sadd.s32 %s86, 1
    %p90 = scmp.eq.s32.totalorder %s10, 1
    %p91 = scmp.ne.s32.totalorder %s86, %s88
    %p92 = scmp.eq.s32.totalorder %s10, 0
    %p93 = por %p91, %p92
    %p94 = scmp.ne.s32.totalorder %s86, %s88
    %p95 = scmp.eq.s32.totalorder %s15, 1
    %p96 = por %p94, %p95
    %p97 = scmp.ne.s32.totalorder %s88, %s89
    %p98 = scmp.eq.s32.totalorder %s15, 0
    %p99 = por %p97, %p98
    %p100 = scmp.ne.s32.totalorder %s88, %s89
    %p101 = scmp.eq.s32.totalorder %s16, 1
    %p102 = por %p100, %p101
    %p104 = scmp.ne.s32.totalorder %s89, %s103
    %p105 = scmp.eq.s32.totalorder %s16, 0
    %p106 = por %p104, %p105
    %s107 = ssub.s32 %s10, %s17
    %p108 = scmp.eq.s32.totalorder %s107, 0
    %s110 = sadd.s32 %s109, 1
    %s111 = scalar_select %p108, %s109, %s110
    %p114 = pneg %p108
    %p115 = scmp.eq.s32.totalorder %s10, 1
    %p116 = por %p114, %p115
    %p117 = scmp.ne.s32.totalorder %s109, %s112
    %p118 = scmp.eq.s32.totalorder %s10, 0
    %p119 = por %p117, %p118
    %p120 = scmp.ne.s32.totalorder %s109, %s112
    %p121 = scmp.eq.s32.totalorder %s15, 1
    %p122 = por %p120, %p121
    %p123 = scmp.ne.s32.totalorder %s112, %s113
    %p124 = scmp.eq.s32.totalorder %s15, 0
    %p125 = por %p123, %p124
    %p126 = scmp.ne.s32.totalorder %s112, %s113
    %p127 = scmp.eq.s32.totalorder %s16, 1
    %p128 = por %p126, %p127
    %p130 = scmp.ne.s32.totalorder %s113, %s129
    %p131 = scmp.eq.s32.totalorder %s16, 0
    %p132 = por %p130, %p131
    %p133 = scmp.le.s32.totalorder 1, %s10
    %p134 = scmp.lt.s32.totalorder %s10, 3
    %p135 = pnand %p133, %p134
    %p136 = pneg %p135
    // Predicated region
    $region9: #{_lambda_.6} parent=5 // pred_check
      _
    $region10: #{_lambda_.6} parent=5 // pred_check_branch
      %138 = sbr.rel (%p135) target = $region12
    $region11: #{_lambda_.6} parent=5 // pred_region
      %s139 = ssub.s32 %s10, 1
      // Predicated region
      $region13: #{_lambda_.6} parent=11 // pred_check
        %p140 = pneg %p57
      $region14: #{_lambda_.6} parent=11 // pred_check_branch
        %142 = sbr.rel (%p140) target = $region16
      $region15: #{_lambda_.6} parent=11 // pred_region
        _
      $region16: #{_lambda_.6} parent=11 // pred_fallthru
        _
      // Predicated region
      $region17: #{_lambda_.6} parent=11 // pred_check
        %p143 = pneg %p78
      $region18: #{_lambda_.6} parent=11 // pred_check_branch
        %145 = sbr.rel (%p143) target = $region20
      $region19: #{_lambda_.6} parent=11 // pred_region
        _
      $region20: #{_lambda_.6} parent=11 // pred_fallthru
        _
      // Predicated region
      $region21: #{_lambda_.6} parent=11 // pred_check
        %p146 = pneg %p99
      $region22: #{_lambda_.6} parent=11 // pred_check_branch
        %148 = sbr.rel (%p146) target = $region24
      $region23: #{_lambda_.6} parent=11 // pred_region
        _
      $region24: #{_lambda_.6} parent=11 // pred_fallthru
        _
    $region12: #{_lambda_.6} parent=5 // pred_fallthru
      _
    %p149 = scmp.lt.s32.totalorder %s10, 2
    // Predicated region
    $region25: #{_lambda_.6} parent=5 // pred_check
      %p150 = pneg %p149
    $region26: #{_lambda_.6} parent=5 // pred_check_branch
      %152 = sbr.rel (%p150) target = $region28
    $region27: #{_lambda_.6} parent=5 // pred_region
      // Predicated region
      $region29: #{_lambda_.6} parent=27 // pred_check
        %p153 = pneg %p30
      $region30: #{_lambda_.6} parent=27 // pred_check_branch
        %155 = sbr.rel (%p153) target = $region32
      $region31: #{_lambda_.6} parent=27 // pred_region
        %p156 = scmp.lt.s32.totalorder %s10, 1
        %s157 = scalar_select %p156, %s10, 1
        %s158 = smul.addr %s157, 8
        %s159 = smul.addr %s158, 4
        %s160 = scalar_lea.vmem %s0, %s159
      $region32: #{_lambda_.6} parent=27 // pred_fallthru
        _
    $region28: #{_lambda_.6} parent=5 // pred_fallthru
      _
    %p161 = scmp.le.s32.totalorder 1, %s10
    %p162 = scmp.lt.s32.totalorder %s10, 3
    %p163 = pnand %p161, %p162
    %p164 = pneg %p163
    // Predicated region
    $region33: #{_lambda_.6} parent=5 // pred_check
      _
    $region34: #{_lambda_.6} parent=5 // pred_check_branch
      %166 = sbr.rel (%p163) target = $region36
    $region35: #{_lambda_.6} parent=5 // pred_region
      %s167 = ssub.s32 %s10, 1
      %p168 = scmp.lt.s32.totalorder %s15, 1
      %s169 = scalar_select %p168, %s15, 1
      %s170 = smul.addr %s169, 8
      %s171 = smul.addr %s170, 4
      %s172 = scalar_lea.vmem %s0, %s171
      %p173 = pneg %p36
      %p174 = pneg %p33
      %p175 = pneg %p57
      %p176 = pneg %p54
      %p177 = pneg %p78
      %p178 = pneg %p75
      %p179 = pneg %p99
      %p180 = pneg %p96
      %p181 = pneg %p125
      %p182 = pneg %p122
      %p183 = scmp.lt.s32.totalorder %s15, 1
      %s184 = scalar_select %p183, %s15, 1
      %s185 = smul.addr %s184, 4
      %s186 = scalar_lea.vmem %s4, %s185
      %p187 = scmp.lt.s32.totalorder %s15, 1
      %s188 = scalar_select %p187, %s15, 1
      %s189 = smul.addr %s188, 8
      %s190 = smul.addr %s189, 4
      %s191 = scalar_lea.vmem %s0, %s190
      %p192 = scmp.lt.s32.totalorder %s15, 1
      %s193 = scalar_select %p192, %s15, 1
      %s194 = smul.addr %s193, 4
      %s195 = scalar_lea.vmem %s4, %s194
      %v197 = vld [vmem:[%s191] sm:$0x77]
      %v198 = vld [vmem:[%s191 + $0x8] sm:$0x77]
      %v199 = vld [vmem:[%s1] sm:$0xf]
      %v200 = vld [vmem:[%s1 + $0x4] sm:$0xf]
      %v201 = vld [vmem:[%s1 + $0x8] sm:$0xf]
      %v202 = vld [vmem:[%s1 + $0xc] sm:$0xf]
      %v203 = vld [vmem:[%s1 + $0x10] sm:$0xf]
      %v204 = vld [vmem:[%s1 + $0x14] sm:$0xf]
      %v205 = vld [vmem:[%s1 + $0x18] sm:$0xf]
      %v206 = vld [vmem:[%s1 + $0x1c] sm:$0xf]
      %v207 = vld [vmem:[%s1 + $0x20] sm:$0xf]
      %v208 = vld [vmem:[%s1 + $0x24] sm:$0xf]
      %v209 = vld [vmem:[%s1 + $0x28] sm:$0xf]
      %v210 = vld [vmem:[%s1 + $0x2c] sm:$0xf]
      %v211 = vld [vmem:[%s1 + $0x30] sm:$0xf]
      %v212 = vld [vmem:[%s1 + $0x34] sm:$0xf]
      %v213 = vld [vmem:[%s1 + $0x38] sm:$0xf]
      %v214 = vld [vmem:[%s1 + $0x3c] sm:$0xf]
      %v215 = vld [vmem:[%s1 + $0x40] sm:$0xf]
      %v216 = vld [vmem:[%s1 + $0x44] sm:$0xf]
      %v217 = vld [vmem:[%s1 + $0x48] sm:$0xf]
      %v218 = vld [vmem:[%s1 + $0x4c] sm:$0xf]
      %v219 = vld [vmem:[%s1 + $0x50] sm:$0xf]
      %v220 = vld [vmem:[%s1 + $0x54] sm:$0xf]
      %v221 = vld [vmem:[%s1 + $0x58] sm:$0xf]
      %v222 = vld [vmem:[%s1 + $0x5c] sm:$0xf]
      %v223 = vld [vmem:[%s1 + $0x60] sm:$0xf]
      %v224 = vld [vmem:[%s1 + $0x64] sm:$0xf]
      %v225 = vld [vmem:[%s1 + $0x68] sm:$0xf]
      %v226 = vld [vmem:[%s1 + $0x6c] sm:$0xf]
      %v227 = vld [vmem:[%s1 + $0x70] sm:$0xf]
      %v228 = vld [vmem:[%s1 + $0x74] sm:$0xf]
      %v229 = vld [vmem:[%s1 + $0x78] sm:$0xf]
      %v230 = vld [vmem:[%s1 + $0x7c] sm:$0xf]
      %v231 = vld [vmem:[%s1 + $0x80] sm:$0xf]
      %v232 = vld [vmem:[%s1 + $0x84] sm:$0xf]
      %v233 = vld [vmem:[%s1 + $0x88] sm:$0xf]
      %v234 = vld [vmem:[%s1 + $0x8c] sm:$0xf]
      %v235 = vld [vmem:[%s1 + $0x90] sm:$0xf]
      %v236 = vld [vmem:[%s1 + $0x94] sm:$0xf]
      %v237 = vld [vmem:[%s1 + $0x98] sm:$0xf]
      %v238 = vld [vmem:[%s1 + $0x9c] sm:$0xf]
      %v239 = vld [vmem:[%s1 + $0xa0] sm:$0xf]
      %v240 = vld [vmem:[%s1 + $0xa4] sm:$0xf]
      %v241 = vld [vmem:[%s1 + $0xa8] sm:$0xf]
      %v242 = vld [vmem:[%s1 + $0xac] sm:$0xf]
      %v243 = vld [vmem:[%s1 + $0xb0] sm:$0xf]
      %v244 = vld [vmem:[%s1 + $0xb4] sm:$0xf]
      %v245 = vld [vmem:[%s1 + $0xb8] sm:$0xf]
      %v246 = vld [vmem:[%s1 + $0xbc] sm:$0xf]
      %v247 = vld [vmem:[%s1 + $0xc0] sm:$0xf]
      %v248 = vld [vmem:[%s1 + $0xc4] sm:$0xf]
      %v249 = vld [vmem:[%s1 + $0xc8] sm:$0xf]
      %v250 = vld [vmem:[%s1 + $0xcc] sm:$0xf]
      %v251 = vld [vmem:[%s1 + $0xd0] sm:$0xf]
      %v252 = vld [vmem:[%s1 + $0xd4] sm:$0xf]
      %v253 = vld [vmem:[%s1 + $0xd8] sm:$0xf]
      %v254 = vld [vmem:[%s1 + $0xdc] sm:$0xf]
      %v255 = vld [vmem:[%s1 + $0xe0] sm:$0xf]
      %v256 = vld [vmem:[%s1 + $0xe4] sm:$0xf]
      %v257 = vld [vmem:[%s1 + $0xe8] sm:$0xf]
      %v258 = vld [vmem:[%s1 + $0xec] sm:$0xf]
      %v259 = vld [vmem:[%s1 + $0xf0] sm:$0xf]
      %v260 = vld [vmem:[%s1 + $0xf4] sm:$0xf]
      %v261 = vld [vmem:[%s1 + $0xf8] sm:$0xf]
      %v262 = vld [vmem:[%s1 + $0xfc] sm:$0xf]
      %v263 = vld [vmem:[%s191] sm:$0xff]
      %v264 = vld [vmem:[%s191 + $0x8] sm:$0xff]
      %s265 = scalar_lea.vmem %s1, 256
      %v266 = vld [vmem:[%s265] sm:$0xf]
      %v267 = vld [vmem:[%s265 + $0x4] sm:$0xf]
      %v268 = vld [vmem:[%s265 + $0x8] sm:$0xf]
      %v269 = vld [vmem:[%s265 + $0xc] sm:$0xf]
      %v270 = vld [vmem:[%s265 + $0x10] sm:$0xf]
      %v271 = vld [vmem:[%s265 + $0x14] sm:$0xf]
      %v272 = vld [vmem:[%s265 + $0x18] sm:$0xf]
      %v273 = vld [vmem:[%s265 + $0x1c] sm:$0xf]
      %v274 = vld [vmem:[%s265 + $0x20] sm:$0xf]
      %v275 = vld [vmem:[%s265 + $0x24] sm:$0xf]
      %v276 = vld [vmem:[%s265 + $0x28] sm:$0xf]
      %v277 = vld [vmem:[%s265 + $0x2c] sm:$0xf]
      %v278 = vld [vmem:[%s265 + $0x30] sm:$0xf]
      %v279 = vld [vmem:[%s265 + $0x34] sm:$0xf]
      %v280 = vld [vmem:[%s265 + $0x38] sm:$0xf]
      %v281 = vld [vmem:[%s265 + $0x3c] sm:$0xf]
      %v282 = vld [vmem:[%s265 + $0x40] sm:$0xf]
      %v283 = vld [vmem:[%s265 + $0x44] sm:$0xf]
      %v284 = vld [vmem:[%s265 + $0x48] sm:$0xf]
      %v285 = vld [vmem:[%s265 + $0x4c] sm:$0xf]
      %v286 = vld [vmem:[%s265 + $0x50] sm:$0xf]
      %v287 = vld [vmem:[%s265 + $0x54] sm:$0xf]
      %v288 = vld [vmem:[%s265 + $0x58] sm:$0xf]
      %v289 = vld [vmem:[%s265 + $0x5c] sm:$0xf]
      %v290 = vld [vmem:[%s265 + $0x60] sm:$0xf]
      %v291 = vld [vmem:[%s265 + $0x64] sm:$0xf]
      %v292 = vld [vmem:[%s265 + $0x68] sm:$0xf]
      %v293 = vld [vmem:[%s265 + $0x6c] sm:$0xf]
      %v294 = vld [vmem:[%s265 + $0x70] sm:$0xf]
      %v295 = vld [vmem:[%s265 + $0x74] sm:$0xf]
      %v296 = vld [vmem:[%s265 + $0x78] sm:$0xf]
      %v297 = vld [vmem:[%s265 + $0x7c] sm:$0xf]
      %v298 = vld [vmem:[%s265 + $0x80] sm:$0xf]
      %v299 = vld [vmem:[%s265 + $0x84] sm:$0xf]
      %v300 = vld [vmem:[%s265 + $0x88] sm:$0xf]
      %v301 = vld [vmem:[%s265 + $0x8c] sm:$0xf]
      %v302 = vld [vmem:[%s265 + $0x90] sm:$0xf]
      %v303 = vld [vmem:[%s265 + $0x94] sm:$0xf]
      %v304 = vld [vmem:[%s265 + $0x98] sm:$0xf]
      %v305 = vld [vmem:[%s265 + $0x9c] sm:$0xf]
      %v306 = vld [vmem:[%s265 + $0xa0] sm:$0xf]
      %v307 = vld [vmem:[%s265 + $0xa4] sm:$0xf]
      %v308 = vld [vmem:[%s265 + $0xa8] sm:$0xf]
      %v309 = vld [vmem:[%s265 + $0xac] sm:$0xf]
      %v310 = vld [vmem:[%s265 + $0xb0] sm:$0xf]
      %v311 = vld [vmem:[%s265 + $0xb4] sm:$0xf]
      %v312 = vld [vmem:[%s265 + $0xb8] sm:$0xf]
      %v313 = vld [vmem:[%s265 + $0xbc] sm:$0xf]
      %v314 = vld [vmem:[%s265 + $0xc0] sm:$0xf]
      %v315 = vld [vmem:[%s265 + $0xc4] sm:$0xf]
      %v316 = vld [vmem:[%s265 + $0xc8] sm:$0xf]
      %v317 = vld [vmem:[%s265 + $0xcc] sm:$0xf]
      %v318 = vld [vmem:[%s265 + $0xd0] sm:$0xf]
      %v319 = vld [vmem:[%s265 + $0xd4] sm:$0xf]
      %v320 = vld [vmem:[%s265 + $0xd8] sm:$0xf]
      %v321 = vld [vmem:[%s265 + $0xdc] sm:$0xf]
      %v322 = vld [vmem:[%s265 + $0xe0] sm:$0xf]
      %v323 = vld [vmem:[%s265 + $0xe4] sm:$0xf]
      %v324 = vld [vmem:[%s265 + $0xe8] sm:$0xf]
      %v325 = vld [vmem:[%s265 + $0xec] sm:$0xf]
      %v326 = vld [vmem:[%s265 + $0xf0] sm:$0xf]
      %v327 = vld [vmem:[%s265 + $0xf4] sm:$0xf]
      %v328 = vld [vmem:[%s265 + $0xf8] sm:$0xf]
      %v329 = vld [vmem:[%s265 + $0xfc] sm:$0xf]
      %v332 = vunpack.c.l.b16 %v263
      %v333 = vunpack.c.h.b16 %v263
      %v334 = vunpack.c.l.b16 %v264
      %v335 = vunpack.c.h.b16 %v264
      %v336 = vpack.c.b16 %v332, %v332
      %v337 = vpack.c.b16 %v333, %v333
      %v338 = vpack.c.b16 %v334, %v334
      %v339 = vpack.c.b16 %v335, %v335
      %v341 = vshrl.u32 %v336, 16
      %v343 = vshll.u32 %v336, 16
      %v345 = vrot.slane %v343, 1
      %v346 = vor.u32 %v341, %v345
      %v348 = vshrl.u32 %v337, 16
      %v350 = vshll.u32 %v337, 16
      %v352 = vrot.slane %v350, 1
      %v353 = vor.u32 %v348, %v352
      %v355 = vshrl.u32 %v338, 16
      %v357 = vshll.u32 %v338, 16
      %v359 = vrot.slane %v357, 1
      %v360 = vor.u32 %v355, %v359
      %v362 = vshrl.u32 %v339, 16
      %v364 = vshll.u32 %v339, 16
      %v366 = vrot.slane %v364, 1
      %v367 = vor.u32 %v362, %v366
      %v436 = vunpack.c.l.b16 %v266
      %v437 = vunpack.c.l.b16 %v267
      %v438 = vunpack.c.l.b16 %v268
      %v439 = vunpack.c.l.b16 %v269
      %v440 = vunpack.c.l.b16 %v270
      %v441 = vunpack.c.l.b16 %v271
      %v442 = vunpack.c.l.b16 %v272
      %v443 = vunpack.c.l.b16 %v273
      %v444 = vunpack.c.l.b16 %v274
      %v445 = vunpack.c.l.b16 %v275
      %v446 = vunpack.c.l.b16 %v276
      %v447 = vunpack.c.l.b16 %v277
      %v448 = vunpack.c.l.b16 %v278
      %v449 = vunpack.c.l.b16 %v279
      %v450 = vunpack.c.l.b16 %v280
      %v451 = vunpack.c.l.b16 %v281
      %v452 = vunpack.c.l.b16 %v282
      %v453 = vunpack.c.l.b16 %v283
      %v454 = vunpack.c.l.b16 %v284
      %v455 = vunpack.c.l.b16 %v285
      %v456 = vunpack.c.l.b16 %v286
      %v457 = vunpack.c.l.b16 %v287
      %v458 = vunpack.c.l.b16 %v288
      %v459 = vunpack.c.l.b16 %v289
      %v460 = vunpack.c.l.b16 %v290
      %v461 = vunpack.c.l.b16 %v291
      %v462 = vunpack.c.l.b16 %v292
      %v463 = vunpack.c.l.b16 %v293
      %v464 = vunpack.c.l.b16 %v294
      %v465 = vunpack.c.l.b16 %v295
      %v466 = vunpack.c.l.b16 %v296
      %v467 = vunpack.c.l.b16 %v297
      %v468 = vunpack.c.l.b16 %v298
      %v469 = vunpack.c.l.b16 %v299
      %v470 = vunpack.c.l.b16 %v300
      %v471 = vunpack.c.l.b16 %v301
      %v472 = vunpack.c.l.b16 %v302
      %v473 = vunpack.c.l.b16 %v303
      %v474 = vunpack.c.l.b16 %v304
      %v475 = vunpack.c.l.b16 %v305
      %v476 = vunpack.c.l.b16 %v306
      %v477 = vunpack.c.l.b16 %v307
      %v478 = vunpack.c.l.b16 %v308
      %v479 = vunpack.c.l.b16 %v309
      %v480 = vunpack.c.l.b16 %v310
      %v481 = vunpack.c.l.b16 %v311
      %v482 = vunpack.c.l.b16 %v312
      %v483 = vunpack.c.l.b16 %v313
      %v484 = vunpack.c.l.b16 %v314
      %v485 = vunpack.c.l.b16 %v315
      %v486 = vunpack.c.l.b16 %v316
      %v487 = vunpack.c.l.b16 %v317
      %v488 = vunpack.c.l.b16 %v318
      %v489 = vunpack.c.l.b16 %v319
      %v490 = vunpack.c.l.b16 %v320
      %v491 = vunpack.c.l.b16 %v321
      %v492 = vunpack.c.l.b16 %v322
      %v493 = vunpack.c.l.b16 %v323
      %v494 = vunpack.c.l.b16 %v324
      %v495 = vunpack.c.l.b16 %v325
      %v496 = vunpack.c.l.b16 %v326
      %v497 = vunpack.c.l.b16 %v327
      %v498 = vunpack.c.l.b16 %v328
      %v499 = vunpack.c.l.b16 %v329
      %v500 = vpack.c.b16 %v437, %v436
      %v501 = vpack.c.b16 %v439, %v438
      %v502 = vpack.c.b16 %v441, %v440
      %v503 = vpack.c.b16 %v443, %v442
      %v504 = vpack.c.b16 %v445, %v444
      %v505 = vpack.c.b16 %v447, %v446
      %v506 = vpack.c.b16 %v449, %v448
      %v507 = vpack.c.b16 %v451, %v450
      %v508 = vpack.c.b16 %v453, %v452
      %v509 = vpack.c.b16 %v455, %v454
      %v510 = vpack.c.b16 %v457, %v456
      %v511 = vpack.c.b16 %v459, %v458
      %v512 = vpack.c.b16 %v461, %v460
      %v513 = vpack.c.b16 %v463, %v462
      %v514 = vpack.c.b16 %v465, %v464
      %v515 = vpack.c.b16 %v467, %v466
      %v516 = vpack.c.b16 %v469, %v468
      %v517 = vpack.c.b16 %v471, %v470
      %v518 = vpack.c.b16 %v473, %v472
      %v519 = vpack.c.b16 %v475, %v474
      %v520 = vpack.c.b16 %v477, %v476
      %v521 = vpack.c.b16 %v479, %v478
      %v522 = vpack.c.b16 %v481, %v480
      %v523 = vpack.c.b16 %v483, %v482
      %v524 = vpack.c.b16 %v485, %v484
      %v525 = vpack.c.b16 %v487, %v486
      %v526 = vpack.c.b16 %v489, %v488
      %v527 = vpack.c.b16 %v491, %v490
      %v528 = vpack.c.b16 %v493, %v492
      %v529 = vpack.c.b16 %v495, %v494
      %v530 = vpack.c.b16 %v497, %v496
      %v531 = vpack.c.b16 %v499, %v498
      %564 = vmatprep.subr.bf16.mxu0 0
      %565 = vmatpush1.bf16.msra.mxu0 %v507
      %566 = vmatprep.subr.bf16.mxu0 0
      %567 = vmatpush1.bf16.msra.mxu0 %v506
      %568 = vmatprep.subr.bf16.mxu0 0
      %569 = vmatpush1.bf16.msra.mxu0 %v505
      %570 = vmatprep.subr.bf16.mxu0 0
      %571 = vmatpush1.bf16.msra.mxu0 %v504
      %572 = vmatprep.subr.bf16.mxu0 0
      %573 = vmatpush1.bf16.msra.mxu0 %v503
      %574 = vmatprep.subr.bf16.mxu0 0
      %575 = vmatpush1.bf16.msra.mxu0 %v502
      %576 = vmatprep.subr.bf16.mxu0 0
      %577 = vmatpush1.bf16.msra.mxu0 %v501
      %578 = vmatprep.subr.bf16.mxu0 0
      %579 = vmatpush1.bf16.msra.mxu0 %v500
      %580 = vmatprep.subr.bf16.mxu0 0
      %581 = vmatpush2.bf16.msra.mxu0 %v515
      %582 = vmatprep.subr.bf16.mxu0 0
      %583 = vmatpush2.bf16.msra.mxu0 %v514
      %584 = vmatprep.subr.bf16.mxu0 0
      %585 = vmatpush2.bf16.msra.mxu0 %v513
      %586 = vmatprep.subr.bf16.mxu0 0
      %587 = vmatpush2.bf16.msra.mxu0 %v512
      %588 = vmatprep.subr.bf16.mxu0 0
      %589 = vmatpush2.bf16.msra.mxu0 %v511
      %590 = vmatprep.subr.bf16.mxu0 0
      %591 = vmatpush2.bf16.msra.mxu0 %v510
      %592 = vmatprep.subr.bf16.mxu0 0
      %593 = vmatpush2.bf16.msra.mxu0 %v509
      %594 = vmatprep.subr.bf16.mxu0 0
      %595 = vmatpush2.bf16.msra.mxu0 %v508
      %596 = vmatprep.mubr.bf16.mxu0 %v353
      %597 = vmatmul.mubr.bf16.gmra.mxu0 %v346
      %v598 = vpop.f32.mrf.mxu0
      %v599 = vadd.f32 0.0, %v598
      %v600 = vpop.f32.mrf.mxu0
      %v601 = vpop.f32.mrf.mxu0
      %v602 = vpop.f32.mrf.mxu0
      %603 = vdwg.mxu0
      %604 = vmatprep.subr.bf16.mxu0 0
      %605 = vmatpush1.bf16.msra.mxu0 %v523
      %606 = vmatprep.subr.bf16.mxu0 0
      %607 = vmatpush1.bf16.msra.mxu0 %v522
      %608 = vmatprep.subr.bf16.mxu0 0
      %609 = vmatpush1.bf16.msra.mxu0 %v521
      %610 = vmatprep.subr.bf16.mxu0 0
      %611 = vmatpush1.bf16.msra.mxu0 %v520
      %612 = vmatprep.subr.bf16.mxu0 0
      %613 = vmatpush1.bf16.msra.mxu0 %v519
      %614 = vmatprep.subr.bf16.mxu0 0
      %615 = vmatpush1.bf16.msra.mxu0 %v518
      %616 = vmatprep.subr.bf16.mxu0 0
      %617 = vmatpush1.bf16.msra.mxu0 %v517
      %618 = vmatprep.subr.bf16.mxu0 0
      %619 = vmatpush1.bf16.msra.mxu0 %v516
      %620 = vmatprep.subr.bf16.mxu0 0
      %621 = vmatpush2.bf16.msra.mxu0 %v531
      %622 = vmatprep.subr.bf16.mxu0 0
      %623 = vmatpush2.bf16.msra.mxu0 %v530
      %624 = vmatprep.subr.bf16.mxu0 0
      %625 = vmatpush2.bf16.msra.mxu0 %v529
      %626 = vmatprep.subr.bf16.mxu0 0
      %627 = vmatpush2.bf16.msra.mxu0 %v528
      %628 = vmatprep.subr.bf16.mxu0 0
      %629 = vmatpush2.bf16.msra.mxu0 %v527
      %630 = vmatprep.subr.bf16.mxu0 0
      %631 = vmatpush2.bf16.msra.mxu0 %v526
      %632 = vmatprep.subr.bf16.mxu0 0
      %633 = vmatpush2.bf16.msra.mxu0 %v525
      %634 = vmatprep.subr.bf16.mxu0 0
      %635 = vmatpush2.bf16.msra.mxu0 %v524
      %636 = vmatprep.mubr.bf16.mxu0 %v367
      %637 = vmatmul.mubr.bf16.gmra.mxu0 %v360
      %v638 = vpop.f32.mrf.mxu0
      %v639 = vadd.f32 %v599, %v638
      %v640 = vpop.f32.mrf.mxu0
      %v641 = vpop.f32.mrf.mxu0
      %v642 = vpop.f32.mrf.mxu0
      %643 = vdwg.mxu0
      %v646 = vunpack.c.l.b16 %v197
      %v647 = vunpack.c.h.b16 %v197
      %v648 = vunpack.c.l.b16 %v198
      %v649 = vunpack.c.h.b16 %v198
      %v650 = vpack.c.b16 %v646, %v646
      %v651 = vpack.c.b16 %v647, %v647
      %v652 = vpack.c.b16 %v648, %v648
      %v653 = vpack.c.b16 %v649, %v649
      %v722 = vunpack.c.l.b16 %v199
      %v723 = vunpack.c.l.b16 %v200
      %v724 = vunpack.c.l.b16 %v201
      %v725 = vunpack.c.l.b16 %v202
      %v726 = vunpack.c.l.b16 %v203
      %v727 = vunpack.c.l.b16 %v204
      %v728 = vunpack.c.l.b16 %v205
      %v729 = vunpack.c.l.b16 %v206
      %v730 = vunpack.c.l.b16 %v207
      %v731 = vunpack.c.l.b16 %v208
      %v732 = vunpack.c.l.b16 %v209
      %v733 = vunpack.c.l.b16 %v210
      %v734 = vunpack.c.l.b16 %v211
      %v735 = vunpack.c.l.b16 %v212
      %v736 = vunpack.c.l.b16 %v213
      %v737 = vunpack.c.l.b16 %v214
      %v738 = vunpack.c.l.b16 %v215
      %v739 = vunpack.c.l.b16 %v216
      %v740 = vunpack.c.l.b16 %v217
      %v741 = vunpack.c.l.b16 %v218
      %v742 = vunpack.c.l.b16 %v219
      %v743 = vunpack.c.l.b16 %v220
      %v744 = vunpack.c.l.b16 %v221
      %v745 = vunpack.c.l.b16 %v222
      %v746 = vunpack.c.l.b16 %v223
      %v747 = vunpack.c.l.b16 %v224
      %v748 = vunpack.c.l.b16 %v225
      %v749 = vunpack.c.l.b16 %v226
      %v750 = vunpack.c.l.b16 %v227
      %v751 = vunpack.c.l.b16 %v228
      %v752 = vunpack.c.l.b16 %v229
      %v753 = vunpack.c.l.b16 %v230
      %v754 = vunpack.c.l.b16 %v231
      %v755 = vunpack.c.l.b16 %v232
      %v756 = vunpack.c.l.b16 %v233
      %v757 = vunpack.c.l.b16 %v234
      %v758 = vunpack.c.l.b16 %v235
      %v759 = vunpack.c.l.b16 %v236
      %v760 = vunpack.c.l.b16 %v237
      %v761 = vunpack.c.l.b16 %v238
      %v762 = vunpack.c.l.b16 %v239
      %v763 = vunpack.c.l.b16 %v240
      %v764 = vunpack.c.l.b16 %v241
      %v765 = vunpack.c.l.b16 %v242
      %v766 = vunpack.c.l.b16 %v243
      %v767 = vunpack.c.l.b16 %v244
      %v768 = vunpack.c.l.b16 %v245
      %v769 = vunpack.c.l.b16 %v246
      %v770 = vunpack.c.l.b16 %v247
      %v771 = vunpack.c.l.b16 %v248
      %v772 = vunpack.c.l.b16 %v249
      %v773 = vunpack.c.l.b16 %v250
      %v774 = vunpack.c.l.b16 %v251
      %v775 = vunpack.c.l.b16 %v252
      %v776 = vunpack.c.l.b16 %v253
      %v777 = vunpack.c.l.b16 %v254
      %v778 = vunpack.c.l.b16 %v255
      %v779 = vunpack.c.l.b16 %v256
      %v780 = vunpack.c.l.b16 %v257
      %v781 = vunpack.c.l.b16 %v258
      %v782 = vunpack.c.l.b16 %v259
      %v783 = vunpack.c.l.b16 %v260
      %v784 = vunpack.c.l.b16 %v261
      %v785 = vunpack.c.l.b16 %v262
      %v786 = vpack.c.b16 %v723, %v722
      %v787 = vpack.c.b16 %v725, %v724
      %v788 = vpack.c.b16 %v727, %v726
      %v789 = vpack.c.b16 %v729, %v728
      %v790 = vpack.c.b16 %v731, %v730
      %v791 = vpack.c.b16 %v733, %v732
      %v792 = vpack.c.b16 %v735, %v734
      %v793 = vpack.c.b16 %v737, %v736
      %v794 = vpack.c.b16 %v739, %v738
      %v795 = vpack.c.b16 %v741, %v740
      %v796 = vpack.c.b16 %v743, %v742
      %v797 = vpack.c.b16 %v745, %v744
      %v798 = vpack.c.b16 %v747, %v746
      %v799 = vpack.c.b16 %v749, %v748
      %v800 = vpack.c.b16 %v751, %v750
      %v801 = vpack.c.b16 %v753, %v752
      %v802 = vpack.c.b16 %v755, %v754
      %v803 = vpack.c.b16 %v757, %v756
      %v804 = vpack.c.b16 %v759, %v758
      %v805 = vpack.c.b16 %v761, %v760
      %v806 = vpack.c.b16 %v763, %v762
      %v807 = vpack.c.b16 %v765, %v764
      %v808 = vpack.c.b16 %v767, %v766
      %v809 = vpack.c.b16 %v769, %v768
      %v810 = vpack.c.b16 %v771, %v770
      %v811 = vpack.c.b16 %v773, %v772
      %v812 = vpack.c.b16 %v775, %v774
      %v813 = vpack.c.b16 %v777, %v776
      %v814 = vpack.c.b16 %v779, %v778
      %v815 = vpack.c.b16 %v781, %v780
      %v816 = vpack.c.b16 %v783, %v782
      %v817 = vpack.c.b16 %v785, %v784
      %850 = vmatprep.subr.bf16.mxu0 0
      %851 = vmatpush1.bf16.msra.mxu0 %v793
      %852 = vmatprep.subr.bf16.mxu0 0
      %853 = vmatpush1.bf16.msra.mxu0 %v792
      %854 = vmatprep.subr.bf16.mxu0 0
      %855 = vmatpush1.bf16.msra.mxu0 %v791
      %856 = vmatprep.subr.bf16.mxu0 0
      %857 = vmatpush1.bf16.msra.mxu0 %v790
      %858 = vmatprep.subr.bf16.mxu0 0
      %859 = vmatpush1.bf16.msra.mxu0 %v789
      %860 = vmatprep.subr.bf16.mxu0 0
      %861 = vmatpush1.bf16.msra.mxu0 %v788
      %862 = vmatprep.subr.bf16.mxu0 0
      %863 = vmatpush1.bf16.msra.mxu0 %v787
      %864 = vmatprep.subr.bf16.mxu0 0
      %865 = vmatpush1.bf16.msra.mxu0 %v786
      %866 = vmatprep.subr.bf16.mxu0 0
      %867 = vmatpush2.bf16.msra.mxu0 %v801
      %868 = vmatprep.subr.bf16.mxu0 0
      %869 = vmatpush2.bf16.msra.mxu0 %v800
      %870 = vmatprep.subr.bf16.mxu0 0
      %871 = vmatpush2.bf16.msra.mxu0 %v799
      %872 = vmatprep.subr.bf16.mxu0 0
      %873 = vmatpush2.bf16.msra.mxu0 %v798
      %874 = vmatprep.subr.bf16.mxu0 0
      %875 = vmatpush2.bf16.msra.mxu0 %v797
      %876 = vmatprep.subr.bf16.mxu0 0
      %877 = vmatpush2.bf16.msra.mxu0 %v796
      %878 = vmatprep.subr.bf16.mxu0 0
      %879 = vmatpush2.bf16.msra.mxu0 %v795
      %880 = vmatprep.subr.bf16.mxu0 0
      %881 = vmatpush2.bf16.msra.mxu0 %v794
      %882 = vmatprep.mubr.bf16.mxu0 %v651
      %883 = vmatmul.mubr.bf16.gmra.mxu0 %v650
      %v884 = vpop.f32.mrf.mxu0
      %v885 = vadd.f32 %v639, %v884
      %v886 = vpop.f32.mrf.mxu0
      %v887 = vpop.f32.mrf.mxu0
      %v888 = vpop.f32.mrf.mxu0
      %889 = vdwg.mxu0
      %890 = vmatprep.subr.bf16.mxu0 0
      %891 = vmatpush1.bf16.msra.mxu0 %v809
      %892 = vmatprep.subr.bf16.mxu0 0
      %893 = vmatpush1.bf16.msra.mxu0 %v808
      %894 = vmatprep.subr.bf16.mxu0 0
      %895 = vmatpush1.bf16.msra.mxu0 %v807
      %896 = vmatprep.subr.bf16.mxu0 0
      %897 = vmatpush1.bf16.msra.mxu0 %v806
      %898 = vmatprep.subr.bf16.mxu0 0
      %899 = vmatpush1.bf16.msra.mxu0 %v805
      %900 = vmatprep.subr.bf16.mxu0 0
      %901 = vmatpush1.bf16.msra.mxu0 %v804
      %902 = vmatprep.subr.bf16.mxu0 0
      %903 = vmatpush1.bf16.msra.mxu0 %v803
      %904 = vmatprep.subr.bf16.mxu0 0
      %905 = vmatpush1.bf16.msra.mxu0 %v802
      %906 = vmatprep.subr.bf16.mxu0 0
      %907 = vmatpush2.bf16.msra.mxu0 %v817
      %908 = vmatprep.subr.bf16.mxu0 0
      %909 = vmatpush2.bf16.msra.mxu0 %v816
      %910 = vmatprep.subr.bf16.mxu0 0
      %911 = vmatpush2.bf16.msra.mxu0 %v815
      %912 = vmatprep.subr.bf16.mxu0 0
      %913 = vmatpush2.bf16.msra.mxu0 %v814
      %914 = vmatprep.subr.bf16.mxu0 0
      %915 = vmatpush2.bf16.msra.mxu0 %v813
      %916 = vmatprep.subr.bf16.mxu0 0
      %917 = vmatpush2.bf16.msra.mxu0 %v812
      %918 = vmatprep.subr.bf16.mxu0 0
      %919 = vmatpush2.bf16.msra.mxu0 %v811
      %920 = vmatprep.subr.bf16.mxu0 0
      %921 = vmatpush2.bf16.msra.mxu0 %v810
      %922 = vmatprep.mubr.bf16.mxu0 %v653
      %923 = vmatmul.mubr.bf16.gmra.mxu0 %v652
      %v924 = vpop.f32.mrf.mxu0
      %v925 = vadd.f32 %v885, %v924
      %v926 = vpop.f32.mrf.mxu0
      %v927 = vpop.f32.mrf.mxu0
      %v928 = vpop.f32.mrf.mxu0
      %929 = vdwg.mxu0
      %v930 = vld [vmem:[%s191] sm:$0xee]
      %v931 = vld [vmem:[%s191 + $0x8] sm:$0xee]
      %v932 = vld [vmem:[%s191 + $0x10] sm:$0x11]
      %v933 = vld [vmem:[%s191 + $0x18] sm:$0x11]
      %s934 = scalar_lea.vmem %s1, 512
      %v935 = vld [vmem:[%s934] sm:$0xf]
      %v936 = vld [vmem:[%s934 + $0x4] sm:$0xf]
      %v937 = vld [vmem:[%s934 + $0x8] sm:$0xf]
      %v938 = vld [vmem:[%s934 + $0xc] sm:$0xf]
      %v939 = vld [vmem:[%s934 + $0x10] sm:$0xf]
      %v940 = vld [vmem:[%s934 + $0x14] sm:$0xf]
      %v941 = vld [vmem:[%s934 + $0x18] sm:$0xf]
      %v942 = vld [vmem:[%s934 + $0x1c] sm:$0xf]
      %v943 = vld [vmem:[%s934 + $0x20] sm:$0xf]
      %v944 = vld [vmem:[%s934 + $0x24] sm:$0xf]
      %v945 = vld [vmem:[%s934 + $0x28] sm:$0xf]
      %v946 = vld [vmem:[%s934 + $0x2c] sm:$0xf]
      %v947 = vld [vmem:[%s934 + $0x30] sm:$0xf]
      %v948 = vld [vmem:[%s934 + $0x34] sm:$0xf]
      %v949 = vld [vmem:[%s934 + $0x38] sm:$0xf]
      %v950 = vld [vmem:[%s934 + $0x3c] sm:$0xf]
      %v951 = vld [vmem:[%s934 + $0x40] sm:$0xf]
      %v952 = vld [vmem:[%s934 + $0x44] sm:$0xf]
      %v953 = vld [vmem:[%s934 + $0x48] sm:$0xf]
      %v954 = vld [vmem:[%s934 + $0x4c] sm:$0xf]
      %v955 = vld [vmem:[%s934 + $0x50] sm:$0xf]
      %v956 = vld [vmem:[%s934 + $0x54] sm:$0xf]
      %v957 = vld [vmem:[%s934 + $0x58] sm:$0xf]
      %v958 = vld [vmem:[%s934 + $0x5c] sm:$0xf]
      %v959 = vld [vmem:[%s934 + $0x60] sm:$0xf]
      %v960 = vld [vmem:[%s934 + $0x64] sm:$0xf]
      %v961 = vld [vmem:[%s934 + $0x68] sm:$0xf]
      %v962 = vld [vmem:[%s934 + $0x6c] sm:$0xf]
      %v963 = vld [vmem:[%s934 + $0x70] sm:$0xf]
      %v964 = vld [vmem:[%s934 + $0x74] sm:$0xf]
      %v965 = vld [vmem:[%s934 + $0x78] sm:$0xf]
      %v966 = vld [vmem:[%s934 + $0x7c] sm:$0xf]
      %v967 = vld [vmem:[%s934 + $0x80] sm:$0xf]
      %v968 = vld [vmem:[%s934 + $0x84] sm:$0xf]
      %v969 = vld [vmem:[%s934 + $0x88] sm:$0xf]
      %v970 = vld [vmem:[%s934 + $0x8c] sm:$0xf]
      %v971 = vld [vmem:[%s934 + $0x90] sm:$0xf]
      %v972 = vld [vmem:[%s934 + $0x94] sm:$0xf]
      %v973 = vld [vmem:[%s934 + $0x98] sm:$0xf]
      %v974 = vld [vmem:[%s934 + $0x9c] sm:$0xf]
      %v975 = vld [vmem:[%s934 + $0xa0] sm:$0xf]
      %v976 = vld [vmem:[%s934 + $0xa4] sm:$0xf]
      %v977 = vld [vmem:[%s934 + $0xa8] sm:$0xf]
      %v978 = vld [vmem:[%s934 + $0xac] sm:$0xf]
      %v979 = vld [vmem:[%s934 + $0xb0] sm:$0xf]
      %v980 = vld [vmem:[%s934 + $0xb4] sm:$0xf]
      %v981 = vld [vmem:[%s934 + $0xb8] sm:$0xf]
      %v982 = vld [vmem:[%s934 + $0xbc] sm:$0xf]
      %v983 = vld [vmem:[%s934 + $0xc0] sm:$0xf]
      %v984 = vld [vmem:[%s934 + $0xc4] sm:$0xf]
      %v985 = vld [vmem:[%s934 + $0xc8] sm:$0xf]
      %v986 = vld [vmem:[%s934 + $0xcc] sm:$0xf]
      %v987 = vld [vmem:[%s934 + $0xd0] sm:$0xf]
      %v988 = vld [vmem:[%s934 + $0xd4] sm:$0xf]
      %v989 = vld [vmem:[%s934 + $0xd8] sm:$0xf]
      %v990 = vld [vmem:[%s934 + $0xdc] sm:$0xf]
      %v991 = vld [vmem:[%s934 + $0xe0] sm:$0xf]
      %v992 = vld [vmem:[%s934 + $0xe4] sm:$0xf]
      %v993 = vld [vmem:[%s934 + $0xe8] sm:$0xf]
      %v994 = vld [vmem:[%s934 + $0xec] sm:$0xf]
      %v995 = vld [vmem:[%s934 + $0xf0] sm:$0xf]
      %v996 = vld [vmem:[%s934 + $0xf4] sm:$0xf]
      %v997 = vld [vmem:[%s934 + $0xf8] sm:$0xf]
      %v998 = vld [vmem:[%s934 + $0xfc] sm:$0xf]
      %v1003 = vunpack.c.l.b16 %v930
      %v1004 = vunpack.c.h.b16 %v930
      %v1005 = vunpack.c.l.b16 %v931
      %v1006 = vunpack.c.h.b16 %v931
      %v1007 = vunpack.c.l.b16 %v932
      %v1008 = vunpack.c.h.b16 %v932
      %v1009 = vunpack.c.l.b16 %v933
      %v1010 = vunpack.c.h.b16 %v933
      %v1011 = vpack.c.b16 %v1007, %v1003
      %v1012 = vpack.c.b16 %v1008, %v1004
      %v1013 = vpack.c.b16 %v1009, %v1005
      %v1014 = vpack.c.b16 %v1010, %v1006
      %v1016 = vshrl.u32 %v1011, 16
      %v1018 = vrot.slane %v1016, 1
      %v1019 = vshll.u32 %v1011, 16
      %v1021 = vrot.slane %v1019, 2
      %v1022 = vor.u32 %v1018, %v1021
      %v1024 = vshrl.u32 %v1012, 16
      %v1026 = vrot.slane %v1024, 1
      %v1027 = vshll.u32 %v1012, 16
      %v1029 = vrot.slane %v1027, 2
      %v1030 = vor.u32 %v1026, %v1029
      %v1032 = vshrl.u32 %v1013, 16
      %v1034 = vrot.slane %v1032, 1
      %v1035 = vshll.u32 %v1013, 16
      %v1037 = vrot.slane %v1035, 2
      %v1038 = vor.u32 %v1034, %v1037
      %v1040 = vshrl.u32 %v1014, 16
      %v1042 = vrot.slane %v1040, 1
      %v1043 = vshll.u32 %v1014, 16
      %v1045 = vrot.slane %v1043, 2
      %v1046 = vor.u32 %v1042, %v1045
      %v1115 = vunpack.c.l.b16 %v935
      %v1116 = vunpack.c.l.b16 %v936
      %v1117 = vunpack.c.l.b16 %v937
      %v1118 = vunpack.c.l.b16 %v938
      %v1119 = vunpack.c.l.b16 %v939
      %v1120 = vunpack.c.l.b16 %v940
      %v1121 = vunpack.c.l.b16 %v941
      %v1122 = vunpack.c.l.b16 %v942
      %v1123 = vunpack.c.l.b16 %v943
      %v1124 = vunpack.c.l.b16 %v944
      %v1125 = vunpack.c.l.b16 %v945
      %v1126 = vunpack.c.l.b16 %v946
      %v1127 = vunpack.c.l.b16 %v947
      %v1128 = vunpack.c.l.b16 %v948
      %v1129 = vunpack.c.l.b16 %v949
      %v1130 = vunpack.c.l.b16 %v950
      %v1131 = vunpack.c.l.b16 %v951
      %v1132 = vunpack.c.l.b16 %v952
      %v1133 = vunpack.c.l.b16 %v953
      %v1134 = vunpack.c.l.b16 %v954
      %v1135 = vunpack.c.l.b16 %v955
      %v1136 = vunpack.c.l.b16 %v956
      %v1137 = vunpack.c.l.b16 %v957
      %v1138 = vunpack.c.l.b16 %v958
      %v1139 = vunpack.c.l.b16 %v959
      %v1140 = vunpack.c.l.b16 %v960
      %v1141 = vunpack.c.l.b16 %v961
      %v1142 = vunpack.c.l.b16 %v962
      %v1143 = vunpack.c.l.b16 %v963
      %v1144 = vunpack.c.l.b16 %v964
      %v1145 = vunpack.c.l.b16 %v965
      %v1146 = vunpack.c.l.b16 %v966
      %v1147 = vunpack.c.l.b16 %v967
      %v1148 = vunpack.c.l.b16 %v968
      %v1149 = vunpack.c.l.b16 %v969
      %v1150 = vunpack.c.l.b16 %v970
      %v1151 = vunpack.c.l.b16 %v971
      %v1152 = vunpack.c.l.b16 %v972
      %v1153 = vunpack.c.l.b16 %v973
      %v1154 = vunpack.c.l.b16 %v974
      %v1155 = vunpack.c.l.b16 %v975
      %v1156 = vunpack.c.l.b16 %v976
      %v1157 = vunpack.c.l.b16 %v977
      %v1158 = vunpack.c.l.b16 %v978
      %v1159 = vunpack.c.l.b16 %v979
      %v1160 = vunpack.c.l.b16 %v980
      %v1161 = vunpack.c.l.b16 %v981
      %v1162 = vunpack.c.l.b16 %v982
      %v1163 = vunpack.c.l.b16 %v983
      %v1164 = vunpack.c.l.b16 %v984
      %v1165 = vunpack.c.l.b16 %v985
      %v1166 = vunpack.c.l.b16 %v986
      %v1167 = vunpack.c.l.b16 %v987
      %v1168 = vunpack.c.l.b16 %v988
      %v1169 = vunpack.c.l.b16 %v989
      %v1170 = vunpack.c.l.b16 %v990
      %v1171 = vunpack.c.l.b16 %v991
      %v1172 = vunpack.c.l.b16 %v992
      %v1173 = vunpack.c.l.b16 %v993
      %v1174 = vunpack.c.l.b16 %v994
      %v1175 = vunpack.c.l.b16 %v995
      %v1176 = vunpack.c.l.b16 %v996
      %v1177 = vunpack.c.l.b16 %v997
      %v1178 = vunpack.c.l.b16 %v998
      %v1179 = vpack.c.b16 %v1116, %v1115
      %v1180 = vpack.c.b16 %v1118, %v1117
      %v1181 = vpack.c.b16 %v1120, %v1119
      %v1182 = vpack.c.b16 %v1122, %v1121
      %v1183 = vpack.c.b16 %v1124, %v1123
      %v1184 = vpack.c.b16 %v1126, %v1125
      %v1185 = vpack.c.b16 %v1128, %v1127
      %v1186 = vpack.c.b16 %v1130, %v1129
      %v1187 = vpack.c.b16 %v1132, %v1131
      %v1188 = vpack.c.b16 %v1134, %v1133
      %v1189 = vpack.c.b16 %v1136, %v1135
      %v1190 = vpack.c.b16 %v1138, %v1137
      %v1191 = vpack.c.b16 %v1140, %v1139
      %v1192 = vpack.c.b16 %v1142, %v1141
      %v1193 = vpack.c.b16 %v1144, %v1143
      %v1194 = vpack.c.b16 %v1146, %v1145
      %v1195 = vpack.c.b16 %v1148, %v1147
      %v1196 = vpack.c.b16 %v1150, %v1149
      %v1197 = vpack.c.b16 %v1152, %v1151
      %v1198 = vpack.c.b16 %v1154, %v1153
      %v1199 = vpack.c.b16 %v1156, %v1155
      %v1200 = vpack.c.b16 %v1158, %v1157
      %v1201 = vpack.c.b16 %v1160, %v1159
      %v1202 = vpack.c.b16 %v1162, %v1161
      %v1203 = vpack.c.b16 %v1164, %v1163
      %v1204 = vpack.c.b16 %v1166, %v1165
      %v1205 = vpack.c.b16 %v1168, %v1167
      %v1206 = vpack.c.b16 %v1170, %v1169
      %v1207 = vpack.c.b16 %v1172, %v1171
      %v1208 = vpack.c.b16 %v1174, %v1173
      %v1209 = vpack.c.b16 %v1176, %v1175
      %v1210 = vpack.c.b16 %v1178, %v1177
      %1243 = vmatprep.subr.bf16.mxu0 0
      %1244 = vmatpush1.bf16.msra.mxu0 %v1186
      %1245 = vmatprep.subr.bf16.mxu0 0
      %1246 = vmatpush1.bf16.msra.mxu0 %v1185
      %1247 = vmatprep.subr.bf16.mxu0 0
      %1248 = vmatpush1.bf16.msra.mxu0 %v1184
      %1249 = vmatprep.subr.bf16.mxu0 0
      %1250 = vmatpush1.bf16.msra.mxu0 %v1183
      %1251 = vmatprep.subr.bf16.mxu0 0
      %1252 = vmatpush1.bf16.msra.mxu0 %v1182
      %1253 = vmatprep.subr.bf16.mxu0 0
      %1254 = vmatpush1.bf16.msra.mxu0 %v1181
      %1255 = vmatprep.subr.bf16.mxu0 0
      %1256 = vmatpush1.bf16.msra.mxu0 %v1180
      %1257 = vmatprep.subr.bf16.mxu0 0
      %1258 = vmatpush1.bf16.msra.mxu0 %v1179
      %1259 = vmatprep.subr.bf16.mxu0 0
      %1260 = vmatpush2.bf16.msra.mxu0 %v1194
      %1261 = vmatprep.subr.bf16.mxu0 0
      %1262 = vmatpush2.bf16.msra.mxu0 %v1193
      %1263 = vmatprep.subr.bf16.mxu0 0
      %1264 = vmatpush2.bf16.msra.mxu0 %v1192
      %1265 = vmatprep.subr.bf16.mxu0 0
      %1266 = vmatpush2.bf16.msra.mxu0 %v1191
      %1267 = vmatprep.subr.bf16.mxu0 0
      %1268 = vmatpush2.bf16.msra.mxu0 %v1190
      %1269 = vmatprep.subr.bf16.mxu0 0
      %1270 = vmatpush2.bf16.msra.mxu0 %v1189
      %1271 = vmatprep.subr.bf16.mxu0 0
      %1272 = vmatpush2.bf16.msra.mxu0 %v1188
      %1273 = vmatprep.subr.bf16.mxu0 0
      %1274 = vmatpush2.bf16.msra.mxu0 %v1187
      %1275 = vmatprep.mubr.bf16.mxu0 %v1030
      %1276 = vmatmul.mubr.bf16.gmra.mxu0 %v1022
      %v1277 = vpop.f32.mrf.mxu0
      %v1278 = vadd.f32 0.0, %v1277
      %v1279 = vpop.f32.mrf.mxu0
      %v1280 = vpop.f32.mrf.mxu0
      %v1281 = vpop.f32.mrf.mxu0
      %1282 = vdwg.mxu0
      %1283 = vmatprep.subr.bf16.mxu0 0
      %1284 = vmatpush1.bf16.msra.mxu0 %v1202
      %1285 = vmatprep.subr.bf16.mxu0 0
      %1286 = vmatpush1.bf16.msra.mxu0 %v1201
      %1287 = vmatprep.subr.bf16.mxu0 0
      %1288 = vmatpush1.bf16.msra.mxu0 %v1200
      %1289 = vmatprep.subr.bf16.mxu0 0
      %1290 = vmatpush1.bf16.msra.mxu0 %v1199
      %1291 = vmatprep.subr.bf16.mxu0 0
      %1292 = vmatpush1.bf16.msra.mxu0 %v1198
      %1293 = vmatprep.subr.bf16.mxu0 0
      %1294 = vmatpush1.bf16.msra.mxu0 %v1197
      %1295 = vmatprep.subr.bf16.mxu0 0
      %1296 = vmatpush1.bf16.msra.mxu0 %v1196
      %1297 = vmatprep.subr.bf16.mxu0 0
      %1298 = vmatpush1.bf16.msra.mxu0 %v1195
      %1299 = vmatprep.subr.bf16.mxu0 0
      %1300 = vmatpush2.bf16.msra.mxu0 %v1210
      %1301 = vmatprep.subr.bf16.mxu0 0
      %1302 = vmatpush2.bf16.msra.mxu0 %v1209
      %1303 = vmatprep.subr.bf16.mxu0 0
      %1304 = vmatpush2.bf16.msra.mxu0 %v1208
      %1305 = vmatprep.subr.bf16.mxu0 0
      %1306 = vmatpush2.bf16.msra.mxu0 %v1207
      %1307 = vmatprep.subr.bf16.mxu0 0
      %1308 = vmatpush2.bf16.msra.mxu0 %v1206
      %1309 = vmatprep.subr.bf16.mxu0 0
      %1310 = vmatpush2.bf16.msra.mxu0 %v1205
      %1311 = vmatprep.subr.bf16.mxu0 0
      %1312 = vmatpush2.bf16.msra.mxu0 %v1204
      %1313 = vmatprep.subr.bf16.mxu0 0
      %1314 = vmatpush2.bf16.msra.mxu0 %v1203
      %1315 = vmatprep.mubr.bf16.mxu0 %v1046
      %1316 = vmatmul.mubr.bf16.gmra.mxu0 %v1038
      %v1317 = vpop.f32.mrf.mxu0
      %v1318 = vadd.f32 %v1278, %v1317
      %v1319 = vpop.f32.mrf.mxu0
      %v1320 = vpop.f32.mrf.mxu0
      %v1321 = vpop.f32.mrf.mxu0
      %1322 = vdwg.mxu0
      %v1323 = vadd.f32 %v925, %v1318
      %v1324 = vld [vmem:[%s191] sm:$0xcc]
      %v1325 = vld [vmem:[%s191 + $0x8] sm:$0xcc]
      %s1326 = scalar_lea.vmem %s1, 768
      %v1327 = vld [vmem:[%s1326] sm:$0xf]
      %v1328 = vld [vmem:[%s1326 + $0x4] sm:$0xf]
      %v1329 = vld [vmem:[%s1326 + $0x8] sm:$0xf]
      %v1330 = vld [vmem:[%s1326 + $0xc] sm:$0xf]
      %v1331 = vld [vmem:[%s1326 + $0x10] sm:$0xf]
      %v1332 = vld [vmem:[%s1326 + $0x14] sm:$0xf]
      %v1333 = vld [vmem:[%s1326 + $0x18] sm:$0xf]
      %v1334 = vld [vmem:[%s1326 + $0x1c] sm:$0xf]
      %v1335 = vld [vmem:[%s1326 + $0x20] sm:$0xf]
      %v1336 = vld [vmem:[%s1326 + $0x24] sm:$0xf]
      %v1337 = vld [vmem:[%s1326 + $0x28] sm:$0xf]
      %v1338 = vld [vmem:[%s1326 + $0x2c] sm:$0xf]
      %v1339 = vld [vmem:[%s1326 + $0x30] sm:$0xf]
      %v1340 = vld [vmem:[%s1326 + $0x34] sm:$0xf]
      %v1341 = vld [vmem:[%s1326 + $0x38] sm:$0xf]
      %v1342 = vld [vmem:[%s1326 + $0x3c] sm:$0xf]
      %v1343 = vld [vmem:[%s1326 + $0x40] sm:$0xf]
      %v1344 = vld [vmem:[%s1326 + $0x44] sm:$0xf]
      %v1345 = vld [vmem:[%s1326 + $0x48] sm:$0xf]
      %v1346 = vld [vmem:[%s1326 + $0x4c] sm:$0xf]
      %v1347 = vld [vmem:[%s1326 + $0x50] sm:$0xf]
      %v1348 = vld [vmem:[%s1326 + $0x54] sm:$0xf]
      %v1349 = vld [vmem:[%s1326 + $0x58] sm:$0xf]
      %v1350 = vld [vmem:[%s1326 + $0x5c] sm:$0xf]
      %v1351 = vld [vmem:[%s1326 + $0x60] sm:$0xf]
      %v1352 = vld [vmem:[%s1326 + $0x64] sm:$0xf]
      %v1353 = vld [vmem:[%s1326 + $0x68] sm:$0xf]
      %v1354 = vld [vmem:[%s1326 + $0x6c] sm:$0xf]
      %v1355 = vld [vmem:[%s1326 + $0x70] sm:$0xf]
      %v1356 = vld [vmem:[%s1326 + $0x74] sm:$0xf]
      %v1357 = vld [vmem:[%s1326 + $0x78] sm:$0xf]
      %v1358 = vld [vmem:[%s1326 + $0x7c] sm:$0xf]
      %v1359 = vld [vmem:[%s1326 + $0x80] sm:$0xf]
      %v1360 = vld [vmem:[%s1326 + $0x84] sm:$0xf]
      %v1361 = vld [vmem:[%s1326 + $0x88] sm:$0xf]
      %v1362 = vld [vmem:[%s1326 + $0x8c] sm:$0xf]
      %v1363 = vld [vmem:[%s1326 + $0x90] sm:$0xf]
      %v1364 = vld [vmem:[%s1326 + $0x94] sm:$0xf]
      %v1365 = vld [vmem:[%s1326 + $0x98] sm:$0xf]
      %v1366 = vld [vmem:[%s1326 + $0x9c] sm:$0xf]
      %v1367 = vld [vmem:[%s1326 + $0xa0] sm:$0xf]
      %v1368 = vld [vmem:[%s1326 + $0xa4] sm:$0xf]
      %v1369 = vld [vmem:[%s1326 + $0xa8] sm:$0xf]
      %v1370 = vld [vmem:[%s1326 + $0xac] sm:$0xf]
      %v1371 = vld [vmem:[%s1326 + $0xb0] sm:$0xf]
      %v1372 = vld [vmem:[%s1326 + $0xb4] sm:$0xf]
      %v1373 = vld [vmem:[%s1326 + $0xb8] sm:$0xf]
      %v1374 = vld [vmem:[%s1326 + $0xbc] sm:$0xf]
      %v1375 = vld [vmem:[%s1326 + $0xc0] sm:$0xf]
      %v1376 = vld [vmem:[%s1326 + $0xc4] sm:$0xf]
      %v1377 = vld [vmem:[%s1326 + $0xc8] sm:$0xf]
      %v1378 = vld [vmem:[%s1326 + $0xcc] sm:$0xf]
      %v1379 = vld [vmem:[%s1326 + $0xd0] sm:$0xf]
      %v1380 = vld [vmem:[%s1326 + $0xd4] sm:$0xf]
      %v1381 = vld [vmem:[%s1326 + $0xd8] sm:$0xf]
      %v1382 = vld [vmem:[%s1326 + $0xdc] sm:$0xf]
      %v1383 = vld [vmem:[%s1326 + $0xe0] sm:$0xf]
      %v1384 = vld [vmem:[%s1326 + $0xe4] sm:$0xf]
      %v1385 = vld [vmem:[%s1326 + $0xe8] sm:$0xf]
      %v1386 = vld [vmem:[%s1326 + $0xec] sm:$0xf]
      %v1387 = vld [vmem:[%s1326 + $0xf0] sm:$0xf]
      %v1388 = vld [vmem:[%s1326 + $0xf4] sm:$0xf]
      %v1389 = vld [vmem:[%s1326 + $0xf8] sm:$0xf]
      %v1390 = vld [vmem:[%s1326 + $0xfc] sm:$0xf]
      %v1393 = vunpack.c.l.b16 %v1324
      %v1394 = vunpack.c.h.b16 %v1324
      %v1395 = vunpack.c.l.b16 %v1325
      %v1396 = vunpack.c.h.b16 %v1325
      %v1397 = vpack.c.b16 %v1007, %v1393
      %v1398 = vpack.c.b16 %v1008, %v1394
      %v1399 = vpack.c.b16 %v1009, %v1395
      %v1400 = vpack.c.b16 %v1010, %v1396
      %v1401 = vrot.slane %v1397, 2
      %v1402 = vrot.slane %v1398, 2
      %v1403 = vrot.slane %v1399, 2
      %v1404 = vrot.slane %v1400, 2
      %v1473 = vunpack.c.l.b16 %v1327
      %v1474 = vunpack.c.l.b16 %v1328
      %v1475 = vunpack.c.l.b16 %v1329
      %v1476 = vunpack.c.l.b16 %v1330
      %v1477 = vunpack.c.l.b16 %v1331
      %v1478 = vunpack.c.l.b16 %v1332
      %v1479 = vunpack.c.l.b16 %v1333
      %v1480 = vunpack.c.l.b16 %v1334
      %v1481 = vunpack.c.l.b16 %v1335
      %v1482 = vunpack.c.l.b16 %v1336
      %v1483 = vunpack.c.l.b16 %v1337
      %v1484 = vunpack.c.l.b16 %v1338
      %v1485 = vunpack.c.l.b16 %v1339
      %v1486 = vunpack.c.l.b16 %v1340
      %v1487 = vunpack.c.l.b16 %v1341
      %v1488 = vunpack.c.l.b16 %v1342
      %v1489 = vunpack.c.l.b16 %v1343
      %v1490 = vunpack.c.l.b16 %v1344
      %v1491 = vunpack.c.l.b16 %v1345
      %v1492 = vunpack.c.l.b16 %v1346
      %v1493 = vunpack.c.l.b16 %v1347
      %v1494 = vunpack.c.l.b16 %v1348
      %v1495 = vunpack.c.l.b16 %v1349
      %v1496 = vunpack.c.l.b16 %v1350
      %v1497 = vunpack.c.l.b16 %v1351
      %v1498 = vunpack.c.l.b16 %v1352
      %v1499 = vunpack.c.l.b16 %v1353
      %v1500 = vunpack.c.l.b16 %v1354
      %v1501 = vunpack.c.l.b16 %v1355
      %v1502 = vunpack.c.l.b16 %v1356
      %v1503 = vunpack.c.l.b16 %v1357
      %v1504 = vunpack.c.l.b16 %v1358
      %v1505 = vunpack.c.l.b16 %v1359
      %v1506 = vunpack.c.l.b16 %v1360
      %v1507 = vunpack.c.l.b16 %v1361
      %v1508 = vunpack.c.l.b16 %v1362
      %v1509 = vunpack.c.l.b16 %v1363
      %v1510 = vunpack.c.l.b16 %v1364
      %v1511 = vunpack.c.l.b16 %v1365
      %v1512 = vunpack.c.l.b16 %v1366
      %v1513 = vunpack.c.l.b16 %v1367
      %v1514 = vunpack.c.l.b16 %v1368
      %v1515 = vunpack.c.l.b16 %v1369
      %v1516 = vunpack.c.l.b16 %v1370
      %v1517 = vunpack.c.l.b16 %v1371
      %v1518 = vunpack.c.l.b16 %v1372
      %v1519 = vunpack.c.l.b16 %v1373
      %v1520 = vunpack.c.l.b16 %v1374
      %v1521 = vunpack.c.l.b16 %v1375
      %v1522 = vunpack.c.l.b16 %v1376
      %v1523 = vunpack.c.l.b16 %v1377
      %v1524 = vunpack.c.l.b16 %v1378
      %v1525 = vunpack.c.l.b16 %v1379
      %v1526 = vunpack.c.l.b16 %v1380
      %v1527 = vunpack.c.l.b16 %v1381
      %v1528 = vunpack.c.l.b16 %v1382
      %v1529 = vunpack.c.l.b16 %v1383
      %v1530 = vunpack.c.l.b16 %v1384
      %v1531 = vunpack.c.l.b16 %v1385
      %v1532 = vunpack.c.l.b16 %v1386
      %v1533 = vunpack.c.l.b16 %v1387
      %v1534 = vunpack.c.l.b16 %v1388
      %v1535 = vunpack.c.l.b16 %v1389
      %v1536 = vunpack.c.l.b16 %v1390
      %v1537 = vpack.c.b16 %v1474, %v1473
      %v1538 = vpack.c.b16 %v1476, %v1475
      %v1539 = vpack.c.b16 %v1478, %v1477
      %v1540 = vpack.c.b16 %v1480, %v1479
      %v1541 = vpack.c.b16 %v1482, %v1481
      %v1542 = vpack.c.b16 %v1484, %v1483
      %v1543 = vpack.c.b16 %v1486, %v1485
      %v1544 = vpack.c.b16 %v1488, %v1487
      %v1545 = vpack.c.b16 %v1490, %v1489
      %v1546 = vpack.c.b16 %v1492, %v1491
      %v1547 = vpack.c.b16 %v1494, %v1493
      %v1548 = vpack.c.b16 %v1496, %v1495
      %v1549 = vpack.c.b16 %v1498, %v1497
      %v1550 = vpack.c.b16 %v1500, %v1499
      %v1551 = vpack.c.b16 %v1502, %v1501
      %v1552 = vpack.c.b16 %v1504, %v1503
      %v1553 = vpack.c.b16 %v1506, %v1505
      %v1554 = vpack.c.b16 %v1508, %v1507
      %v1555 = vpack.c.b16 %v1510, %v1509
      %v1556 = vpack.c.b16 %v1512, %v1511
      %v1557 = vpack.c.b16 %v1514, %v1513
      %v1558 = vpack.c.b16 %v1516, %v1515
      %v1559 = vpack.c.b16 %v1518, %v1517
      %v1560 = vpack.c.b16 %v1520, %v1519
      %v1561 = vpack.c.b16 %v1522, %v1521
      %v1562 = vpack.c.b16 %v1524, %v1523
      %v1563 = vpack.c.b16 %v1526, %v1525
      %v1564 = vpack.c.b16 %v1528, %v1527
      %v1565 = vpack.c.b16 %v1530, %v1529
      %v1566 = vpack.c.b16 %v1532, %v1531
      %v1567 = vpack.c.b16 %v1534, %v1533
      %v1568 = vpack.c.b16 %v1536, %v1535
      %1601 = vmatprep.subr.bf16.mxu0 0
      %1602 = vmatpush1.bf16.msra.mxu0 %v1544
      %1603 = vmatprep.subr.bf16.mxu0 0
      %1604 = vmatpush1.bf16.msra.mxu0 %v1543
      %1605 = vmatprep.subr.bf16.mxu0 0
      %1606 = vmatpush1.bf16.msra.mxu0 %v1542
      %1607 = vmatprep.subr.bf16.mxu0 0
      %1608 = vmatpush1.bf16.msra.mxu0 %v1541
      %1609 = vmatprep.subr.bf16.mxu0 0
      %1610 = vmatpush1.bf16.msra.mxu0 %v1540
      %1611 = vmatprep.subr.bf16.mxu0 0
      %1612 = vmatpush1.bf16.msra.mxu0 %v1539
      %1613 = vmatprep.subr.bf16.mxu0 0
      %1614 = vmatpush1.bf16.msra.mxu0 %v1538
      %1615 = vmatprep.subr.bf16.mxu0 0
      %1616 = vmatpush1.bf16.msra.mxu0 %v1537
      %1617 = vmatprep.subr.bf16.mxu0 0
      %1618 = vmatpush2.bf16.msra.mxu0 %v1552
      %1619 = vmatprep.subr.bf16.mxu0 0
      %1620 = vmatpush2.bf16.msra.mxu0 %v1551
      %1621 = vmatprep.subr.bf16.mxu0 0
      %1622 = vmatpush2.bf16.msra.mxu0 %v1550
      %1623 = vmatprep.subr.bf16.mxu0 0
      %1624 = vmatpush2.bf16.msra.mxu0 %v1549
      %1625 = vmatprep.subr.bf16.mxu0 0
      %1626 = vmatpush2.bf16.msra.mxu0 %v1548
      %1627 = vmatprep.subr.bf16.mxu0 0
      %1628 = vmatpush2.bf16.msra.mxu0 %v1547
      %1629 = vmatprep.subr.bf16.mxu0 0
      %1630 = vmatpush2.bf16.msra.mxu0 %v1546
      %1631 = vmatprep.subr.bf16.mxu0 0
      %1632 = vmatpush2.bf16.msra.mxu0 %v1545
      %1633 = vmatprep.mubr.bf16.mxu0 %v1402
      %1634 = vmatmul.mubr.bf16.gmra.mxu0 %v1401
      %v1635 = vpop.f32.mrf.mxu0
      %v1636 = vadd.f32 0.0, %v1635
      %v1637 = vpop.f32.mrf.mxu0
      %v1638 = vpop.f32.mrf.mxu0
      %v1639 = vpop.f32.mrf.mxu0
      %1640 = vdwg.mxu0
      %1641 = vmatprep.subr.bf16.mxu0 0
      %1642 = vmatpush1.bf16.msra.mxu0 %v1560
      %1643 = vmatprep.subr.bf16.mxu0 0
      %1644 = vmatpush1.bf16.msra.mxu0 %v1559
      %1645 = vmatprep.subr.bf16.mxu0 0
      %1646 = vmatpush1.bf16.msra.mxu0 %v1558
      %1647 = vmatprep.subr.bf16.mxu0 0
      %1648 = vmatpush1.bf16.msra.mxu0 %v1557
      %1649 = vmatprep.subr.bf16.mxu0 0
      %1650 = vmatpush1.bf16.msra.mxu0 %v1556
      %1651 = vmatprep.subr.bf16.mxu0 0
      %1652 = vmatpush1.bf16.msra.mxu0 %v1555
      %1653 = vmatprep.subr.bf16.mxu0 0
      %1654 = vmatpush1.bf16.msra.mxu0 %v1554
      %1655 = vmatprep.subr.bf16.mxu0 0
      %1656 = vmatpush1.bf16.msra.mxu0 %v1553
      %1657 = vmatprep.subr.bf16.mxu0 0
      %1658 = vmatpush2.bf16.msra.mxu0 %v1568
      %1659 = vmatprep.subr.bf16.mxu0 0
      %1660 = vmatpush2.bf16.msra.mxu0 %v1567
      %1661 = vmatprep.subr.bf16.mxu0 0
      %1662 = vmatpush2.bf16.msra.mxu0 %v1566
      %1663 = vmatprep.subr.bf16.mxu0 0
      %1664 = vmatpush2.bf16.msra.mxu0 %v1565
      %1665 = vmatprep.subr.bf16.mxu0 0
      %1666 = vmatpush2.bf16.msra.mxu0 %v1564
      %1667 = vmatprep.subr.bf16.mxu0 0
      %1668 = vmatpush2.bf16.msra.mxu0 %v1563
      %1669 = vmatprep.subr.bf16.mxu0 0
      %1670 = vmatpush2.bf16.msra.mxu0 %v1562
      %1671 = vmatprep.subr.bf16.mxu0 0
      %1672 = vmatpush2.bf16.msra.mxu0 %v1561
      %1673 = vmatprep.mubr.bf16.mxu0 %v1404
      %1674 = vmatmul.mubr.bf16.gmra.mxu0 %v1403
      %v1675 = vpop.f32.mrf.mxu0
      %v1676 = vadd.f32 %v1636, %v1675
      %v1677 = vpop.f32.mrf.mxu0
      %v1678 = vpop.f32.mrf.mxu0
      %v1679 = vpop.f32.mrf.mxu0
      %1680 = vdwg.mxu0
      %v1681 = vadd.f32 %v1323, %v1676
      %v1682 = vld [vmem:[%s2] sm:$0x1]
      %v1684 = vlaneseq
      %v1685 = vshrl.u32 %v1684, 7
      %v1686 = vsub.s32 0, %v1685
      %v1687 = vrot.slane %v1682, %v1686
      %v1689 = vadd.f32 %v1681, %v1687
      %v1690 = vmax.f32 %v1689, 0.0
      %v1691 = vld [vmem:[%s3] sm:$0x3f]
      %1693 = vset.pattern.permute.xlu0 0
      %1694 = vperm.xlu0 %1693, %v1691
      %v1695 = vpop.permute.xlu0 %1694
      %v1697 = vmul.f32 %v1690, %v1695
      %v1698 = vpack.c.bf16 %v1697, %v1697
      %1699 = vst [vmem:[%s195] sm:$0x7] %v1698
      %p1700 = scmp.lt.s32.totalorder %s15, 1
      %s1701 = scalar_select %p1700, %s15, 1
      %s1702 = smul.addr %s1701, 4
      %s1703 = scalar_lea.vmem %s4, %s1702
      // Predicated region
      $region37: #{_lambda_.6} parent=35 // pred_check
        %p1704 = pneg %p122
      $region38: #{_lambda_.6} parent=35 // pred_check_branch
        %1706 = sbr.rel (%p1704) target = $region40
      $region39: #{_lambda_.6} parent=35 // pred_region
        _
      $region40: #{_lambda_.6} parent=35 // pred_fallthru
        _
    $region36: #{_lambda_.6} parent=5 // pred_fallthru
      _
    %p1707 = scmp.le.s32.totalorder 2, %s10
    // Predicated region
    $region41: #{_lambda_.6} parent=5 // pred_check
      %p1708 = pneg %p1707
    $region42: #{_lambda_.6} parent=5 // pred_check_branch
      %1710 = sbr.rel (%p1708) target = $region44
    $region43: #{_lambda_.6} parent=5 // pred_region
      %s1711 = ssub.s32 %s10, 2
      // Predicated region
      $region45: #{_lambda_.6} parent=43 // pred_check
        %p1712 = pneg %p128
      $region46: #{_lambda_.6} parent=43 // pred_check_branch
        %1714 = sbr.rel (%p1712) target = $region48
      $region47: #{_lambda_.6} parent=43 // pred_region
        %p1715 = scmp.lt.s32.totalorder %s16, 1
        %s1716 = scalar_select %p1715, %s16, 1
        %s1717 = smul.addr %s1716, 4
        %s1718 = scalar_lea.vmem %s4, %s1717
      $region48: #{_lambda_.6} parent=43 // pred_fallthru
        _
    $region44: #{_lambda_.6} parent=5 // pred_fallthru
      _
  $region6: #{_lambda_.6} parent=0 // loop_footer
    %s14 = sadd.s32 1, %s10
  $region7: #{_lambda_.6} parent=0 // loop_footer_branch
    %9 = sbr.rel target = $region3
  $region8: #{_lambda_.6} parent=0 // loop_exit
    _

// kernel: _lambda_.7
$region0: #{_lambda_.7}
  #allocation0 [shape = 'u32[]', space=smem, size = 0x4, offset = 0x4, fixed_abs, tag = 'smem constant byte address 0x4 - core index']
  #allocation1 [shape = 'u32[144,128]{1,0:T(1,128)}', space=vmem, size = 0x12000, scoped, tag = 'internal scratch']
  %s0 = inlined_call_operand.vmem [shape: bf16[2,6,512], index: 0, kind: input, shape index: {}]
  %s1 = inlined_call_operand.vmem [shape: bf16[2,2,512,128], index: 1, kind: input, shape index: {}]
  %s2 = inlined_call_operand.vmem [shape: f32[1,128], index: 2, kind: input, shape index: {}]
  %s3 = inlined_call_operand.vmem [shape: f32[2,1], index: 3, kind: input, shape index: {}]
  %s4 = inlined_call_operand.vmem [shape: bf16[2,2,128], index: 4, kind: output, shape index: {}]
  %s5 = sld [smem:[#allocation0]]
  $region49: #{_lambda_.7} parent=0
    _
  %s7 = ssub.s32 1, %s5
  %s8 = scalar_select 0, %s7, %s5
  loop: start=0, step=1, limit=4
  $region2: #{_lambda_.7} parent=0 // loop_pre_header
    _
  $region3: #{_lambda_.7} parent=0 // loop_header
    %s10 = sphi 0, %s14
    %p11 = scmp.ge.s32.totalorder %s10, 4
    %s20 = sphi 0, %s22
    %s23 = sphi 0, %s20
    %s24 = sphi 0, %s23
    %s40 = sphi 0, %s24
    %s44 = sphi 0, %s44
    %s46 = sphi 0, %s44
    %s47 = sphi 0, %s46
    %s61 = sphi 0, %s47
    %s65 = sphi 0, %s65
    %s67 = sphi 0, %s65
    %s68 = sphi 0, %s67
    %s82 = sphi 0, %s68
    %s86 = sphi 0, %s86
    %s88 = sphi 0, %s86
    %s89 = sphi 0, %s88
    %s103 = sphi 0, %s89
    %s109 = sphi 0, %s111
    %s112 = sphi 0, %s109
    %s113 = sphi 0, %s112
    %s129 = sphi 0, %s113
  $region4: #{_lambda_.7} parent=0 // loop_header_branch
    %13 = sbr.rel (%p11) target = $region8
  $region5: #{_lambda_.7} parent=0 // loop_body
    %s15 = ssub.s32 %s10, 1
    %s16 = ssub.s32 %s10, 2
    %s17 = sadd.s32 %s10, 1
    %s18 = ssub.s32 %s10, %s17
    %p19 = scmp.eq.s32.totalorder %s18, 0
    %s21 = sadd.s32 %s20, 1
    %s22 = scalar_select %p19, %s20, %s21
    %p25 = pneg %p19
    %p26 = scmp.eq.s32.totalorder %s10, 1
    %p27 = por %p25, %p26
    %p28 = scmp.ne.s32.totalorder %s20, %s23
    %p29 = scmp.eq.s32.totalorder %s10, 0
    %p30 = por %p28, %p29
    %p31 = scmp.ne.s32.totalorder %s20, %s23
    %p32 = scmp.eq.s32.totalorder %s15, 1
    %p33 = por %p31, %p32
    %p34 = scmp.ne.s32.totalorder %s23, %s24
    %p35 = scmp.eq.s32.totalorder %s15, 0
    %p36 = por %p34, %p35
    %p37 = scmp.ne.s32.totalorder %s23, %s24
    %p38 = scmp.eq.s32.totalorder %s16, 1
    %p39 = por %p37, %p38
    %p41 = scmp.ne.s32.totalorder %s24, %s40
    %p42 = scmp.eq.s32.totalorder %s16, 0
    %p43 = por %p41, %p42
    %s45 = sadd.s32 %s44, 1
    %p48 = scmp.eq.s32.totalorder %s10, 1
    %p49 = scmp.ne.s32.totalorder %s44, %s46
    %p50 = scmp.eq.s32.totalorder %s10, 0
    %p51 = por %p49, %p50
    %p52 = scmp.ne.s32.totalorder %s44, %s46
    %p53 = scmp.eq.s32.totalorder %s15, 1
    %p54 = por %p52, %p53
    %p55 = scmp.ne.s32.totalorder %s46, %s47
    %p56 = scmp.eq.s32.totalorder %s15, 0
    %p57 = por %p55, %p56
    %p58 = scmp.ne.s32.totalorder %s46, %s47
    %p59 = scmp.eq.s32.totalorder %s16, 1
    %p60 = por %p58, %p59
    %p62 = scmp.ne.s32.totalorder %s47, %s61
    %p63 = scmp.eq.s32.totalorder %s16, 0
    %p64 = por %p62, %p63
    %s66 = sadd.s32 %s65, 1
    %p69 = scmp.eq.s32.totalorder %s10, 1
    %p70 = scmp.ne.s32.totalorder %s65, %s67
    %p71 = scmp.eq.s32.totalorder %s10, 0
    %p72 = por %p70, %p71
    %p73 = scmp.ne.s32.totalorder %s65, %s67
    %p74 = scmp.eq.s32.totalorder %s15, 1
    %p75 = por %p73, %p74
    %p76 = scmp.ne.s32.totalorder %s67, %s68
    %p77 = scmp.eq.s32.totalorder %s15, 0
    %p78 = por %p76, %p77
    %p79 = scmp.ne.s32.totalorder %s67, %s68
    %p80 = scmp.eq.s32.totalorder %s16, 1
    %p81 = por %p79, %p80
    %p83 = scmp.ne.s32.totalorder %s68, %s82
    %p84 = scmp.eq.s32.totalorder %s16, 0
    %p85 = por %p83, %p84
    %s87 = sadd.s32 %s86, 1
    %p90 = scmp.eq.s32.totalorder %s10, 1
    %p91 = scmp.ne.s32.totalorder %s86, %s88
    %p92 = scmp.eq.s32.totalorder %s10, 0
    %p93 = por %p91, %p92
    %p94 = scmp.ne.s32.totalorder %s86, %s88
    %p95 = scmp.eq.s32.totalorder %s15, 1
    %p96 = por %p94, %p95
    %p97 = scmp.ne.s32.totalorder %s88, %s89
    %p98 = scmp.eq.s32.totalorder %s15, 0
    %p99 = por %p97, %p98
    %p100 = scmp.ne.s32.totalorder %s88, %s89
    %p101 = scmp.eq.s32.totalorder %s16, 1
    %p102 = por %p100, %p101
    %p104 = scmp.ne.s32.totalorder %s89, %s103
    %p105 = scmp.eq.s32.totalorder %s16, 0
    %p106 = por %p104, %p105
    %s107 = ssub.s32 %s10, %s17
    %p108 = scmp.eq.s32.totalorder %s107, 0
    %s110 = sadd.s32 %s109, 1
    %s111 = scalar_select %p108, %s109, %s110
    %p114 = pneg %p108
    %p115 = scmp.eq.s32.totalorder %s10, 1
    %p116 = por %p114, %p115
    %p117 = scmp.ne.s32.totalorder %s109, %s112
    %p118 = scmp.eq.s32.totalorder %s10, 0
    %p119 = por %p117, %p118
    %p120 = scmp.ne.s32.totalorder %s109, %s112
    %p121 = scmp.eq.s32.totalorder %s15, 1
    %p122 = por %p120, %p121
    %p123 = scmp.ne.s32.totalorder %s112, %s113
    %p124 = scmp.eq.s32.totalorder %s15, 0
    %p125 = por %p123, %p124
    %p126 = scmp.ne.s32.totalorder %s112, %s113
    %p127 = scmp.eq.s32.totalorder %s16, 1
    %p128 = por %p126, %p127
    %p130 = scmp.ne.s32.totalorder %s113, %s129
    %p131 = scmp.eq.s32.totalorder %s16, 0
    %p132 = por %p130, %p131
    %p133 = scmp.le.s32.totalorder 1, %s10
    %p134 = scmp.lt.s32.totalorder %s10, 3
    %p135 = pnand %p133, %p134
    %p136 = pneg %p135
    // Predicated region
    $region9: #{_lambda_.7} parent=5 // pred_check
      _
    $region10: #{_lambda_.7} parent=5 // pred_check_branch
      %138 = sbr.rel (%p135) target = $region12
    $region11: #{_lambda_.7} parent=5 // pred_region
      %s139 = ssub.s32 %s10, 1
      // Predicated region
      $region13: #{_lambda_.7} parent=11 // pred_check
        %p140 = pneg %p57
      $region14: #{_lambda_.7} parent=11 // pred_check_branch
        %142 = sbr.rel (%p140) target = $region16
      $region15: #{_lambda_.7} parent=11 // pred_region
        _
      $region16: #{_lambda_.7} parent=11 // pred_fallthru
        _
      // Predicated region
      $region17: #{_lambda_.7} parent=11 // pred_check
        %p143 = pneg %p78
      $region18: #{_lambda_.7} parent=11 // pred_check_branch
        %145 = sbr.rel (%p143) target = $region20
      $region19: #{_lambda_.7} parent=11 // pred_region
        _
      $region20: #{_lambda_.7} parent=11 // pred_fallthru
        _
      // Predicated region
      $region21: #{_lambda_.7} parent=11 // pred_check
        %p146 = pneg %p99
      $region22: #{_lambda_.7} parent=11 // pred_check_branch
        %148 = sbr.rel (%p146) target = $region24
      $region23: #{_lambda_.7} parent=11 // pred_region
        _
      $region24: #{_lambda_.7} parent=11 // pred_fallthru
        _
    $region12: #{_lambda_.7} parent=5 // pred_fallthru
      _
    %p149 = scmp.lt.s32.totalorder %s10, 2
    // Predicated region
    $region25: #{_lambda_.7} parent=5 // pred_check
      %p150 = pneg %p149
    $region26: #{_lambda_.7} parent=5 // pred_check_branch
      %152 = sbr.rel (%p150) target = $region28
    $region27: #{_lambda_.7} parent=5 // pred_region
      // Predicated region
      $region29: #{_lambda_.7} parent=27 // pred_check
        %p153 = pneg %p30
      $region30: #{_lambda_.7} parent=27 // pred_check_branch
        %155 = sbr.rel (%p153) target = $region32
      $region31: #{_lambda_.7} parent=27 // pred_region
        %p156 = scmp.lt.s32.totalorder %s10, 1
        %s157 = scalar_select %p156, %s10, 1
        %s158 = smul.addr %s157, 4
        %s159 = smul.addr %s158, 4
        %s160 = scalar_lea.vmem %s0, %s159
      $region32: #{_lambda_.7} parent=27 // pred_fallthru
        _
    $region28: #{_lambda_.7} parent=5 // pred_fallthru
      _
    %p161 = scmp.le.s32.totalorder 1, %s10
    %p162 = scmp.lt.s32.totalorder %s10, 3
    %p163 = pnand %p161, %p162
    %p164 = pneg %p163
    // Predicated region
    $region33: #{_lambda_.7} parent=5 // pred_check
      _
    $region34: #{_lambda_.7} parent=5 // pred_check_branch
      %166 = sbr.rel (%p163) target = $region36
    $region35: #{_lambda_.7} parent=5 // pred_region
      %s167 = ssub.s32 %s10, 1
      %p168 = scmp.lt.s32.totalorder %s15, 1
      %s169 = scalar_select %p168, %s15, 1
      %s170 = smul.addr %s169, 4
      %s171 = smul.addr %s170, 4
      %s172 = scalar_lea.vmem %s0, %s171
      %p173 = pneg %p36
      %p174 = pneg %p33
      %p175 = pneg %p57
      %p176 = pneg %p54
      %p177 = pneg %p78
      %p178 = pneg %p75
      %p179 = pneg %p99
      %p180 = pneg %p96
      %p181 = pneg %p125
      %p182 = pneg %p122
      %p183 = scmp.lt.s32.totalorder %s15, 1
      %s184 = scalar_select %p183, %s15, 1
      %s185 = scalar_lea.vmem %s4, %s184
      %p186 = scmp.lt.s32.totalorder %s15, 1
      %s187 = scalar_select %p186, %s15, 1
      %s188 = smul.addr %s187, 4
      %s189 = smul.addr %s188, 4
      %s190 = scalar_lea.vmem %s0, %s189
      %p191 = scmp.lt.s32.totalorder %s15, 1
      %s192 = scalar_select %p191, %s15, 1
      %s193 = scalar_lea.vmem %s4, %s192
      %v195 = vld [vmem:[%s190] sm:$0x11]
      %v196 = vld [vmem:[%s190 + $0x8] sm:$0x11]
      %v197 = vld [vmem:[%s1] sm:$0xf]
      %v198 = vld [vmem:[%s1 + $0x4] sm:$0xf]
      %v199 = vld [vmem:[%s1 + $0x8] sm:$0xf]
      %v200 = vld [vmem:[%s1 + $0xc] sm:$0xf]
      %v201 = vld [vmem:[%s1 + $0x10] sm:$0xf]
      %v202 = vld [vmem:[%s1 + $0x14] sm:$0xf]
      %v203 = vld [vmem:[%s1 + $0x18] sm:$0xf]
      %v204 = vld [vmem:[%s1 + $0x1c] sm:$0xf]
      %v205 = vld [vmem:[%s1 + $0x20] sm:$0xf]
      %v206 = vld [vmem:[%s1 + $0x24] sm:$0xf]
      %v207 = vld [vmem:[%s1 + $0x28] sm:$0xf]
      %v208 = vld [vmem:[%s1 + $0x2c] sm:$0xf]
      %v209 = vld [vmem:[%s1 + $0x30] sm:$0xf]
      %v210 = vld [vmem:[%s1 + $0x34] sm:$0xf]
      %v211 = vld [vmem:[%s1 + $0x38] sm:$0xf]
      %v212 = vld [vmem:[%s1 + $0x3c] sm:$0xf]
      %v213 = vld [vmem:[%s1 + $0x40] sm:$0xf]
      %v214 = vld [vmem:[%s1 + $0x44] sm:$0xf]
      %v215 = vld [vmem:[%s1 + $0x48] sm:$0xf]
      %v216 = vld [vmem:[%s1 + $0x4c] sm:$0xf]
      %v217 = vld [vmem:[%s1 + $0x50] sm:$0xf]
      %v218 = vld [vmem:[%s1 + $0x54] sm:$0xf]
      %v219 = vld [vmem:[%s1 + $0x58] sm:$0xf]
      %v220 = vld [vmem:[%s1 + $0x5c] sm:$0xf]
      %v221 = vld [vmem:[%s1 + $0x60] sm:$0xf]
      %v222 = vld [vmem:[%s1 + $0x64] sm:$0xf]
      %v223 = vld [vmem:[%s1 + $0x68] sm:$0xf]
      %v224 = vld [vmem:[%s1 + $0x6c] sm:$0xf]
      %v225 = vld [vmem:[%s1 + $0x70] sm:$0xf]
      %v226 = vld [vmem:[%s1 + $0x74] sm:$0xf]
      %v227 = vld [vmem:[%s1 + $0x78] sm:$0xf]
      %v228 = vld [vmem:[%s1 + $0x7c] sm:$0xf]
      %v229 = vld [vmem:[%s1 + $0x80] sm:$0xf]
      %v230 = vld [vmem:[%s1 + $0x84] sm:$0xf]
      %v231 = vld [vmem:[%s1 + $0x88] sm:$0xf]
      %v232 = vld [vmem:[%s1 + $0x8c] sm:$0xf]
      %v233 = vld [vmem:[%s1 + $0x90] sm:$0xf]
      %v234 = vld [vmem:[%s1 + $0x94] sm:$0xf]
      %v235 = vld [vmem:[%s1 + $0x98] sm:$0xf]
      %v236 = vld [vmem:[%s1 + $0x9c] sm:$0xf]
      %v237 = vld [vmem:[%s1 + $0xa0] sm:$0xf]
      %v238 = vld [vmem:[%s1 + $0xa4] sm:$0xf]
      %v239 = vld [vmem:[%s1 + $0xa8] sm:$0xf]
      %v240 = vld [vmem:[%s1 + $0xac] sm:$0xf]
      %v241 = vld [vmem:[%s1 + $0xb0] sm:$0xf]
      %v242 = vld [vmem:[%s1 + $0xb4] sm:$0xf]
      %v243 = vld [vmem:[%s1 + $0xb8] sm:$0xf]
      %v244 = vld [vmem:[%s1 + $0xbc] sm:$0xf]
      %v245 = vld [vmem:[%s1 + $0xc0] sm:$0xf]
      %v246 = vld [vmem:[%s1 + $0xc4] sm:$0xf]
      %v247 = vld [vmem:[%s1 + $0xc8] sm:$0xf]
      %v248 = vld [vmem:[%s1 + $0xcc] sm:$0xf]
      %v249 = vld [vmem:[%s1 + $0xd0] sm:$0xf]
      %v250 = vld [vmem:[%s1 + $0xd4] sm:$0xf]
      %v251 = vld [vmem:[%s1 + $0xd8] sm:$0xf]
      %v252 = vld [vmem:[%s1 + $0xdc] sm:$0xf]
      %v253 = vld [vmem:[%s1 + $0xe0] sm:$0xf]
      %v254 = vld [vmem:[%s1 + $0xe4] sm:$0xf]
      %v255 = vld [vmem:[%s1 + $0xe8] sm:$0xf]
      %v256 = vld [vmem:[%s1 + $0xec] sm:$0xf]
      %v257 = vld [vmem:[%s1 + $0xf0] sm:$0xf]
      %v258 = vld [vmem:[%s1 + $0xf4] sm:$0xf]
      %v259 = vld [vmem:[%s1 + $0xf8] sm:$0xf]
      %v260 = vld [vmem:[%s1 + $0xfc] sm:$0xf]
      %v261 = vld [vmem:[%s190] sm:$0x33]
      %v262 = vld [vmem:[%s190 + $0x8] sm:$0x33]
      %s263 = scalar_lea.vmem %s1, 256
      %v264 = vld [vmem:[%s263] sm:$0xf]
      %v265 = vld [vmem:[%s263 + $0x4] sm:$0xf]
      %v266 = vld [vmem:[%s263 + $0x8] sm:$0xf]
      %v267 = vld [vmem:[%s263 + $0xc] sm:$0xf]
      %v268 = vld [vmem:[%s263 + $0x10] sm:$0xf]
      %v269 = vld [vmem:[%s263 + $0x14] sm:$0xf]
      %v270 = vld [vmem:[%s263 + $0x18] sm:$0xf]
      %v271 = vld [vmem:[%s263 + $0x1c] sm:$0xf]
      %v272 = vld [vmem:[%s263 + $0x20] sm:$0xf]
      %v273 = vld [vmem:[%s263 + $0x24] sm:$0xf]
      %v274 = vld [vmem:[%s263 + $0x28] sm:$0xf]
      %v275 = vld [vmem:[%s263 + $0x2c] sm:$0xf]
      %v276 = vld [vmem:[%s263 + $0x30] sm:$0xf]
      %v277 = vld [vmem:[%s263 + $0x34] sm:$0xf]
      %v278 = vld [vmem:[%s263 + $0x38] sm:$0xf]
      %v279 = vld [vmem:[%s263 + $0x3c] sm:$0xf]
      %v280 = vld [vmem:[%s263 + $0x40] sm:$0xf]
      %v281 = vld [vmem:[%s263 + $0x44] sm:$0xf]
      %v282 = vld [vmem:[%s263 + $0x48] sm:$0xf]
      %v283 = vld [vmem:[%s263 + $0x4c] sm:$0xf]
      %v284 = vld [vmem:[%s263 + $0x50] sm:$0xf]
      %v285 = vld [vmem:[%s263 + $0x54] sm:$0xf]
      %v286 = vld [vmem:[%s263 + $0x58] sm:$0xf]
      %v287 = vld [vmem:[%s263 + $0x5c] sm:$0xf]
      %v288 = vld [vmem:[%s263 + $0x60] sm:$0xf]
      %v289 = vld [vmem:[%s263 + $0x64] sm:$0xf]
      %v290 = vld [vmem:[%s263 + $0x68] sm:$0xf]
      %v291 = vld [vmem:[%s263 + $0x6c] sm:$0xf]
      %v292 = vld [vmem:[%s263 + $0x70] sm:$0xf]
      %v293 = vld [vmem:[%s263 + $0x74] sm:$0xf]
      %v294 = vld [vmem:[%s263 + $0x78] sm:$0xf]
      %v295 = vld [vmem:[%s263 + $0x7c] sm:$0xf]
      %v296 = vld [vmem:[%s263 + $0x80] sm:$0xf]
      %v297 = vld [vmem:[%s263 + $0x84] sm:$0xf]
      %v298 = vld [vmem:[%s263 + $0x88] sm:$0xf]
      %v299 = vld [vmem:[%s263 + $0x8c] sm:$0xf]
      %v300 = vld [vmem:[%s263 + $0x90] sm:$0xf]
      %v301 = vld [vmem:[%s263 + $0x94] sm:$0xf]
      %v302 = vld [vmem:[%s263 + $0x98] sm:$0xf]
      %v303 = vld [vmem:[%s263 + $0x9c] sm:$0xf]
      %v304 = vld [vmem:[%s263 + $0xa0] sm:$0xf]
      %v305 = vld [vmem:[%s263 + $0xa4] sm:$0xf]
      %v306 = vld [vmem:[%s263 + $0xa8] sm:$0xf]
      %v307 = vld [vmem:[%s263 + $0xac] sm:$0xf]
      %v308 = vld [vmem:[%s263 + $0xb0] sm:$0xf]
      %v309 = vld [vmem:[%s263 + $0xb4] sm:$0xf]
      %v310 = vld [vmem:[%s263 + $0xb8] sm:$0xf]
      %v311 = vld [vmem:[%s263 + $0xbc] sm:$0xf]
      %v312 = vld [vmem:[%s263 + $0xc0] sm:$0xf]
      %v313 = vld [vmem:[%s263 + $0xc4] sm:$0xf]
      %v314 = vld [vmem:[%s263 + $0xc8] sm:$0xf]
      %v315 = vld [vmem:[%s263 + $0xcc] sm:$0xf]
      %v316 = vld [vmem:[%s263 + $0xd0] sm:$0xf]
      %v317 = vld [vmem:[%s263 + $0xd4] sm:$0xf]
      %v318 = vld [vmem:[%s263 + $0xd8] sm:$0xf]
      %v319 = vld [vmem:[%s263 + $0xdc] sm:$0xf]
      %v320 = vld [vmem:[%s263 + $0xe0] sm:$0xf]
      %v321 = vld [vmem:[%s263 + $0xe4] sm:$0xf]
      %v322 = vld [vmem:[%s263 + $0xe8] sm:$0xf]
      %v323 = vld [vmem:[%s263 + $0xec] sm:$0xf]
      %v324 = vld [vmem:[%s263 + $0xf0] sm:$0xf]
      %v325 = vld [vmem:[%s263 + $0xf4] sm:$0xf]
      %v326 = vld [vmem:[%s263 + $0xf8] sm:$0xf]
      %v327 = vld [vmem:[%s263 + $0xfc] sm:$0xf]
      %v330 = vunpack.c.l.b16 %v261
      %v331 = vunpack.c.h.b16 %v261
      %v332 = vunpack.c.l.b16 %v262
      %v333 = vunpack.c.h.b16 %v262
      %v334 = vpack.c.b16 %v330, %v330
      %v335 = vpack.c.b16 %v331, %v331
      %v336 = vpack.c.b16 %v332, %v332
      %v337 = vpack.c.b16 %v333, %v333
      %v339 = vshrl.u32 %v334, 16
      %v341 = vshll.u32 %v334, 16
      %v343 = vrot.slane %v341, 1
      %v344 = vor.u32 %v339, %v343
      %v346 = vshrl.u32 %v335, 16
      %v348 = vshll.u32 %v335, 16
      %v350 = vrot.slane %v348, 1
      %v351 = vor.u32 %v346, %v350
      %v353 = vshrl.u32 %v336, 16
      %v355 = vshll.u32 %v336, 16
      %v357 = vrot.slane %v355, 1
      %v358 = vor.u32 %v353, %v357
      %v360 = vshrl.u32 %v337, 16
      %v362 = vshll.u32 %v337, 16
      %v364 = vrot.slane %v362, 1
      %v365 = vor.u32 %v360, %v364
      %v434 = vunpack.c.l.b16 %v264
      %v435 = vunpack.c.l.b16 %v265
      %v436 = vunpack.c.l.b16 %v266
      %v437 = vunpack.c.l.b16 %v267
      %v438 = vunpack.c.l.b16 %v268
      %v439 = vunpack.c.l.b16 %v269
      %v440 = vunpack.c.l.b16 %v270
      %v441 = vunpack.c.l.b16 %v271
      %v442 = vunpack.c.l.b16 %v272
      %v443 = vunpack.c.l.b16 %v273
      %v444 = vunpack.c.l.b16 %v274
      %v445 = vunpack.c.l.b16 %v275
      %v446 = vunpack.c.l.b16 %v276
      %v447 = vunpack.c.l.b16 %v277
      %v448 = vunpack.c.l.b16 %v278
      %v449 = vunpack.c.l.b16 %v279
      %v450 = vunpack.c.l.b16 %v280
      %v451 = vunpack.c.l.b16 %v281
      %v452 = vunpack.c.l.b16 %v282
      %v453 = vunpack.c.l.b16 %v283
      %v454 = vunpack.c.l.b16 %v284
      %v455 = vunpack.c.l.b16 %v285
      %v456 = vunpack.c.l.b16 %v286
      %v457 = vunpack.c.l.b16 %v287
      %v458 = vunpack.c.l.b16 %v288
      %v459 = vunpack.c.l.b16 %v289
      %v460 = vunpack.c.l.b16 %v290
      %v461 = vunpack.c.l.b16 %v291
      %v462 = vunpack.c.l.b16 %v292
      %v463 = vunpack.c.l.b16 %v293
      %v464 = vunpack.c.l.b16 %v294
      %v465 = vunpack.c.l.b16 %v295
      %v466 = vunpack.c.l.b16 %v296
      %v467 = vunpack.c.l.b16 %v297
      %v468 = vunpack.c.l.b16 %v298
      %v469 = vunpack.c.l.b16 %v299
      %v470 = vunpack.c.l.b16 %v300
      %v471 = vunpack.c.l.b16 %v301
      %v472 = vunpack.c.l.b16 %v302
      %v473 = vunpack.c.l.b16 %v303
      %v474 = vunpack.c.l.b16 %v304
      %v475 = vunpack.c.l.b16 %v305
      %v476 = vunpack.c.l.b16 %v306
      %v477 = vunpack.c.l.b16 %v307
      %v478 = vunpack.c.l.b16 %v308
      %v479 = vunpack.c.l.b16 %v309
      %v480 = vunpack.c.l.b16 %v310
      %v481 = vunpack.c.l.b16 %v311
      %v482 = vunpack.c.l.b16 %v312
      %v483 = vunpack.c.l.b16 %v313
      %v484 = vunpack.c.l.b16 %v314
      %v485 = vunpack.c.l.b16 %v315
      %v486 = vunpack.c.l.b16 %v316
      %v487 = vunpack.c.l.b16 %v317
      %v488 = vunpack.c.l.b16 %v318
      %v489 = vunpack.c.l.b16 %v319
      %v490 = vunpack.c.l.b16 %v320
      %v491 = vunpack.c.l.b16 %v321
      %v492 = vunpack.c.l.b16 %v322
      %v493 = vunpack.c.l.b16 %v323
      %v494 = vunpack.c.l.b16 %v324
      %v495 = vunpack.c.l.b16 %v325
      %v496 = vunpack.c.l.b16 %v326
      %v497 = vunpack.c.l.b16 %v327
      %v498 = vpack.c.b16 %v435, %v434
      %v499 = vpack.c.b16 %v437, %v436
      %v500 = vpack.c.b16 %v439, %v438
      %v501 = vpack.c.b16 %v441, %v440
      %v502 = vpack.c.b16 %v443, %v442
      %v503 = vpack.c.b16 %v445, %v444
      %v504 = vpack.c.b16 %v447, %v446
      %v505 = vpack.c.b16 %v449, %v448
      %v506 = vpack.c.b16 %v451, %v450
      %v507 = vpack.c.b16 %v453, %v452
      %v508 = vpack.c.b16 %v455, %v454
      %v509 = vpack.c.b16 %v457, %v456
      %v510 = vpack.c.b16 %v459, %v458
      %v511 = vpack.c.b16 %v461, %v460
      %v512 = vpack.c.b16 %v463, %v462
      %v513 = vpack.c.b16 %v465, %v464
      %v514 = vpack.c.b16 %v467, %v466
      %v515 = vpack.c.b16 %v469, %v468
      %v516 = vpack.c.b16 %v471, %v470
      %v517 = vpack.c.b16 %v473, %v472
      %v518 = vpack.c.b16 %v475, %v474
      %v519 = vpack.c.b16 %v477, %v476
      %v520 = vpack.c.b16 %v479, %v478
      %v521 = vpack.c.b16 %v481, %v480
      %v522 = vpack.c.b16 %v483, %v482
      %v523 = vpack.c.b16 %v485, %v484
      %v524 = vpack.c.b16 %v487, %v486
      %v525 = vpack.c.b16 %v489, %v488
      %v526 = vpack.c.b16 %v491, %v490
      %v527 = vpack.c.b16 %v493, %v492
      %v528 = vpack.c.b16 %v495, %v494
      %v529 = vpack.c.b16 %v497, %v496
      %562 = vmatprep.subr.bf16.mxu0 0
      %563 = vmatpush1.bf16.msra.mxu0 %v505
      %564 = vmatprep.subr.bf16.mxu0 0
      %565 = vmatpush1.bf16.msra.mxu0 %v504
      %566 = vmatprep.subr.bf16.mxu0 0
      %567 = vmatpush1.bf16.msra.mxu0 %v503
      %568 = vmatprep.subr.bf16.mxu0 0
      %569 = vmatpush1.bf16.msra.mxu0 %v502
      %570 = vmatprep.subr.bf16.mxu0 0
      %571 = vmatpush1.bf16.msra.mxu0 %v501
      %572 = vmatprep.subr.bf16.mxu0 0
      %573 = vmatpush1.bf16.msra.mxu0 %v500
      %574 = vmatprep.subr.bf16.mxu0 0
      %575 = vmatpush1.bf16.msra.mxu0 %v499
      %576 = vmatprep.subr.bf16.mxu0 0
      %577 = vmatpush1.bf16.msra.mxu0 %v498
      %578 = vmatprep.subr.bf16.mxu0 0
      %579 = vmatpush2.bf16.msra.mxu0 %v513
      %580 = vmatprep.subr.bf16.mxu0 0
      %581 = vmatpush2.bf16.msra.mxu0 %v512
      %582 = vmatprep.subr.bf16.mxu0 0
      %583 = vmatpush2.bf16.msra.mxu0 %v511
      %584 = vmatprep.subr.bf16.mxu0 0
      %585 = vmatpush2.bf16.msra.mxu0 %v510
      %586 = vmatprep.subr.bf16.mxu0 0
      %587 = vmatpush2.bf16.msra.mxu0 %v509
      %588 = vmatprep.subr.bf16.mxu0 0
      %589 = vmatpush2.bf16.msra.mxu0 %v508
      %590 = vmatprep.subr.bf16.mxu0 0
      %591 = vmatpush2.bf16.msra.mxu0 %v507
      %592 = vmatprep.subr.bf16.mxu0 0
      %593 = vmatpush2.bf16.msra.mxu0 %v506
      %594 = vmatprep.mubr.bf16.mxu0 %v351
      %595 = vmatmul.mubr.bf16.gmra.mxu0 %v344
      %v596 = vpop.f32.mrf.mxu0
      %v597 = vadd.f32 0.0, %v596
      %v598 = vpop.f32.mrf.mxu0
      %v599 = vpop.f32.mrf.mxu0
      %v600 = vpop.f32.mrf.mxu0
      %601 = vdwg.mxu0
      %602 = vmatprep.subr.bf16.mxu0 0
      %603 = vmatpush1.bf16.msra.mxu0 %v521
      %604 = vmatprep.subr.bf16.mxu0 0
      %605 = vmatpush1.bf16.msra.mxu0 %v520
      %606 = vmatprep.subr.bf16.mxu0 0
      %607 = vmatpush1.bf16.msra.mxu0 %v519
      %608 = vmatprep.subr.bf16.mxu0 0
      %609 = vmatpush1.bf16.msra.mxu0 %v518
      %610 = vmatprep.subr.bf16.mxu0 0
      %611 = vmatpush1.bf16.msra.mxu0 %v517
      %612 = vmatprep.subr.bf16.mxu0 0
      %613 = vmatpush1.bf16.msra.mxu0 %v516
      %614 = vmatprep.subr.bf16.mxu0 0
      %615 = vmatpush1.bf16.msra.mxu0 %v515
      %616 = vmatprep.subr.bf16.mxu0 0
      %617 = vmatpush1.bf16.msra.mxu0 %v514
      %618 = vmatprep.subr.bf16.mxu0 0
      %619 = vmatpush2.bf16.msra.mxu0 %v529
      %620 = vmatprep.subr.bf16.mxu0 0
      %621 = vmatpush2.bf16.msra.mxu0 %v528
      %622 = vmatprep.subr.bf16.mxu0 0
      %623 = vmatpush2.bf16.msra.mxu0 %v527
      %624 = vmatprep.subr.bf16.mxu0 0
      %625 = vmatpush2.bf16.msra.mxu0 %v526
      %626 = vmatprep.subr.bf16.mxu0 0
      %627 = vmatpush2.bf16.msra.mxu0 %v525
      %628 = vmatprep.subr.bf16.mxu0 0
      %629 = vmatpush2.bf16.msra.mxu0 %v524
      %630 = vmatprep.subr.bf16.mxu0 0
      %631 = vmatpush2.bf16.msra.mxu0 %v523
      %632 = vmatprep.subr.bf16.mxu0 0
      %633 = vmatpush2.bf16.msra.mxu0 %v522
      %634 = vmatprep.mubr.bf16.mxu0 %v365
      %635 = vmatmul.mubr.bf16.gmra.mxu0 %v358
      %v636 = vpop.f32.mrf.mxu0
      %v637 = vadd.f32 %v597, %v636
      %v638 = vpop.f32.mrf.mxu0
      %v639 = vpop.f32.mrf.mxu0
      %v640 = vpop.f32.mrf.mxu0
      %641 = vdwg.mxu0
      %v644 = vunpack.c.l.b16 %v195
      %v645 = vunpack.c.h.b16 %v195
      %v646 = vunpack.c.l.b16 %v196
      %v647 = vunpack.c.h.b16 %v196
      %v648 = vpack.c.b16 %v644, %v644
      %v649 = vpack.c.b16 %v645, %v645
      %v650 = vpack.c.b16 %v646, %v646
      %v651 = vpack.c.b16 %v647, %v647
      %v720 = vunpack.c.l.b16 %v197
      %v721 = vunpack.c.l.b16 %v198
      %v722 = vunpack.c.l.b16 %v199
      %v723 = vunpack.c.l.b16 %v200
      %v724 = vunpack.c.l.b16 %v201
      %v725 = vunpack.c.l.b16 %v202
      %v726 = vunpack.c.l.b16 %v203
      %v727 = vunpack.c.l.b16 %v204
      %v728 = vunpack.c.l.b16 %v205
      %v729 = vunpack.c.l.b16 %v206
      %v730 = vunpack.c.l.b16 %v207
      %v731 = vunpack.c.l.b16 %v208
      %v732 = vunpack.c.l.b16 %v209
      %v733 = vunpack.c.l.b16 %v210
      %v734 = vunpack.c.l.b16 %v211
      %v735 = vunpack.c.l.b16 %v212
      %v736 = vunpack.c.l.b16 %v213
      %v737 = vunpack.c.l.b16 %v214
      %v738 = vunpack.c.l.b16 %v215
      %v739 = vunpack.c.l.b16 %v216
      %v740 = vunpack.c.l.b16 %v217
      %v741 = vunpack.c.l.b16 %v218
      %v742 = vunpack.c.l.b16 %v219
      %v743 = vunpack.c.l.b16 %v220
      %v744 = vunpack.c.l.b16 %v221
      %v745 = vunpack.c.l.b16 %v222
      %v746 = vunpack.c.l.b16 %v223
      %v747 = vunpack.c.l.b16 %v224
      %v748 = vunpack.c.l.b16 %v225
      %v749 = vunpack.c.l.b16 %v226
      %v750 = vunpack.c.l.b16 %v227
      %v751 = vunpack.c.l.b16 %v228
      %v752 = vunpack.c.l.b16 %v229
      %v753 = vunpack.c.l.b16 %v230
      %v754 = vunpack.c.l.b16 %v231
      %v755 = vunpack.c.l.b16 %v232
      %v756 = vunpack.c.l.b16 %v233
      %v757 = vunpack.c.l.b16 %v234
      %v758 = vunpack.c.l.b16 %v235
      %v759 = vunpack.c.l.b16 %v236
      %v760 = vunpack.c.l.b16 %v237
      %v761 = vunpack.c.l.b16 %v238
      %v762 = vunpack.c.l.b16 %v239
      %v763 = vunpack.c.l.b16 %v240
      %v764 = vunpack.c.l.b16 %v241
      %v765 = vunpack.c.l.b16 %v242
      %v766 = vunpack.c.l.b16 %v243
      %v767 = vunpack.c.l.b16 %v244
      %v768 = vunpack.c.l.b16 %v245
      %v769 = vunpack.c.l.b16 %v246
      %v770 = vunpack.c.l.b16 %v247
      %v771 = vunpack.c.l.b16 %v248
      %v772 = vunpack.c.l.b16 %v249
      %v773 = vunpack.c.l.b16 %v250
      %v774 = vunpack.c.l.b16 %v251
      %v775 = vunpack.c.l.b16 %v252
      %v776 = vunpack.c.l.b16 %v253
      %v777 = vunpack.c.l.b16 %v254
      %v778 = vunpack.c.l.b16 %v255
      %v779 = vunpack.c.l.b16 %v256
      %v780 = vunpack.c.l.b16 %v257
      %v781 = vunpack.c.l.b16 %v258
      %v782 = vunpack.c.l.b16 %v259
      %v783 = vunpack.c.l.b16 %v260
      %v784 = vpack.c.b16 %v721, %v720
      %v785 = vpack.c.b16 %v723, %v722
      %v786 = vpack.c.b16 %v725, %v724
      %v787 = vpack.c.b16 %v727, %v726
      %v788 = vpack.c.b16 %v729, %v728
      %v789 = vpack.c.b16 %v731, %v730
      %v790 = vpack.c.b16 %v733, %v732
      %v791 = vpack.c.b16 %v735, %v734
      %v792 = vpack.c.b16 %v737, %v736
      %v793 = vpack.c.b16 %v739, %v738
      %v794 = vpack.c.b16 %v741, %v740
      %v795 = vpack.c.b16 %v743, %v742
      %v796 = vpack.c.b16 %v745, %v744
      %v797 = vpack.c.b16 %v747, %v746
      %v798 = vpack.c.b16 %v749, %v748
      %v799 = vpack.c.b16 %v751, %v750
      %v800 = vpack.c.b16 %v753, %v752
      %v801 = vpack.c.b16 %v755, %v754
      %v802 = vpack.c.b16 %v757, %v756
      %v803 = vpack.c.b16 %v759, %v758
      %v804 = vpack.c.b16 %v761, %v760
      %v805 = vpack.c.b16 %v763, %v762
      %v806 = vpack.c.b16 %v765, %v764
      %v807 = vpack.c.b16 %v767, %v766
      %v808 = vpack.c.b16 %v769, %v768
      %v809 = vpack.c.b16 %v771, %v770
      %v810 = vpack.c.b16 %v773, %v772
      %v811 = vpack.c.b16 %v775, %v774
      %v812 = vpack.c.b16 %v777, %v776
      %v813 = vpack.c.b16 %v779, %v778
      %v814 = vpack.c.b16 %v781, %v780
      %v815 = vpack.c.b16 %v783, %v782
      %848 = vmatprep.subr.bf16.mxu0 0
      %849 = vmatpush1.bf16.msra.mxu0 %v791
      %850 = vmatprep.subr.bf16.mxu0 0
      %851 = vmatpush1.bf16.msra.mxu0 %v790
      %852 = vmatprep.subr.bf16.mxu0 0
      %853 = vmatpush1.bf16.msra.mxu0 %v789
      %854 = vmatprep.subr.bf16.mxu0 0
      %855 = vmatpush1.bf16.msra.mxu0 %v788
      %856 = vmatprep.subr.bf16.mxu0 0
      %857 = vmatpush1.bf16.msra.mxu0 %v787
      %858 = vmatprep.subr.bf16.mxu0 0
      %859 = vmatpush1.bf16.msra.mxu0 %v786
      %860 = vmatprep.subr.bf16.mxu0 0
      %861 = vmatpush1.bf16.msra.mxu0 %v785
      %862 = vmatprep.subr.bf16.mxu0 0
      %863 = vmatpush1.bf16.msra.mxu0 %v784
      %864 = vmatprep.subr.bf16.mxu0 0
      %865 = vmatpush2.bf16.msra.mxu0 %v799
      %866 = vmatprep.subr.bf16.mxu0 0
      %867 = vmatpush2.bf16.msra.mxu0 %v798
      %868 = vmatprep.subr.bf16.mxu0 0
      %869 = vmatpush2.bf16.msra.mxu0 %v797
      %870 = vmatprep.subr.bf16.mxu0 0
      %871 = vmatpush2.bf16.msra.mxu0 %v796
      %872 = vmatprep.subr.bf16.mxu0 0
      %873 = vmatpush2.bf16.msra.mxu0 %v795
      %874 = vmatprep.subr.bf16.mxu0 0
      %875 = vmatpush2.bf16.msra.mxu0 %v794
      %876 = vmatprep.subr.bf16.mxu0 0
      %877 = vmatpush2.bf16.msra.mxu0 %v793
      %878 = vmatprep.subr.bf16.mxu0 0
      %879 = vmatpush2.bf16.msra.mxu0 %v792
      %880 = vmatprep.mubr.bf16.mxu0 %v649
      %881 = vmatmul.mubr.bf16.gmra.mxu0 %v648
      %v882 = vpop.f32.mrf.mxu0
      %v883 = vadd.f32 %v637, %v882
      %v884 = vpop.f32.mrf.mxu0
      %v885 = vpop.f32.mrf.mxu0
      %v886 = vpop.f32.mrf.mxu0
      %887 = vdwg.mxu0
      %888 = vmatprep.subr.bf16.mxu0 0
      %889 = vmatpush1.bf16.msra.mxu0 %v807
      %890 = vmatprep.subr.bf16.mxu0 0
      %891 = vmatpush1.bf16.msra.mxu0 %v806
      %892 = vmatprep.subr.bf16.mxu0 0
      %893 = vmatpush1.bf16.msra.mxu0 %v805
      %894 = vmatprep.subr.bf16.mxu0 0
      %895 = vmatpush1.bf16.msra.mxu0 %v804
      %896 = vmatprep.subr.bf16.mxu0 0
      %897 = vmatpush1.bf16.msra.mxu0 %v803
      %898 = vmatprep.subr.bf16.mxu0 0
      %899 = vmatpush1.bf16.msra.mxu0 %v802
      %900 = vmatprep.subr.bf16.mxu0 0
      %901 = vmatpush1.bf16.msra.mxu0 %v801
      %902 = vmatprep.subr.bf16.mxu0 0
      %903 = vmatpush1.bf16.msra.mxu0 %v800
      %904 = vmatprep.subr.bf16.mxu0 0
      %905 = vmatpush2.bf16.msra.mxu0 %v815
      %906 = vmatprep.subr.bf16.mxu0 0
      %907 = vmatpush2.bf16.msra.mxu0 %v814
      %908 = vmatprep.subr.bf16.mxu0 0
      %909 = vmatpush2.bf16.msra.mxu0 %v813
      %910 = vmatprep.subr.bf16.mxu0 0
      %911 = vmatpush2.bf16.msra.mxu0 %v812
      %912 = vmatprep.subr.bf16.mxu0 0
      %913 = vmatpush2.bf16.msra.mxu0 %v811
      %914 = vmatprep.subr.bf16.mxu0 0
      %915 = vmatpush2.bf16.msra.mxu0 %v810
      %916 = vmatprep.subr.bf16.mxu0 0
      %917 = vmatpush2.bf16.msra.mxu0 %v809
      %918 = vmatprep.subr.bf16.mxu0 0
      %919 = vmatpush2.bf16.msra.mxu0 %v808
      %920 = vmatprep.mubr.bf16.mxu0 %v651
      %921 = vmatmul.mubr.bf16.gmra.mxu0 %v650
      %v922 = vpop.f32.mrf.mxu0
      %v923 = vadd.f32 %v883, %v922
      %v924 = vpop.f32.mrf.mxu0
      %v925 = vpop.f32.mrf.mxu0
      %v926 = vpop.f32.mrf.mxu0
      %927 = vdwg.mxu0
      %v928 = vld [vmem:[%s190] sm:$0x22]
      %v929 = vld [vmem:[%s190 + $0x8] sm:$0x22]
      %s930 = scalar_lea.vmem %s1, 512
      %v931 = vld [vmem:[%s930] sm:$0xf]
      %v932 = vld [vmem:[%s930 + $0x4] sm:$0xf]
      %v933 = vld [vmem:[%s930 + $0x8] sm:$0xf]
      %v934 = vld [vmem:[%s930 + $0xc] sm:$0xf]
      %v935 = vld [vmem:[%s930 + $0x10] sm:$0xf]
      %v936 = vld [vmem:[%s930 + $0x14] sm:$0xf]
      %v937 = vld [vmem:[%s930 + $0x18] sm:$0xf]
      %v938 = vld [vmem:[%s930 + $0x1c] sm:$0xf]
      %v939 = vld [vmem:[%s930 + $0x20] sm:$0xf]
      %v940 = vld [vmem:[%s930 + $0x24] sm:$0xf]
      %v941 = vld [vmem:[%s930 + $0x28] sm:$0xf]
      %v942 = vld [vmem:[%s930 + $0x2c] sm:$0xf]
      %v943 = vld [vmem:[%s930 + $0x30] sm:$0xf]
      %v944 = vld [vmem:[%s930 + $0x34] sm:$0xf]
      %v945 = vld [vmem:[%s930 + $0x38] sm:$0xf]
      %v946 = vld [vmem:[%s930 + $0x3c] sm:$0xf]
      %v947 = vld [vmem:[%s930 + $0x40] sm:$0xf]
      %v948 = vld [vmem:[%s930 + $0x44] sm:$0xf]
      %v949 = vld [vmem:[%s930 + $0x48] sm:$0xf]
      %v950 = vld [vmem:[%s930 + $0x4c] sm:$0xf]
      %v951 = vld [vmem:[%s930 + $0x50] sm:$0xf]
      %v952 = vld [vmem:[%s930 + $0x54] sm:$0xf]
      %v953 = vld [vmem:[%s930 + $0x58] sm:$0xf]
      %v954 = vld [vmem:[%s930 + $0x5c] sm:$0xf]
      %v955 = vld [vmem:[%s930 + $0x60] sm:$0xf]
      %v956 = vld [vmem:[%s930 + $0x64] sm:$0xf]
      %v957 = vld [vmem:[%s930 + $0x68] sm:$0xf]
      %v958 = vld [vmem:[%s930 + $0x6c] sm:$0xf]
      %v959 = vld [vmem:[%s930 + $0x70] sm:$0xf]
      %v960 = vld [vmem:[%s930 + $0x74] sm:$0xf]
      %v961 = vld [vmem:[%s930 + $0x78] sm:$0xf]
      %v962 = vld [vmem:[%s930 + $0x7c] sm:$0xf]
      %v963 = vld [vmem:[%s930 + $0x80] sm:$0xf]
      %v964 = vld [vmem:[%s930 + $0x84] sm:$0xf]
      %v965 = vld [vmem:[%s930 + $0x88] sm:$0xf]
      %v966 = vld [vmem:[%s930 + $0x8c] sm:$0xf]
      %v967 = vld [vmem:[%s930 + $0x90] sm:$0xf]
      %v968 = vld [vmem:[%s930 + $0x94] sm:$0xf]
      %v969 = vld [vmem:[%s930 + $0x98] sm:$0xf]
      %v970 = vld [vmem:[%s930 + $0x9c] sm:$0xf]
      %v971 = vld [vmem:[%s930 + $0xa0] sm:$0xf]
      %v972 = vld [vmem:[%s930 + $0xa4] sm:$0xf]
      %v973 = vld [vmem:[%s930 + $0xa8] sm:$0xf]
      %v974 = vld [vmem:[%s930 + $0xac] sm:$0xf]
      %v975 = vld [vmem:[%s930 + $0xb0] sm:$0xf]
      %v976 = vld [vmem:[%s930 + $0xb4] sm:$0xf]
      %v977 = vld [vmem:[%s930 + $0xb8] sm:$0xf]
      %v978 = vld [vmem:[%s930 + $0xbc] sm:$0xf]
      %v979 = vld [vmem:[%s930 + $0xc0] sm:$0xf]
      %v980 = vld [vmem:[%s930 + $0xc4] sm:$0xf]
      %v981 = vld [vmem:[%s930 + $0xc8] sm:$0xf]
      %v982 = vld [vmem:[%s930 + $0xcc] sm:$0xf]
      %v983 = vld [vmem:[%s930 + $0xd0] sm:$0xf]
      %v984 = vld [vmem:[%s930 + $0xd4] sm:$0xf]
      %v985 = vld [vmem:[%s930 + $0xd8] sm:$0xf]
      %v986 = vld [vmem:[%s930 + $0xdc] sm:$0xf]
      %v987 = vld [vmem:[%s930 + $0xe0] sm:$0xf]
      %v988 = vld [vmem:[%s930 + $0xe4] sm:$0xf]
      %v989 = vld [vmem:[%s930 + $0xe8] sm:$0xf]
      %v990 = vld [vmem:[%s930 + $0xec] sm:$0xf]
      %v991 = vld [vmem:[%s930 + $0xf0] sm:$0xf]
      %v992 = vld [vmem:[%s930 + $0xf4] sm:$0xf]
      %v993 = vld [vmem:[%s930 + $0xf8] sm:$0xf]
      %v994 = vld [vmem:[%s930 + $0xfc] sm:$0xf]
      %v997 = vunpack.c.l.b16 %v928
      %v998 = vunpack.c.h.b16 %v928
      %v999 = vunpack.c.l.b16 %v929
      %v1000 = vunpack.c.h.b16 %v929
      %v1001 = vpack.c.b16 %v997, %v997
      %v1002 = vpack.c.b16 %v998, %v998
      %v1003 = vpack.c.b16 %v999, %v999
      %v1004 = vpack.c.b16 %v1000, %v1000
      %v1005 = vrot.slane %v1001, 1
      %v1006 = vrot.slane %v1002, 1
      %v1007 = vrot.slane %v1003, 1
      %v1008 = vrot.slane %v1004, 1
      %v1077 = vunpack.c.l.b16 %v931
      %v1078 = vunpack.c.l.b16 %v932
      %v1079 = vunpack.c.l.b16 %v933
      %v1080 = vunpack.c.l.b16 %v934
      %v1081 = vunpack.c.l.b16 %v935
      %v1082 = vunpack.c.l.b16 %v936
      %v1083 = vunpack.c.l.b16 %v937
      %v1084 = vunpack.c.l.b16 %v938
      %v1085 = vunpack.c.l.b16 %v939
      %v1086 = vunpack.c.l.b16 %v940
      %v1087 = vunpack.c.l.b16 %v941
      %v1088 = vunpack.c.l.b16 %v942
      %v1089 = vunpack.c.l.b16 %v943
      %v1090 = vunpack.c.l.b16 %v944
      %v1091 = vunpack.c.l.b16 %v945
      %v1092 = vunpack.c.l.b16 %v946
      %v1093 = vunpack.c.l.b16 %v947
      %v1094 = vunpack.c.l.b16 %v948
      %v1095 = vunpack.c.l.b16 %v949
      %v1096 = vunpack.c.l.b16 %v950
      %v1097 = vunpack.c.l.b16 %v951
      %v1098 = vunpack.c.l.b16 %v952
      %v1099 = vunpack.c.l.b16 %v953
      %v1100 = vunpack.c.l.b16 %v954
      %v1101 = vunpack.c.l.b16 %v955
      %v1102 = vunpack.c.l.b16 %v956
      %v1103 = vunpack.c.l.b16 %v957
      %v1104 = vunpack.c.l.b16 %v958
      %v1105 = vunpack.c.l.b16 %v959
      %v1106 = vunpack.c.l.b16 %v960
      %v1107 = vunpack.c.l.b16 %v961
      %v1108 = vunpack.c.l.b16 %v962
      %v1109 = vunpack.c.l.b16 %v963
      %v1110 = vunpack.c.l.b16 %v964
      %v1111 = vunpack.c.l.b16 %v965
      %v1112 = vunpack.c.l.b16 %v966
      %v1113 = vunpack.c.l.b16 %v967
      %v1114 = vunpack.c.l.b16 %v968
      %v1115 = vunpack.c.l.b16 %v969
      %v1116 = vunpack.c.l.b16 %v970
      %v1117 = vunpack.c.l.b16 %v971
      %v1118 = vunpack.c.l.b16 %v972
      %v1119 = vunpack.c.l.b16 %v973
      %v1120 = vunpack.c.l.b16 %v974
      %v1121 = vunpack.c.l.b16 %v975
      %v1122 = vunpack.c.l.b16 %v976
      %v1123 = vunpack.c.l.b16 %v977
      %v1124 = vunpack.c.l.b16 %v978
      %v1125 = vunpack.c.l.b16 %v979
      %v1126 = vunpack.c.l.b16 %v980
      %v1127 = vunpack.c.l.b16 %v981
      %v1128 = vunpack.c.l.b16 %v982
      %v1129 = vunpack.c.l.b16 %v983
      %v1130 = vunpack.c.l.b16 %v984
      %v1131 = vunpack.c.l.b16 %v985
      %v1132 = vunpack.c.l.b16 %v986
      %v1133 = vunpack.c.l.b16 %v987
      %v1134 = vunpack.c.l.b16 %v988
      %v1135 = vunpack.c.l.b16 %v989
      %v1136 = vunpack.c.l.b16 %v990
      %v1137 = vunpack.c.l.b16 %v991
      %v1138 = vunpack.c.l.b16 %v992
      %v1139 = vunpack.c.l.b16 %v993
      %v1140 = vunpack.c.l.b16 %v994
      %v1141 = vpack.c.b16 %v1078, %v1077
      %v1142 = vpack.c.b16 %v1080, %v1079
      %v1143 = vpack.c.b16 %v1082, %v1081
      %v1144 = vpack.c.b16 %v1084, %v1083
      %v1145 = vpack.c.b16 %v1086, %v1085
      %v1146 = vpack.c.b16 %v1088, %v1087
      %v1147 = vpack.c.b16 %v1090, %v1089
      %v1148 = vpack.c.b16 %v1092, %v1091
      %v1149 = vpack.c.b16 %v1094, %v1093
      %v1150 = vpack.c.b16 %v1096, %v1095
      %v1151 = vpack.c.b16 %v1098, %v1097
      %v1152 = vpack.c.b16 %v1100, %v1099
      %v1153 = vpack.c.b16 %v1102, %v1101
      %v1154 = vpack.c.b16 %v1104, %v1103
      %v1155 = vpack.c.b16 %v1106, %v1105
      %v1156 = vpack.c.b16 %v1108, %v1107
      %v1157 = vpack.c.b16 %v1110, %v1109
      %v1158 = vpack.c.b16 %v1112, %v1111
      %v1159 = vpack.c.b16 %v1114, %v1113
      %v1160 = vpack.c.b16 %v1116, %v1115
      %v1161 = vpack.c.b16 %v1118, %v1117
      %v1162 = vpack.c.b16 %v1120, %v1119
      %v1163 = vpack.c.b16 %v1122, %v1121
      %v1164 = vpack.c.b16 %v1124, %v1123
      %v1165 = vpack.c.b16 %v1126, %v1125
      %v1166 = vpack.c.b16 %v1128, %v1127
      %v1167 = vpack.c.b16 %v1130, %v1129
      %v1168 = vpack.c.b16 %v1132, %v1131
      %v1169 = vpack.c.b16 %v1134, %v1133
      %v1170 = vpack.c.b16 %v1136, %v1135
      %v1171 = vpack.c.b16 %v1138, %v1137
      %v1172 = vpack.c.b16 %v1140, %v1139
      %1205 = vmatprep.subr.bf16.mxu0 0
      %1206 = vmatpush1.bf16.msra.mxu0 %v1148
      %1207 = vmatprep.subr.bf16.mxu0 0
      %1208 = vmatpush1.bf16.msra.mxu0 %v1147
      %1209 = vmatprep.subr.bf16.mxu0 0
      %1210 = vmatpush1.bf16.msra.mxu0 %v1146
      %1211 = vmatprep.subr.bf16.mxu0 0
      %1212 = vmatpush1.bf16.msra.mxu0 %v1145
      %1213 = vmatprep.subr.bf16.mxu0 0
      %1214 = vmatpush1.bf16.msra.mxu0 %v1144
      %1215 = vmatprep.subr.bf16.mxu0 0
      %1216 = vmatpush1.bf16.msra.mxu0 %v1143
      %1217 = vmatprep.subr.bf16.mxu0 0
      %1218 = vmatpush1.bf16.msra.mxu0 %v1142
      %1219 = vmatprep.subr.bf16.mxu0 0
      %1220 = vmatpush1.bf16.msra.mxu0 %v1141
      %1221 = vmatprep.subr.bf16.mxu0 0
      %1222 = vmatpush2.bf16.msra.mxu0 %v1156
      %1223 = vmatprep.subr.bf16.mxu0 0
      %1224 = vmatpush2.bf16.msra.mxu0 %v1155
      %1225 = vmatprep.subr.bf16.mxu0 0
      %1226 = vmatpush2.bf16.msra.mxu0 %v1154
      %1227 = vmatprep.subr.bf16.mxu0 0
      %1228 = vmatpush2.bf16.msra.mxu0 %v1153
      %1229 = vmatprep.subr.bf16.mxu0 0
      %1230 = vmatpush2.bf16.msra.mxu0 %v1152
      %1231 = vmatprep.subr.bf16.mxu0 0
      %1232 = vmatpush2.bf16.msra.mxu0 %v1151
      %1233 = vmatprep.subr.bf16.mxu0 0
      %1234 = vmatpush2.bf16.msra.mxu0 %v1150
      %1235 = vmatprep.subr.bf16.mxu0 0
      %1236 = vmatpush2.bf16.msra.mxu0 %v1149
      %1237 = vmatprep.mubr.bf16.mxu0 %v1006
      %1238 = vmatmul.mubr.bf16.gmra.mxu0 %v1005
      %v1239 = vpop.f32.mrf.mxu0
      %v1240 = vadd.f32 0.0, %v1239
      %v1241 = vpop.f32.mrf.mxu0
      %v1242 = vpop.f32.mrf.mxu0
      %v1243 = vpop.f32.mrf.mxu0
      %1244 = vdwg.mxu0
      %1245 = vmatprep.subr.bf16.mxu0 0
      %1246 = vmatpush1.bf16.msra.mxu0 %v1164
      %1247 = vmatprep.subr.bf16.mxu0 0
      %1248 = vmatpush1.bf16.msra.mxu0 %v1163
      %1249 = vmatprep.subr.bf16.mxu0 0
      %1250 = vmatpush1.bf16.msra.mxu0 %v1162
      %1251 = vmatprep.subr.bf16.mxu0 0
      %1252 = vmatpush1.bf16.msra.mxu0 %v1161
      %1253 = vmatprep.subr.bf16.mxu0 0
      %1254 = vmatpush1.bf16.msra.mxu0 %v1160
      %1255 = vmatprep.subr.bf16.mxu0 0
      %1256 = vmatpush1.bf16.msra.mxu0 %v1159
      %1257 = vmatprep.subr.bf16.mxu0 0
      %1258 = vmatpush1.bf16.msra.mxu0 %v1158
      %1259 = vmatprep.subr.bf16.mxu0 0
      %1260 = vmatpush1.bf16.msra.mxu0 %v1157
      %1261 = vmatprep.subr.bf16.mxu0 0
      %1262 = vmatpush2.bf16.msra.mxu0 %v1172
      %1263 = vmatprep.subr.bf16.mxu0 0
      %1264 = vmatpush2.bf16.msra.mxu0 %v1171
      %1265 = vmatprep.subr.bf16.mxu0 0
      %1266 = vmatpush2.bf16.msra.mxu0 %v1170
      %1267 = vmatprep.subr.bf16.mxu0 0
      %1268 = vmatpush2.bf16.msra.mxu0 %v1169
      %1269 = vmatprep.subr.bf16.mxu0 0
      %1270 = vmatpush2.bf16.msra.mxu0 %v1168
      %1271 = vmatprep.subr.bf16.mxu0 0
      %1272 = vmatpush2.bf16.msra.mxu0 %v1167
      %1273 = vmatprep.subr.bf16.mxu0 0
      %1274 = vmatpush2.bf16.msra.mxu0 %v1166
      %1275 = vmatprep.subr.bf16.mxu0 0
      %1276 = vmatpush2.bf16.msra.mxu0 %v1165
      %1277 = vmatprep.mubr.bf16.mxu0 %v1008
      %1278 = vmatmul.mubr.bf16.gmra.mxu0 %v1007
      %v1279 = vpop.f32.mrf.mxu0
      %v1280 = vadd.f32 %v1240, %v1279
      %v1281 = vpop.f32.mrf.mxu0
      %v1282 = vpop.f32.mrf.mxu0
      %v1283 = vpop.f32.mrf.mxu0
      %1284 = vdwg.mxu0
      %v1285 = vadd.f32 %v923, %v1280
      %v1286 = vld [vmem:[%s190] sm:$0x66]
      %v1287 = vld [vmem:[%s190 + $0x8] sm:$0x66]
      %s1288 = scalar_lea.vmem %s1, 768
      %v1289 = vld [vmem:[%s1288] sm:$0xf]
      %v1290 = vld [vmem:[%s1288 + $0x4] sm:$0xf]
      %v1291 = vld [vmem:[%s1288 + $0x8] sm:$0xf]
      %v1292 = vld [vmem:[%s1288 + $0xc] sm:$0xf]
      %v1293 = vld [vmem:[%s1288 + $0x10] sm:$0xf]
      %v1294 = vld [vmem:[%s1288 + $0x14] sm:$0xf]
      %v1295 = vld [vmem:[%s1288 + $0x18] sm:$0xf]
      %v1296 = vld [vmem:[%s1288 + $0x1c] sm:$0xf]
      %v1297 = vld [vmem:[%s1288 + $0x20] sm:$0xf]
      %v1298 = vld [vmem:[%s1288 + $0x24] sm:$0xf]
      %v1299 = vld [vmem:[%s1288 + $0x28] sm:$0xf]
      %v1300 = vld [vmem:[%s1288 + $0x2c] sm:$0xf]
      %v1301 = vld [vmem:[%s1288 + $0x30] sm:$0xf]
      %v1302 = vld [vmem:[%s1288 + $0x34] sm:$0xf]
      %v1303 = vld [vmem:[%s1288 + $0x38] sm:$0xf]
      %v1304 = vld [vmem:[%s1288 + $0x3c] sm:$0xf]
      %v1305 = vld [vmem:[%s1288 + $0x40] sm:$0xf]
      %v1306 = vld [vmem:[%s1288 + $0x44] sm:$0xf]
      %v1307 = vld [vmem:[%s1288 + $0x48] sm:$0xf]
      %v1308 = vld [vmem:[%s1288 + $0x4c] sm:$0xf]
      %v1309 = vld [vmem:[%s1288 + $0x50] sm:$0xf]
      %v1310 = vld [vmem:[%s1288 + $0x54] sm:$0xf]
      %v1311 = vld [vmem:[%s1288 + $0x58] sm:$0xf]
      %v1312 = vld [vmem:[%s1288 + $0x5c] sm:$0xf]
      %v1313 = vld [vmem:[%s1288 + $0x60] sm:$0xf]
      %v1314 = vld [vmem:[%s1288 + $0x64] sm:$0xf]
      %v1315 = vld [vmem:[%s1288 + $0x68] sm:$0xf]
      %v1316 = vld [vmem:[%s1288 + $0x6c] sm:$0xf]
      %v1317 = vld [vmem:[%s1288 + $0x70] sm:$0xf]
      %v1318 = vld [vmem:[%s1288 + $0x74] sm:$0xf]
      %v1319 = vld [vmem:[%s1288 + $0x78] sm:$0xf]
      %v1320 = vld [vmem:[%s1288 + $0x7c] sm:$0xf]
      %v1321 = vld [vmem:[%s1288 + $0x80] sm:$0xf]
      %v1322 = vld [vmem:[%s1288 + $0x84] sm:$0xf]
      %v1323 = vld [vmem:[%s1288 + $0x88] sm:$0xf]
      %v1324 = vld [vmem:[%s1288 + $0x8c] sm:$0xf]
      %v1325 = vld [vmem:[%s1288 + $0x90] sm:$0xf]
      %v1326 = vld [vmem:[%s1288 + $0x94] sm:$0xf]
      %v1327 = vld [vmem:[%s1288 + $0x98] sm:$0xf]
      %v1328 = vld [vmem:[%s1288 + $0x9c] sm:$0xf]
      %v1329 = vld [vmem:[%s1288 + $0xa0] sm:$0xf]
      %v1330 = vld [vmem:[%s1288 + $0xa4] sm:$0xf]
      %v1331 = vld [vmem:[%s1288 + $0xa8] sm:$0xf]
      %v1332 = vld [vmem:[%s1288 + $0xac] sm:$0xf]
      %v1333 = vld [vmem:[%s1288 + $0xb0] sm:$0xf]
      %v1334 = vld [vmem:[%s1288 + $0xb4] sm:$0xf]
      %v1335 = vld [vmem:[%s1288 + $0xb8] sm:$0xf]
      %v1336 = vld [vmem:[%s1288 + $0xbc] sm:$0xf]
      %v1337 = vld [vmem:[%s1288 + $0xc0] sm:$0xf]
      %v1338 = vld [vmem:[%s1288 + $0xc4] sm:$0xf]
      %v1339 = vld [vmem:[%s1288 + $0xc8] sm:$0xf]
      %v1340 = vld [vmem:[%s1288 + $0xcc] sm:$0xf]
      %v1341 = vld [vmem:[%s1288 + $0xd0] sm:$0xf]
      %v1342 = vld [vmem:[%s1288 + $0xd4] sm:$0xf]
      %v1343 = vld [vmem:[%s1288 + $0xd8] sm:$0xf]
      %v1344 = vld [vmem:[%s1288 + $0xdc] sm:$0xf]
      %v1345 = vld [vmem:[%s1288 + $0xe0] sm:$0xf]
      %v1346 = vld [vmem:[%s1288 + $0xe4] sm:$0xf]
      %v1347 = vld [vmem:[%s1288 + $0xe8] sm:$0xf]
      %v1348 = vld [vmem:[%s1288 + $0xec] sm:$0xf]
      %v1349 = vld [vmem:[%s1288 + $0xf0] sm:$0xf]
      %v1350 = vld [vmem:[%s1288 + $0xf4] sm:$0xf]
      %v1351 = vld [vmem:[%s1288 + $0xf8] sm:$0xf]
      %v1352 = vld [vmem:[%s1288 + $0xfc] sm:$0xf]
      %v1355 = vunpack.c.l.b16 %v1286
      %v1356 = vunpack.c.h.b16 %v1286
      %v1357 = vunpack.c.l.b16 %v1287
      %v1358 = vunpack.c.h.b16 %v1287
      %v1359 = vpack.c.b16 %v1355, %v1355
      %v1360 = vpack.c.b16 %v1356, %v1356
      %v1361 = vpack.c.b16 %v1357, %v1357
      %v1362 = vpack.c.b16 %v1358, %v1358
      %v1364 = vshrl.u32 %v1359, 16
      %v1366 = vrot.slane %v1364, 1
      %v1367 = vshll.u32 %v1359, 16
      %v1369 = vrot.slane %v1367, 2
      %v1370 = vor.u32 %v1366, %v1369
      %v1372 = vshrl.u32 %v1360, 16
      %v1374 = vrot.slane %v1372, 1
      %v1375 = vshll.u32 %v1360, 16
      %v1377 = vrot.slane %v1375, 2
      %v1378 = vor.u32 %v1374, %v1377
      %v1380 = vshrl.u32 %v1361, 16
      %v1382 = vrot.slane %v1380, 1
      %v1383 = vshll.u32 %v1361, 16
      %v1385 = vrot.slane %v1383, 2
      %v1386 = vor.u32 %v1382, %v1385
      %v1388 = vshrl.u32 %v1362, 16
      %v1390 = vrot.slane %v1388, 1
      %v1391 = vshll.u32 %v1362, 16
      %v1393 = vrot.slane %v1391, 2
      %v1394 = vor.u32 %v1390, %v1393
      %v1463 = vunpack.c.l.b16 %v1289
      %v1464 = vunpack.c.l.b16 %v1290
      %v1465 = vunpack.c.l.b16 %v1291
      %v1466 = vunpack.c.l.b16 %v1292
      %v1467 = vunpack.c.l.b16 %v1293
      %v1468 = vunpack.c.l.b16 %v1294
      %v1469 = vunpack.c.l.b16 %v1295
      %v1470 = vunpack.c.l.b16 %v1296
      %v1471 = vunpack.c.l.b16 %v1297
      %v1472 = vunpack.c.l.b16 %v1298
      %v1473 = vunpack.c.l.b16 %v1299
      %v1474 = vunpack.c.l.b16 %v1300
      %v1475 = vunpack.c.l.b16 %v1301
      %v1476 = vunpack.c.l.b16 %v1302
      %v1477 = vunpack.c.l.b16 %v1303
      %v1478 = vunpack.c.l.b16 %v1304
      %v1479 = vunpack.c.l.b16 %v1305
      %v1480 = vunpack.c.l.b16 %v1306
      %v1481 = vunpack.c.l.b16 %v1307
      %v1482 = vunpack.c.l.b16 %v1308
      %v1483 = vunpack.c.l.b16 %v1309
      %v1484 = vunpack.c.l.b16 %v1310
      %v1485 = vunpack.c.l.b16 %v1311
      %v1486 = vunpack.c.l.b16 %v1312
      %v1487 = vunpack.c.l.b16 %v1313
      %v1488 = vunpack.c.l.b16 %v1314
      %v1489 = vunpack.c.l.b16 %v1315
      %v1490 = vunpack.c.l.b16 %v1316
      %v1491 = vunpack.c.l.b16 %v1317
      %v1492 = vunpack.c.l.b16 %v1318
      %v1493 = vunpack.c.l.b16 %v1319
      %v1494 = vunpack.c.l.b16 %v1320
      %v1495 = vunpack.c.l.b16 %v1321
      %v1496 = vunpack.c.l.b16 %v1322
      %v1497 = vunpack.c.l.b16 %v1323
      %v1498 = vunpack.c.l.b16 %v1324
      %v1499 = vunpack.c.l.b16 %v1325
      %v1500 = vunpack.c.l.b16 %v1326
      %v1501 = vunpack.c.l.b16 %v1327
      %v1502 = vunpack.c.l.b16 %v1328
      %v1503 = vunpack.c.l.b16 %v1329
      %v1504 = vunpack.c.l.b16 %v1330
      %v1505 = vunpack.c.l.b16 %v1331
      %v1506 = vunpack.c.l.b16 %v1332
      %v1507 = vunpack.c.l.b16 %v1333
      %v1508 = vunpack.c.l.b16 %v1334
      %v1509 = vunpack.c.l.b16 %v1335
      %v1510 = vunpack.c.l.b16 %v1336
      %v1511 = vunpack.c.l.b16 %v1337
      %v1512 = vunpack.c.l.b16 %v1338
      %v1513 = vunpack.c.l.b16 %v1339
      %v1514 = vunpack.c.l.b16 %v1340
      %v1515 = vunpack.c.l.b16 %v1341
      %v1516 = vunpack.c.l.b16 %v1342
      %v1517 = vunpack.c.l.b16 %v1343
      %v1518 = vunpack.c.l.b16 %v1344
      %v1519 = vunpack.c.l.b16 %v1345
      %v1520 = vunpack.c.l.b16 %v1346
      %v1521 = vunpack.c.l.b16 %v1347
      %v1522 = vunpack.c.l.b16 %v1348
      %v1523 = vunpack.c.l.b16 %v1349
      %v1524 = vunpack.c.l.b16 %v1350
      %v1525 = vunpack.c.l.b16 %v1351
      %v1526 = vunpack.c.l.b16 %v1352
      %v1527 = vpack.c.b16 %v1464, %v1463
      %v1528 = vpack.c.b16 %v1466, %v1465
      %v1529 = vpack.c.b16 %v1468, %v1467
      %v1530 = vpack.c.b16 %v1470, %v1469
      %v1531 = vpack.c.b16 %v1472, %v1471
      %v1532 = vpack.c.b16 %v1474, %v1473
      %v1533 = vpack.c.b16 %v1476, %v1475
      %v1534 = vpack.c.b16 %v1478, %v1477
      %v1535 = vpack.c.b16 %v1480, %v1479
      %v1536 = vpack.c.b16 %v1482, %v1481
      %v1537 = vpack.c.b16 %v1484, %v1483
      %v1538 = vpack.c.b16 %v1486, %v1485
      %v1539 = vpack.c.b16 %v1488, %v1487
      %v1540 = vpack.c.b16 %v1490, %v1489
      %v1541 = vpack.c.b16 %v1492, %v1491
      %v1542 = vpack.c.b16 %v1494, %v1493
      %v1543 = vpack.c.b16 %v1496, %v1495
      %v1544 = vpack.c.b16 %v1498, %v1497
      %v1545 = vpack.c.b16 %v1500, %v1499
      %v1546 = vpack.c.b16 %v1502, %v1501
      %v1547 = vpack.c.b16 %v1504, %v1503
      %v1548 = vpack.c.b16 %v1506, %v1505
      %v1549 = vpack.c.b16 %v1508, %v1507
      %v1550 = vpack.c.b16 %v1510, %v1509
      %v1551 = vpack.c.b16 %v1512, %v1511
      %v1552 = vpack.c.b16 %v1514, %v1513
      %v1553 = vpack.c.b16 %v1516, %v1515
      %v1554 = vpack.c.b16 %v1518, %v1517
      %v1555 = vpack.c.b16 %v1520, %v1519
      %v1556 = vpack.c.b16 %v1522, %v1521
      %v1557 = vpack.c.b16 %v1524, %v1523
      %v1558 = vpack.c.b16 %v1526, %v1525
      %1591 = vmatprep.subr.bf16.mxu0 0
      %1592 = vmatpush1.bf16.msra.mxu0 %v1534
      %1593 = vmatprep.subr.bf16.mxu0 0
      %1594 = vmatpush1.bf16.msra.mxu0 %v1533
      %1595 = vmatprep.subr.bf16.mxu0 0
      %1596 = vmatpush1.bf16.msra.mxu0 %v1532
      %1597 = vmatprep.subr.bf16.mxu0 0
      %1598 = vmatpush1.bf16.msra.mxu0 %v1531
      %1599 = vmatprep.subr.bf16.mxu0 0
      %1600 = vmatpush1.bf16.msra.mxu0 %v1530
      %1601 = vmatprep.subr.bf16.mxu0 0
      %1602 = vmatpush1.bf16.msra.mxu0 %v1529
      %1603 = vmatprep.subr.bf16.mxu0 0
      %1604 = vmatpush1.bf16.msra.mxu0 %v1528
      %1605 = vmatprep.subr.bf16.mxu0 0
      %1606 = vmatpush1.bf16.msra.mxu0 %v1527
      %1607 = vmatprep.subr.bf16.mxu0 0
      %1608 = vmatpush2.bf16.msra.mxu0 %v1542
      %1609 = vmatprep.subr.bf16.mxu0 0
      %1610 = vmatpush2.bf16.msra.mxu0 %v1541
      %1611 = vmatprep.subr.bf16.mxu0 0
      %1612 = vmatpush2.bf16.msra.mxu0 %v1540
      %1613 = vmatprep.subr.bf16.mxu0 0
      %1614 = vmatpush2.bf16.msra.mxu0 %v1539
      %1615 = vmatprep.subr.bf16.mxu0 0
      %1616 = vmatpush2.bf16.msra.mxu0 %v1538
      %1617 = vmatprep.subr.bf16.mxu0 0
      %1618 = vmatpush2.bf16.msra.mxu0 %v1537
      %1619 = vmatprep.subr.bf16.mxu0 0
      %1620 = vmatpush2.bf16.msra.mxu0 %v1536
      %1621 = vmatprep.subr.bf16.mxu0 0
      %1622 = vmatpush2.bf16.msra.mxu0 %v1535
      %1623 = vmatprep.mubr.bf16.mxu0 %v1378
      %1624 = vmatmul.mubr.bf16.gmra.mxu0 %v1370
      %v1625 = vpop.f32.mrf.mxu0
      %v1626 = vadd.f32 0.0, %v1625
      %v1627 = vpop.f32.mrf.mxu0
      %v1628 = vpop.f32.mrf.mxu0
      %v1629 = vpop.f32.mrf.mxu0
      %1630 = vdwg.mxu0
      %1631 = vmatprep.subr.bf16.mxu0 0
      %1632 = vmatpush1.bf16.msra.mxu0 %v1550
      %1633 = vmatprep.subr.bf16.mxu0 0
      %1634 = vmatpush1.bf16.msra.mxu0 %v1549
      %1635 = vmatprep.subr.bf16.mxu0 0
      %1636 = vmatpush1.bf16.msra.mxu0 %v1548
      %1637 = vmatprep.subr.bf16.mxu0 0
      %1638 = vmatpush1.bf16.msra.mxu0 %v1547
      %1639 = vmatprep.subr.bf16.mxu0 0
      %1640 = vmatpush1.bf16.msra.mxu0 %v1546
      %1641 = vmatprep.subr.bf16.mxu0 0
      %1642 = vmatpush1.bf16.msra.mxu0 %v1545
      %1643 = vmatprep.subr.bf16.mxu0 0
      %1644 = vmatpush1.bf16.msra.mxu0 %v1544
      %1645 = vmatprep.subr.bf16.mxu0 0
      %1646 = vmatpush1.bf16.msra.mxu0 %v1543
      %1647 = vmatprep.subr.bf16.mxu0 0
      %1648 = vmatpush2.bf16.msra.mxu0 %v1558
      %1649 = vmatprep.subr.bf16.mxu0 0
      %1650 = vmatpush2.bf16.msra.mxu0 %v1557
      %1651 = vmatprep.subr.bf16.mxu0 0
      %1652 = vmatpush2.bf16.msra.mxu0 %v1556
      %1653 = vmatprep.subr.bf16.mxu0 0
      %1654 = vmatpush2.bf16.msra.mxu0 %v1555
      %1655 = vmatprep.subr.bf16.mxu0 0
      %1656 = vmatpush2.bf16.msra.mxu0 %v1554
      %1657 = vmatprep.subr.bf16.mxu0 0
      %1658 = vmatpush2.bf16.msra.mxu0 %v1553
      %1659 = vmatprep.subr.bf16.mxu0 0
      %1660 = vmatpush2.bf16.msra.mxu0 %v1552
      %1661 = vmatprep.subr.bf16.mxu0 0
      %1662 = vmatpush2.bf16.msra.mxu0 %v1551
      %1663 = vmatprep.mubr.bf16.mxu0 %v1394
      %1664 = vmatmul.mubr.bf16.gmra.mxu0 %v1386
      %v1665 = vpop.f32.mrf.mxu0
      %v1666 = vadd.f32 %v1626, %v1665
      %v1667 = vpop.f32.mrf.mxu0
      %v1668 = vpop.f32.mrf.mxu0
      %v1669 = vpop.f32.mrf.mxu0
      %1670 = vdwg.mxu0
      %v1671 = vadd.f32 %v1285, %v1666
      %v1672 = vld [vmem:[%s2] sm:$0x1]
      %v1674 = vlaneseq
      %v1675 = vshrl.u32 %v1674, 7
      %v1676 = vsub.s32 0, %v1675
      %v1677 = vrot.slane %v1672, %v1676
      %v1679 = vadd.f32 %v1671, %v1677
      %v1680 = vmax.f32 %v1679, 0.0
      %v1681 = vld [vmem:[%s3] sm:$0x3]
      %1683 = vset.pattern.permute.xlu0 0
      %1684 = vperm.xlu0 %1683, %v1681
      %v1685 = vpop.permute.xlu0 %1684
      %v1687 = vmul.f32 %v1680, %v1685
      %v1688 = vpack.c.bf16 %v1687, %v1687
      %1689 = vst [vmem:[%s193] sm:$0x1] %v1688
      %p1690 = scmp.lt.s32.totalorder %s15, 1
      %s1691 = scalar_select %p1690, %s15, 1
      %s1692 = scalar_lea.vmem %s4, %s1691
      // Predicated region
      $region37: #{_lambda_.7} parent=35 // pred_check
        %p1693 = pneg %p122
      $region38: #{_lambda_.7} parent=35 // pred_check_branch
        %1695 = sbr.rel (%p1693) target = $region40
      $region39: #{_lambda_.7} parent=35 // pred_region
        _
      $region40: #{_lambda_.7} parent=35 // pred_fallthru
        _
    $region36: #{_lambda_.7} parent=5 // pred_fallthru
      _
    %p1696 = scmp.le.s32.totalorder 2, %s10
    // Predicated region
    $region41: #{_lambda_.7} parent=5 // pred_check
      %p1697 = pneg %p1696
    $region42: #{_lambda_.7} parent=5 // pred_check_branch
      %1699 = sbr.rel (%p1697) target = $region44
    $region43: #{_lambda_.7} parent=5 // pred_region
      %s1700 = ssub.s32 %s10, 2
      // Predicated region
      $region45: #{_lambda_.7} parent=43 // pred_check
        %p1701 = pneg %p128
      $region46: #{_lambda_.7} parent=43 // pred_check_branch
        %1703 = sbr.rel (%p1701) target = $region48
      $region47: #{_lambda_.7} parent=43 // pred_region
        %p1704 = scmp.lt.s32.totalorder %s16, 1
        %s1705 = scalar_select %p1704, %s16, 1
        %s1706 = scalar_lea.vmem %s4, %s1705
      $region48: #{_lambda_.7} parent=43 // pred_fallthru
        _
    $region44: #{_lambda_.7} parent=5 // pred_fallthru
      _
  $region6: #{_lambda_.7} parent=0 // loop_footer
    %s14 = sadd.s32 1, %s10
  $region7: #{_lambda_.7} parent=0 // loop_footer_branch
    %9 = sbr.rel target = $region3
  $region8: #{_lambda_.7} parent=0 // loop_exit
    _

</llo_original>
